<compile_context>
chip_gen: v6e
topology: v6e:2x2x1
jax: 0.10.0
libtpu: 0.0.40
codegen_flags: <defaults>
</compile_context>

<pallas_src>
import numpy as np
import jax
import jax.numpy as jnp
from jax.experimental import pallas as pl
from jax.experimental.pallas import tpu as pltpu

# ----------------------------- hyperparameters ------------------------------
N_FINGERPRINT = 50
DIM = 32            # `dim`
LAYER_GNN = 3
LAYER_OUTPUT = 2
SEQ_LEN = 512       # stands in for the hard-coded 9000
BRANCH_KS = (5, 10, 15, 20)
NB = len(BRANCH_KS)
K_MAX = 20          # all branch kernels tap-padded to this (pad taps are zero)
C_IN, C1, C2, C3 = 2, 28, 64, 128
C_IN_P, C1_P = 8, 32                     # channel padding (sublane friendly, zero pad)

# MXU input dtype for conv layers 2/3 (accumulation is always f32). Kept bf16 on all
# generations per perf review.
CONV_DTYPE = jnp.bfloat16


def _rup(x, m):
    return (x + m - 1) // m * m


# ----------------------------- length tiling --------------------------------
LTILE = 512                       # layer-3 output columns per grid step
T2 = LTILE + 128                  # layer-2 cols computed per tile (needs >= LTILE+19)
T1 = LTILE + 256                  # layer-1 cols computed per tile (needs >= T2+19)
XW = LTILE + 384                  # words cols sliced per tile   (needs >= T1+19)
LP3 = _rup(SEQ_LEN, LTILE)        # padded layer-3 length covered by the grid
N_TILES = LP3 // LTILE
LP0 = LP3 + (XW - LTILE)          # padded words length (last tile slice stays in bounds)
L3_TRUE = tuple(SEQ_LEN - 3 * (k - 1) for k in BRANCH_KS)   # true layer-3 lengths


# ----------------------------- pallas kernel --------------------------------

def branch_kernel(l3_ref, words_ref, w1_ref, b1_ref, w2_ref, b2_ref, w3_ref, b3_ref,
                  fold_ref):
    """One (branch, length_tile) grid step: the three chained Conv1d layers, each as a
    single im2col MXU contraction, plus the masked 128-fold of y / y^2 accumulated into
    the resident output block."""
    b = pl.program_id(0)
    t = pl.program_id(1)
    l3 = l3_ref[b]                                    # true layer-3 length (SMEM scalar)
    off = pl.multiple_of(t * LTILE, LTILE)            # global column of first output here

    @pl.when(t == 0)
    def _init():
        fold_ref[...] = jnp.zeros_like(fold_ref)

    x = words_ref[:, pl.ds(off, XW)]                  # (8, XW) f32 (zero padded chans/tail)

    # ---- layer 1: one dot, contracting dim K_MAX*C_IN_P = 160 (f32) ----
    stack1 = jnp.concatenate([x[:, k:k + T1] for k in range(K_MAX)], axis=0)      # (160, T1)
    h1 = jnp.dot(w1_ref[0], stack1, preferred_element_type=jnp.float32) + b1_ref[0]
    h1 = h1.astype(CONV_DTYPE)                        # (32, T1); pad channels stay exactly 0

    # ---- layer 2: one dot, contracting dim K_MAX*C1_P = 640 (bf16 -> f32 acc) ----
    stack2 = jnp.concatenate([h1[:, k:k + T2] for k in range(K_MAX)], axis=0)     # (640, T2)
    h2 = jnp.dot(w2_ref[0], stack2, preferred_element_type=jnp.float32) + b2_ref[0]
    h2 = h2.astype(CONV_DTYPE)                        # (64, T2)

    # ---- layer 3: one dot, contracting dim K_MAX*C2 = 1280 (bf16 -> f32 acc) ----
    stack3 = jnp.concatenate([h2[:, k:k + LTILE] for k in range(K_MAX)], axis=0)  # (1280, LTILE)
    y = jnp.dot(w3_ref[0], stack3, preferred_element_type=jnp.float32) + b3_ref[0]  # (128, LTILE)

    # ---- fused epilogue: masked 128-fold of y and y^2 while y is still live ----
    # ysum[i, m] += sum_{j valid in tile, j%128==m} y[i, j];   ysq likewise for y^2.
    lane = jax.lax.broadcasted_iota(jnp.int32, (1, 128), 1)
    ysum = jnp.zeros((C3, 128), jnp.float32)
    ysq = jnp.zeros((C3, 128), jnp.float32)
    for c in range(LTILE // 128):
        valid = (lane + (off + c * 128)) < l3         # off, c*128 are multiples of 128
        yc = jnp.where(valid, y[:, c * 128:(c + 1) * 128], 0.0)
        ysum = ysum + yc
        ysq = ysq + yc * yc
    fold_ref[0, :, 0:128] += ysum                     # resident accumulator over tiles
    fold_ref[0, :, 128:256] += ysq


# ----------------------------- parameters -----------------------------------

def init_params(key):
    keys = iter(jax.random.split(key, 64))

    def nrm(shape, scale=0.1):
        return scale * jax.random.normal(next(keys), shape, jnp.float32)

    # Conv1d weights (torch layout (Cout, Cin, K)) -> im2col layout (Cout_p, K_MAX*Cin_p),
    # tap/channel padding is zero so results are exact; stacked over the 4 branches.
    def conv_stack(cout, cin, cout_p, cin_p, dtype):
        ws, bs = [], []
        for ksz in BRANCH_KS:
            w = nrm((cout, cin, ksz))
            bvec = nrm((cout,))
            wp = jnp.zeros((cout_p, K_MAX, cin_p), jnp.float32)
            wp = wp.at[:cout, :ksz, :cin].set(jnp.transpose(w, (0, 2, 1)))
            bp = jnp.zeros((cout_p, 1), jnp.float32).at[:cout, 0].set(bvec)
            ws.append(wp.reshape(cout_p, K_MAX * cin_p))
            bs.append(bp)
        return jnp.stack(ws).astype(dtype), jnp.stack(bs)

    w1, b1 = conv_stack(C1, C_IN, C1_P, C_IN_P, jnp.float32)
    w2, b2 = conv_stack(C2, C1, C2, C1_P, CONV_DTYPE)
    w3, b3 = conv_stack(C3, C2, C3, C2, CONV_DTYPE)

    params = {
        "embed_fingerprint": nrm((N_FINGERPRINT, DIM)),
        "w1": w1, "b1": b1, "w2": w2, "b2": b2, "w3": w3, "b3": b3,
        # Head weights stored pre-transposed (in, out): x @ W_t + b.
        "w_gnn": jnp.stack([nrm((DIM, DIM)).T for _ in range(LAYER_GNN)]),
        "b_gnn": jnp.stack([nrm((DIM,)).reshape(1, DIM) for _ in range(LAYER_GNN)]),
        "we_t": nrm((DIM, 2 * 512)).T,                       # embed_word: Linear(1024, dim)
        "be": nrm((DIM,)).reshape(1, DIM),
        "w_out": jnp.stack([nrm((2 * DIM, 2 * DIM)).T for _ in range(LAYER_OUTPUT)]),
        "b_out": jnp.stack([nrm((2 * DIM,)).reshape(1, 2 * DIM) for _ in range(LAYER_OUTPUT)]),
        "wi_t": nrm((2, 2 * DIM)).T,
        "bi": nrm((2,)).reshape(1, 2),
    }
    return params


# ----------------------------- forward ---------------------------------------

def _branch_call(l3s, words_pad, p):
    grid_spec = pltpu.PrefetchScalarGridSpec(
        num_scalar_prefetch=1,
        grid=(NB, N_TILES),
        in_specs=[
            pl.BlockSpec((C_IN_P, LP0), lambda b, t, ls: (0, 0)),            # words (once)
            pl.BlockSpec((1, C1_P, K_MAX * C_IN_P), lambda b, t, ls: (b, 0, 0)),
            pl.BlockSpec((1, C1_P, 1), lambda b, t, ls: (b, 0, 0)),
            pl.BlockSpec((1, C2, K_MAX * C1_P), lambda b, t, ls: (b, 0, 0)),
            pl.BlockSpec((1, C2, 1), lambda b, t, ls: (b, 0, 0)),
            pl.BlockSpec((1, C3, K_MAX * C2), lambda b, t, ls: (b, 0, 0)),
            pl.BlockSpec((1, C3, 1), lambda b, t, ls: (b, 0, 0)),
        ],
        out_specs=pl.BlockSpec((1, C3, 256), lambda b, t, ls: (b, 0, 0)),
    )
    return pl.pallas_call(
        branch_kernel,
        grid_spec=grid_spec,
        out_shape=jax.ShapeDtypeStruct((NB, C3, 256), jnp.float32),
        compiler_params=pltpu.CompilerParams(
            dimension_semantics=("parallel", "arbitrary")),
    )(l3s, words_pad, p["w1"], p["b1"], p["w2"], p["b2"], p["w3"], p["b3"])


@jax.jit
def forward(params, fingerprints, adjacency, words):
    # --- Protein branches: one fused pallas_call over (branch, length_tile) ---
    words2d = words.reshape(-1, 2, SEQ_LEN)[0]                              # (2, SEQ_LEN)
    words_pad = jnp.zeros((C_IN_P, LP0), jnp.float32).at[:C_IN, :SEQ_LEN].set(words2d)
    l3s = jnp.asarray(L3_TRUE, dtype=jnp.int32)
    folds = _branch_call(l3s, words_pad, params)                            # (4, 128, 256)

    # --- Tiny per-branch finish (exact wrap-around `repeat(L).view(-1,L)` semantics):
    #     wu = (A - 2B + C)/L with A = q*sum(w_^2) + sum_{m<r} u_blk^2,
    #     B = sum(ysum*u_blk), C = sum(y^2); u is 128-periodic along the length axis.
    #     All (128,128)-sized; kept as fused XLA ops.
    # TODO(synk): could move in-kernel (one-hot-matmul gather for u_blk) to shave the
    # last 512 KB HBM round trip; left in XLA for robustness.
    branch_vecs = []
    for b, l3 in enumerate(L3_TRUE):
        ysum = folds[b, :, :128]                                            # (128, 128)
        ysq = folds[b, :, 128:]                                             # (128, 128)
        w_flat = jnp.sum(ysum, axis=1) / l3                                 # per-channel means
        c_term = jnp.sum(ysq, axis=1)                                       # sum_j y^2
        idx = jnp.asarray(
            (np.arange(128)[:, None] * l3 + np.arange(128)[None, :]) % 128, jnp.int32)
        u_blk = jnp.take(w_flat, idx, axis=0)                               # u[i, m] (period 128)
        q, r = divmod(l3, 128)
        a_term = q * jnp.sum(w_flat * w_flat) + jnp.sum(u_blk[:, :r] ** 2, axis=1)
        b_term = jnp.sum(ysum * u_blk, axis=1)
        wu = (a_term - 2.0 * b_term + c_term) / l3                          # mean((u - y)^2)
        branch_vecs.append(jnp.concatenate([w_flat, wu], axis=0))           # (256,)
    word_vec = jnp.concatenate(branch_vecs, axis=0).reshape(1, -1)          # (1, 1024)

    # --- Compound GNN + head: plain XLA (all matmuls far below one MXU tile) ---
    xs = jnp.take(params["embed_fingerprint"], fingerprints, axis=0)        # (n_atoms, dim)
    for i in range(LAYER_GNN):
        hs = jax.nn.relu(xs @ params["w_gnn"][i] + params["b_gnn"][i])
        xs = xs + adjacency @ hs
    compound = jnp.mean(xs, axis=0, keepdims=True)                          # (1, dim)
    protein = word_vec @ params["we_t"] + params["be"]                      # (1, dim)
    cat = jnp.concatenate([compound, protein], axis=1)                      # (1, 2*dim)
    for j in range(LAYER_OUTPUT):
        cat = jax.nn.relu(cat @ params["w_out"][j] + params["b_out"][j])
    interaction = cat @ params["wi_t"] + params["bi"]                       # (1, 2)
    return interaction


# ----------------------------- driver ----------------------------------------

if __name__ == "__main__":
    key = jax.random.PRNGKey(0)
    k_par, k_fp, k_adj, k_words = jax.random.split(key, 4)
    params = init_params(k_par)

    n_atoms = 16
    fingerprints = jax.random.randint(k_fp, (n_atoms,), 0, N_FINGERPRINT, dtype=jnp.int32)
    adjacency = (jax.random.uniform(k_adj, (n_atoms, n_atoms)) < 0.3).astype(jnp.float32)
    words = jax.random.normal(k_words, (2 * SEQ_LEN,), jnp.float32)

    out = forward(params, fingerprints, adjacency, words)
    out = jax.block_until_ready(out)
    assert out.shape == (1, 2) and out.dtype == jnp.float32
    print("KERNEL_OK")
</pallas_src>

<mosaic_0001>
module attributes {stable_mosaic.version = 11 : i64} {
  func.func @branch_kernel(%arg0: i32, %arg1: i32, %arg2: memref<4xi32, #tpu.memory_space<smem>>, %arg3: memref<8x896xf32, #tpu.memory_space<vmem>>, %arg4: memref<1x32x160xf32, #tpu.memory_space<vmem>>, %arg5: memref<1x32x1xf32, #tpu.memory_space<vmem>>, %arg6: memref<1x64x640xbf16, #tpu.memory_space<vmem>>, %arg7: memref<1x64x1xf32, #tpu.memory_space<vmem>>, %arg8: memref<1x128x1280xbf16, #tpu.memory_space<vmem>>, %arg9: memref<1x128x1xf32, #tpu.memory_space<vmem>>, %arg10: memref<1x128x256xf32, #tpu.memory_space<vmem>>) attributes {dimension_semantics = [#tpu.dimension_semantics<parallel>, #tpu.dimension_semantics<arbitrary>], iteration_bounds = array<i64: 4, 1>, scalar_prefetch = 1 : i64, scratch_operands = 0 : i64, tpu.core_type = #tpu.core_type<tc>, window_params = [{pipeline_mode = #tpu.pipeline_mode<synchronous>, transform_indices = @transform_0, window_bounds = array<i64: 8, 896>}, {transform_indices = @transform_1, window_bounds = array<i64: 1, 32, 160>}, {transform_indices = @transform_2, window_bounds = array<i64: 1, 32, 1>}, {transform_indices = @transform_3, window_bounds = array<i64: 1, 64, 640>}, {transform_indices = @transform_4, window_bounds = array<i64: 1, 64, 1>}, {transform_indices = @transform_5, window_bounds = array<i64: 1, 128, 1280>}, {transform_indices = @transform_6, window_bounds = array<i64: 1, 128, 1>}, {transform_indices = @transform_7, window_bounds = array<i64: 1, 128, 256>}]} {
    %0 = arith.index_cast %arg0 : i32 to index
    %1 = memref.load %arg2[%0] : memref<4xi32, #tpu.memory_space<smem>>
    %c512_i32 = arith.constant 512 : i32
    %2 = arith.muli %arg1, %c512_i32 : i32
    %3 = tpu.assume_multiple %2, 512 : i32
    %c0_i32 = arith.constant 0 : i32
    %4 = arith.cmpi eq, %arg1, %c0_i32 : i32
    %5 = arith.extui %4 : i1 to i32
    %c0_i32_0 = arith.constant 0 : i32
    %6 = arith.cmpi ne, %5, %c0_i32_0 : i32
    scf.if %6 {
      %cst_39 = arith.constant 0.000000e+00 : f32
      %168 = vector.broadcast %cst_39 : f32 to vector<1x128x256xf32>
      %c0_40 = arith.constant 0 : index
      %c0_41 = arith.constant 0 : index
      %c0_42 = arith.constant 0 : index
      %169 = vector.load %arg10[%c0_40, %c0_41, %c0_42] : memref<1x128x256xf32, #tpu.memory_space<vmem>>, vector<1x128x256xf32>
      tpu.vector_store %arg10[%c0_40, %c0_41, %c0_42], %168 {strides = array<i32>} : memref<1x128x256xf32, #tpu.memory_space<vmem>>, vector<1x128x256xf32>,
    } else {
    }
    %c0 = arith.constant 0 : index
    %7 = arith.index_cast %3 : i32 to index
    %8 = vector.load %arg3[%c0, %7] : memref<8x896xf32, #tpu.memory_space<vmem>>, vector<8x896xf32>
    %9 = vector.extract_strided_slice %8 {offsets = [0, 0], sizes = [8, 768], strides = [1, 1]} : vector<8x896xf32> to vector<8x768xf32>
    %10 = vector.extract_strided_slice %8 {offsets = [0, 1], sizes = [8, 768], strides = [1, 1]} : vector<8x896xf32> to vector<8x768xf32>
    %11 = vector.extract_strided_slice %8 {offsets = [0, 2], sizes = [8, 768], strides = [1, 1]} : vector<8x896xf32> to vector<8x768xf32>
    %12 = vector.extract_strided_slice %8 {offsets = [0, 3], sizes = [8, 768], strides = [1, 1]} : vector<8x896xf32> to vector<8x768xf32>
    %13 = vector.extract_strided_slice %8 {offsets = [0, 4], sizes = [8, 768], strides = [1, 1]} : vector<8x896xf32> to vector<8x768xf32>
    %14 = vector.extract_strided_slice %8 {offsets = [0, 5], sizes = [8, 768], strides = [1, 1]} : vector<8x896xf32> to vector<8x768xf32>
    %15 = vector.extract_strided_slice %8 {offsets = [0, 6], sizes = [8, 768], strides = [1, 1]} : vector<8x896xf32> to vector<8x768xf32>
    %16 = vector.extract_strided_slice %8 {offsets = [0, 7], sizes = [8, 768], strides = [1, 1]} : vector<8x896xf32> to vector<8x768xf32>
    %17 = vector.extract_strided_slice %8 {offsets = [0, 8], sizes = [8, 768], strides = [1, 1]} : vector<8x896xf32> to vector<8x768xf32>
    %18 = vector.extract_strided_slice %8 {offsets = [0, 9], sizes = [8, 768], strides = [1, 1]} : vector<8x896xf32> to vector<8x768xf32>
    %19 = vector.extract_strided_slice %8 {offsets = [0, 10], sizes = [8, 768], strides = [1, 1]} : vector<8x896xf32> to vector<8x768xf32>
    %20 = vector.extract_strided_slice %8 {offsets = [0, 11], sizes = [8, 768], strides = [1, 1]} : vector<8x896xf32> to vector<8x768xf32>
    %21 = vector.extract_strided_slice %8 {offsets = [0, 12], sizes = [8, 768], strides = [1, 1]} : vector<8x896xf32> to vector<8x768xf32>
    %22 = vector.extract_strided_slice %8 {offsets = [0, 13], sizes = [8, 768], strides = [1, 1]} : vector<8x896xf32> to vector<8x768xf32>
    %23 = vector.extract_strided_slice %8 {offsets = [0, 14], sizes = [8, 768], strides = [1, 1]} : vector<8x896xf32> to vector<8x768xf32>
    %24 = vector.extract_strided_slice %8 {offsets = [0, 15], sizes = [8, 768], strides = [1, 1]} : vector<8x896xf32> to vector<8x768xf32>
    %25 = vector.extract_strided_slice %8 {offsets = [0, 16], sizes = [8, 768], strides = [1, 1]} : vector<8x896xf32> to vector<8x768xf32>
    %26 = vector.extract_strided_slice %8 {offsets = [0, 17], sizes = [8, 768], strides = [1, 1]} : vector<8x896xf32> to vector<8x768xf32>
    %27 = vector.extract_strided_slice %8 {offsets = [0, 18], sizes = [8, 768], strides = [1, 1]} : vector<8x896xf32> to vector<8x768xf32>
    %28 = vector.extract_strided_slice %8 {offsets = [0, 19], sizes = [8, 768], strides = [1, 1]} : vector<8x896xf32> to vector<8x768xf32>
    %29 = tpu.concatenate %9, %10, %11, %12, %13, %14, %15, %16, %17, %18, %19, %20, %21, %22, %23, %24 in 0 : vector<8x768xf32>, vector<8x768xf32>, vector<8x768xf32>, vector<8x768xf32>, vector<8x768xf32>, vector<8x768xf32>, vector<8x768xf32>, vector<8x768xf32>, vector<8x768xf32>, vector<8x768xf32>, vector<8x768xf32>, vector<8x768xf32>, vector<8x768xf32>, vector<8x768xf32>, vector<8x768xf32>, vector<8x768xf32> -> vector<128x768xf32>
    %30 = tpu.concatenate %25, %26, %27, %28 in 0 : vector<8x768xf32>, vector<8x768xf32>, vector<8x768xf32>, vector<8x768xf32> -> vector<32x768xf32>
    %31 = tpu.concatenate %29, %30 in 0 : vector<128x768xf32>, vector<32x768xf32> -> vector<160x768xf32>
    %c0_1 = arith.constant 0 : index
    %c0_2 = arith.constant 0 : index
    %c0_3 = arith.constant 0 : index
    %32 = vector.load %arg4[%c0_1, %c0_2, %c0_3] : memref<1x32x160xf32, #tpu.memory_space<vmem>>, vector<1x32x160xf32>
    %33 = vector.shape_cast %32 : vector<1x32x160xf32> to vector<32x160xf32>
    %cst = arith.constant dense<0.000000e+00> : vector<32x768xf32>
    %34 = tpu.matmul %33, %31, %cst {dimension_numbers = #tpu.dot_dimension_numbers<[1], [0], [0], [1], [0, 0, 1, 1], [], []>} : vector<32x160xf32>, vector<160x768xf32>, vector<32x768xf32> -> vector<32x768xf32>
    %c0_4 = arith.constant 0 : index
    %c0_5 = arith.constant 0 : index
    %c0_6 = arith.constant 0 : index
    %35 = vector.load %arg5[%c0_4, %c0_5, %c0_6] : memref<1x32x1xf32, #tpu.memory_space<vmem>>, vector<1x32x1xf32>
    %36 = vector.shape_cast %35 : vector<1x32x1xf32> to vector<32x1xf32>
    %37 = vector.broadcast %36 : vector<32x1xf32> to vector<32x768xf32>
    %38 = arith.addf %34, %37 : vector<32x768xf32>
    %39 = arith.truncf %38 : vector<32x768xf32> to vector<32x768xbf16>
    %40 = vector.extract_strided_slice %39 {offsets = [0, 0], sizes = [32, 640], strides = [1, 1]} : vector<32x768xbf16> to vector<32x640xbf16>
    %41 = vector.extract_strided_slice %39 {offsets = [0, 1], sizes = [32, 640], strides = [1, 1]} : vector<32x768xbf16> to vector<32x640xbf16>
    %42 = vector.extract_strided_slice %39 {offsets = [0, 2], sizes = [32, 640], strides = [1, 1]} : vector<32x768xbf16> to vector<32x640xbf16>
    %43 = vector.extract_strided_slice %39 {offsets = [0, 3], sizes = [32, 640], strides = [1, 1]} : vector<32x768xbf16> to vector<32x640xbf16>
    %44 = vector.extract_strided_slice %39 {offsets = [0, 4], sizes = [32, 640], strides = [1, 1]} : vector<32x768xbf16> to vector<32x640xbf16>
    %45 = vector.extract_strided_slice %39 {offsets = [0, 5], sizes = [32, 640], strides = [1, 1]} : vector<32x768xbf16> to vector<32x640xbf16>
    %46 = vector.extract_strided_slice %39 {offsets = [0, 6], sizes = [32, 640], strides = [1, 1]} : vector<32x768xbf16> to vector<32x640xbf16>
    %47 = vector.extract_strided_slice %39 {offsets = [0, 7], sizes = [32, 640], strides = [1, 1]} : vector<32x768xbf16> to vector<32x640xbf16>
    %48 = vector.extract_strided_slice %39 {offsets = [0, 8], sizes = [32, 640], strides = [1, 1]} : vector<32x768xbf16> to vector<32x640xbf16>
    %49 = vector.extract_strided_slice %39 {offsets = [0, 9], sizes = [32, 640], strides = [1, 1]} : vector<32x768xbf16> to vector<32x640xbf16>
    %50 = vector.extract_strided_slice %39 {offsets = [0, 10], sizes = [32, 640], strides = [1, 1]} : vector<32x768xbf16> to vector<32x640xbf16>
    %51 = vector.extract_strided_slice %39 {offsets = [0, 11], sizes = [32, 640], strides = [1, 1]} : vector<32x768xbf16> to vector<32x640xbf16>
    %52 = vector.extract_strided_slice %39 {offsets = [0, 12], sizes = [32, 640], strides = [1, 1]} : vector<32x768xbf16> to vector<32x640xbf16>
    %53 = vector.extract_strided_slice %39 {offsets = [0, 13], sizes = [32, 640], strides = [1, 1]} : vector<32x768xbf16> to vector<32x640xbf16>
    %54 = vector.extract_strided_slice %39 {offsets = [0, 14], sizes = [32, 640], strides = [1, 1]} : vector<32x768xbf16> to vector<32x640xbf16>
    %55 = vector.extract_strided_slice %39 {offsets = [0, 15], sizes = [32, 640], strides = [1, 1]} : vector<32x768xbf16> to vector<32x640xbf16>
    %56 = vector.extract_strided_slice %39 {offsets = [0, 16], sizes = [32, 640], strides = [1, 1]} : vector<32x768xbf16> to vector<32x640xbf16>
    %57 = vector.extract_strided_slice %39 {offsets = [0, 17], sizes = [32, 640], strides = [1, 1]} : vector<32x768xbf16> to vector<32x640xbf16>
    %58 = vector.extract_strided_slice %39 {offsets = [0, 18], sizes = [32, 640], strides = [1, 1]} : vector<32x768xbf16> to vector<32x640xbf16>
    %59 = vector.extract_strided_slice %39 {offsets = [0, 19], sizes = [32, 640], strides = [1, 1]} : vector<32x768xbf16> to vector<32x640xbf16>
    %60 = tpu.concatenate %40, %41, %42, %43, %44, %45, %46, %47, %48, %49, %50, %51, %52, %53, %54, %55 in 0 : vector<32x640xbf16>, vector<32x640xbf16>, vector<32x640xbf16>, vector<32x640xbf16>, vector<32x640xbf16>, vector<32x640xbf16>, vector<32x640xbf16>, vector<32x640xbf16>, vector<32x640xbf16>, vector<32x640xbf16>, vector<32x640xbf16>, vector<32x640xbf16>, vector<32x640xbf16>, vector<32x640xbf16>, vector<32x640xbf16>, vector<32x640xbf16> -> vector<512x640xbf16>
    %61 = tpu.concatenate %56, %57, %58, %59 in 0 : vector<32x640xbf16>, vector<32x640xbf16>, vector<32x640xbf16>, vector<32x640xbf16> -> vector<128x640xbf16>
    %62 = tpu.concatenate %60, %61 in 0 : vector<512x640xbf16>, vector<128x640xbf16> -> vector<640x640xbf16>
    %c0_7 = arith.constant 0 : index
    %c0_8 = arith.constant 0 : index
    %c0_9 = arith.constant 0 : index
    %63 = vector.load %arg6[%c0_7, %c0_8, %c0_9] : memref<1x64x640xbf16, #tpu.memory_space<vmem>>, vector<1x64x640xbf16>
    %64 = vector.shape_cast %63 : vector<1x64x640xbf16> to vector<64x640xbf16>
    %cst_10 = arith.constant dense<0.000000e+00> : vector<64x640xf32>
    %65 = tpu.matmul %64, %62, %cst_10 {dimension_numbers = #tpu.dot_dimension_numbers<[1], [0], [0], [1], [0, 0, 1, 1], [], []>} : vector<64x640xbf16>, vector<640x640xbf16>, vector<64x640xf32> -> vector<64x640xf32>
    %c0_11 = arith.constant 0 : index
    %c0_12 = arith.constant 0 : index
    %c0_13 = arith.constant 0 : index
    %66 = vector.load %arg7[%c0_11, %c0_12, %c0_13] : memref<1x64x1xf32, #tpu.memory_space<vmem>>, vector<1x64x1xf32>
    %67 = vector.shape_cast %66 : vector<1x64x1xf32> to vector<64x1xf32>
    %68 = vector.broadcast %67 : vector<64x1xf32> to vector<64x640xf32>
    %69 = arith.addf %65, %68 : vector<64x640xf32>
    %70 = arith.truncf %69 : vector<64x640xf32> to vector<64x640xbf16>
    %71 = vector.extract_strided_slice %70 {offsets = [0, 0], sizes = [64, 512], strides = [1, 1]} : vector<64x640xbf16> to vector<64x512xbf16>
    %72 = vector.extract_strided_slice %70 {offsets = [0, 1], sizes = [64, 512], strides = [1, 1]} : vector<64x640xbf16> to vector<64x512xbf16>
    %73 = vector.extract_strided_slice %70 {offsets = [0, 2], sizes = [64, 512], strides = [1, 1]} : vector<64x640xbf16> to vector<64x512xbf16>
    %74 = vector.extract_strided_slice %70 {offsets = [0, 3], sizes = [64, 512], strides = [1, 1]} : vector<64x640xbf16> to vector<64x512xbf16>
    %75 = vector.extract_strided_slice %70 {offsets = [0, 4], sizes = [64, 512], strides = [1, 1]} : vector<64x640xbf16> to vector<64x512xbf16>
    %76 = vector.extract_strided_slice %70 {offsets = [0, 5], sizes = [64, 512], strides = [1, 1]} : vector<64x640xbf16> to vector<64x512xbf16>
    %77 = vector.extract_strided_slice %70 {offsets = [0, 6], sizes = [64, 512], strides = [1, 1]} : vector<64x640xbf16> to vector<64x512xbf16>
    %78 = vector.extract_strided_slice %70 {offsets = [0, 7], sizes = [64, 512], strides = [1, 1]} : vector<64x640xbf16> to vector<64x512xbf16>
    %79 = vector.extract_strided_slice %70 {offsets = [0, 8], sizes = [64, 512], strides = [1, 1]} : vector<64x640xbf16> to vector<64x512xbf16>
    %80 = vector.extract_strided_slice %70 {offsets = [0, 9], sizes = [64, 512], strides = [1, 1]} : vector<64x640xbf16> to vector<64x512xbf16>
    %81 = vector.extract_strided_slice %70 {offsets = [0, 10], sizes = [64, 512], strides = [1, 1]} : vector<64x640xbf16> to vector<64x512xbf16>
    %82 = vector.extract_strided_slice %70 {offsets = [0, 11], sizes = [64, 512], strides = [1, 1]} : vector<64x640xbf16> to vector<64x512xbf16>
    %83 = vector.extract_strided_slice %70 {offsets = [0, 12], sizes = [64, 512], strides = [1, 1]} : vector<64x640xbf16> to vector<64x512xbf16>
    %84 = vector.extract_strided_slice %70 {offsets = [0, 13], sizes = [64, 512], strides = [1, 1]} : vector<64x640xbf16> to vector<64x512xbf16>
    %85 = vector.extract_strided_slice %70 {offsets = [0, 14], sizes = [64, 512], strides = [1, 1]} : vector<64x640xbf16> to vector<64x512xbf16>
    %86 = vector.extract_strided_slice %70 {offsets = [0, 15], sizes = [64, 512], strides = [1, 1]} : vector<64x640xbf16> to vector<64x512xbf16>
    %87 = vector.extract_strided_slice %70 {offsets = [0, 16], sizes = [64, 512], strides = [1, 1]} : vector<64x640xbf16> to vector<64x512xbf16>
    %88 = vector.extract_strided_slice %70 {offsets = [0, 17], sizes = [64, 512], strides = [1, 1]} : vector<64x640xbf16> to vector<64x512xbf16>
    %89 = vector.extract_strided_slice %70 {offsets = [0, 18], sizes = [64, 512], strides = [1, 1]} : vector<64x640xbf16> to vector<64x512xbf16>
    %90 = vector.extract_strided_slice %70 {offsets = [0, 19], sizes = [64, 512], strides = [1, 1]} : vector<64x640xbf16> to vector<64x512xbf16>
    %91 = tpu.concatenate %71, %72, %73, %74, %75, %76, %77, %78, %79, %80, %81, %82, %83, %84, %85, %86 in 0 : vector<64x512xbf16>, vector<64x512xbf16>, vector<64x512xbf16>, vector<64x512xbf16>, vector<64x512xbf16>, vector<64x512xbf16>, vector<64x512xbf16>, vector<64x512xbf16>, vector<64x512xbf16>, vector<64x512xbf16>, vector<64x512xbf16>, vector<64x512xbf16>, vector<64x512xbf16>, vector<64x512xbf16>, vector<64x512xbf16>, vector<64x512xbf16> -> vector<1024x512xbf16>
    %92 = tpu.concatenate %87, %88, %89, %90 in 0 : vector<64x512xbf16>, vector<64x512xbf16>, vector<64x512xbf16>, vector<64x512xbf16> -> vector<256x512xbf16>
    %93 = tpu.concatenate %91, %92 in 0 : vector<1024x512xbf16>, vector<256x512xbf16> -> vector<1280x512xbf16>
    %c0_14 = arith.constant 0 : index
    %c0_15 = arith.constant 0 : index
    %c0_16 = arith.constant 0 : index
    %94 = vector.load %arg8[%c0_14, %c0_15, %c0_16] : memref<1x128x1280xbf16, #tpu.memory_space<vmem>>, vector<1x128x1280xbf16>
    %95 = vector.shape_cast %94 : vector<1x128x1280xbf16> to vector<128x1280xbf16>
    %cst_17 = arith.constant dense<0.000000e+00> : vector<128x512xf32>
    %96 = tpu.matmul %95, %93, %cst_17 {dimension_numbers = #tpu.dot_dimension_numbers<[1], [0], [0], [1], [0, 0, 1, 1], [], []>} : vector<128x1280xbf16>, vector<1280x512xbf16>, vector<128x512xf32> -> vector<128x512xf32>
    %c0_18 = arith.constant 0 : index
    %c0_19 = arith.constant 0 : index
    %c0_20 = arith.constant 0 : index
    %97 = vector.load %arg9[%c0_18, %c0_19, %c0_20] : memref<1x128x1xf32, #tpu.memory_space<vmem>>, vector<1x128x1xf32>
    %98 = vector.shape_cast %97 : vector<1x128x1xf32> to vector<128x1xf32>
    %99 = vector.broadcast %98 : vector<128x1xf32> to vector<128x512xf32>
    %100 = arith.addf %96, %99 : vector<128x512xf32>
    %101 = tpu.iota {dimensions = array<i32: 1>} : vector<1x128xi32>
    %cst_21 = arith.constant 0.000000e+00 : f32
    %102 = vector.broadcast %cst_21 : f32 to vector<128x128xf32>
    %cst_22 = arith.constant 0.000000e+00 : f32
    %103 = vector.broadcast %cst_22 : f32 to vector<128x128xf32>
    %c0_i32_23 = arith.constant 0 : i32
    %104 = arith.addi %3, %c0_i32_23 : i32
    %105 = vector.broadcast %104 : i32 to vector<1x128xi32>
    %106 = arith.addi %101, %105 : vector<1x128xi32>
    %107 = vector.broadcast %1 : i32 to vector<1x128xi32>
    %108 = arith.cmpi slt, %106, %107 : vector<1x128xi32>
    %109 = vector.extract_strided_slice %100 {offsets = [0, 0], sizes = [128, 128], strides = [1, 1]} : vector<128x512xf32> to vector<128x128xf32>
    %cst_24 = arith.constant 0.000000e+00 : f32
    %110 = vector.shape_cast %108 : vector<1x128xi1> to vector<1x128xi1>
    %111 = vector.broadcast %110 : vector<1x128xi1> to vector<128x128xi1>
    %112 = vector.broadcast %cst_24 : f32 to vector<128x128xf32>
    %113 = arith.select %111, %109, %112 : vector<128x128xi1>, vector<128x128xf32>
    %114 = arith.addf %102, %113 : vector<128x128xf32>
    %115 = arith.mulf %113, %113 : vector<128x128xf32>
    %116 = arith.addf %103, %115 : vector<128x128xf32>
    %c128_i32 = arith.constant 128 : i32
    %117 = arith.addi %3, %c128_i32 : i32
    %118 = vector.broadcast %117 : i32 to vector<1x128xi32>
    %119 = arith.addi %101, %118 : vector<1x128xi32>
    %120 = vector.broadcast %1 : i32 to vector<1x128xi32>
    %121 = arith.cmpi slt, %119, %120 : vector<1x128xi32>
    %122 = vector.extract_strided_slice %100 {offsets = [0, 128], sizes = [128, 128], strides = [1, 1]} : vector<128x512xf32> to vector<128x128xf32>
    %cst_25 = arith.constant 0.000000e+00 : f32
    %123 = vector.shape_cast %121 : vector<1x128xi1> to vector<1x128xi1>
    %124 = vector.broadcast %123 : vector<1x128xi1> to vector<128x128xi1>
    %125 = vector.broadcast %cst_25 : f32 to vector<128x128xf32>
    %126 = arith.select %124, %122, %125 : vector<128x128xi1>, vector<128x128xf32>
    %127 = arith.addf %114, %126 : vector<128x128xf32>
    %128 = arith.mulf %126, %126 : vector<128x128xf32>
    %129 = arith.addf %116, %128 : vector<128x128xf32>
    %c256_i32 = arith.constant 256 : i32
    %130 = arith.addi %3, %c256_i32 : i32
    %131 = vector.broadcast %130 : i32 to vector<1x128xi32>
    %132 = arith.addi %101, %131 : vector<1x128xi32>
    %133 = vector.broadcast %1 : i32 to vector<1x128xi32>
    %134 = arith.cmpi slt, %132, %133 : vector<1x128xi32>
    %135 = vector.extract_strided_slice %100 {offsets = [0, 256], sizes = [128, 128], strides = [1, 1]} : vector<128x512xf32> to vector<128x128xf32>
    %cst_26 = arith.constant 0.000000e+00 : f32
    %136 = vector.shape_cast %134 : vector<1x128xi1> to vector<1x128xi1>
    %137 = vector.broadcast %136 : vector<1x128xi1> to vector<128x128xi1>
    %138 = vector.broadcast %cst_26 : f32 to vector<128x128xf32>
    %139 = arith.select %137, %135, %138 : vector<128x128xi1>, vector<128x128xf32>
    %140 = arith.addf %127, %139 : vector<128x128xf32>
    %141 = arith.mulf %139, %139 : vector<128x128xf32>
    %142 = arith.addf %129, %141 : vector<128x128xf32>
    %c384_i32 = arith.constant 384 : i32
    %143 = arith.addi %3, %c384_i32 : i32
    %144 = vector.broadcast %143 : i32 to vector<1x128xi32>
    %145 = arith.addi %101, %144 : vector<1x128xi32>
    %146 = vector.broadcast %1 : i32 to vector<1x128xi32>
    %147 = arith.cmpi slt, %145, %146 : vector<1x128xi32>
    %148 = vector.extract_strided_slice %100 {offsets = [0, 384], sizes = [128, 128], strides = [1, 1]} : vector<128x512xf32> to vector<128x128xf32>
    %cst_27 = arith.constant 0.000000e+00 : f32
    %149 = vector.shape_cast %147 : vector<1x128xi1> to vector<1x128xi1>
    %150 = vector.broadcast %149 : vector<1x128xi1> to vector<128x128xi1>
    %151 = vector.broadcast %cst_27 : f32 to vector<128x128xf32>
    %152 = arith.select %150, %148, %151 : vector<128x128xi1>, vector<128x128xf32>
    %153 = arith.addf %140, %152 : vector<128x128xf32>
    %154 = arith.mulf %152, %152 : vector<128x128xf32>
    %155 = arith.addf %142, %154 : vector<128x128xf32>
    %c0_28 = arith.constant 0 : index
    %c0_29 = arith.constant 0 : index
    %c0_30 = arith.constant 0 : index
    %156 = vector.load %arg10[%c0_28, %c0_29, %c0_30] : memref<1x128x256xf32, #tpu.memory_space<vmem>>, vector<1x128x128xf32>
    %157 = vector.shape_cast %156 : vector<1x128x128xf32> to vector<128x128xf32>
    %158 = arith.addf %157, %153 : vector<128x128xf32>
    %c0_31 = arith.constant 0 : index
    %c0_32 = arith.constant 0 : index
    %c0_33 = arith.constant 0 : index
    %159 = vector.load %arg10[%c0_31, %c0_32, %c0_33] : memref<1x128x256xf32, #tpu.memory_space<vmem>>, vector<1x128x128xf32>
    %160 = vector.shape_cast %159 : vector<1x128x128xf32> to vector<128x128xf32>
    %161 = vector.shape_cast %158 : vector<128x128xf32> to vector<1x128x128xf32>
    tpu.vector_store %arg10[%c0_31, %c0_32, %c0_33], %161 {strides = array<i32>} : memref<1x128x256xf32, #tpu.memory_space<vmem>>, vector<1x128x128xf32>,
    %c0_34 = arith.constant 0 : index
    %c0_35 = arith.constant 0 : index
    %c128 = arith.constant 128 : index
    %162 = vector.load %arg10[%c0_34, %c0_35, %c128] : memref<1x128x256xf32, #tpu.memory_space<vmem>>, vector<1x128x128xf32>
    %163 = vector.shape_cast %162 : vector<1x128x128xf32> to vector<128x128xf32>
    %164 = arith.addf %163, %155 : vector<128x128xf32>
    %c0_36 = arith.constant 0 : index
    %c0_37 = arith.constant 0 : index
    %c128_38 = arith.constant 128 : index
    %165 = vector.load %arg10[%c0_36, %c0_37, %c128_38] : memref<1x128x256xf32, #tpu.memory_space<vmem>>, vector<1x128x128xf32>
    %166 = vector.shape_cast %165 : vector<1x128x128xf32> to vector<128x128xf32>
    %167 = vector.shape_cast %164 : vector<128x128xf32> to vector<1x128x128xf32>
    tpu.vector_store %arg10[%c0_36, %c0_37, %c128_38], %167 {strides = array<i32>} : memref<1x128x256xf32, #tpu.memory_space<vmem>>, vector<1x128x128xf32>,
    return
  }
  func.func @transform_0(%arg0: i32, %arg1: i32, %arg2: memref<4xi32, #tpu.memory_space<smem>>) -> (i32, i32) {
    %c0_i32 = arith.constant 0 : i32
    %c0_i32_0 = arith.constant 0 : i32
    %c0_i32_1 = arith.constant 0 : i32
    return %c0_i32, %c0_i32_0 : i32, i32
  }
  func.func @transform_1(%arg0: i32, %arg1: i32, %arg2: memref<4xi32, #tpu.memory_space<smem>>) -> (i32, i32, i32) {
    %c0_i32 = arith.constant 0 : i32
    %c0_i32_0 = arith.constant 0 : i32
    %c0_i32_1 = arith.constant 0 : i32
    return %arg0, %c0_i32, %c0_i32_0 : i32, i32, i32
  }
  func.func @transform_2(%arg0: i32, %arg1: i32, %arg2: memref<4xi32, #tpu.memory_space<smem>>) -> (i32, i32, i32) {
    %c0_i32 = arith.constant 0 : i32
    %c0_i32_0 = arith.constant 0 : i32
    %c0_i32_1 = arith.constant 0 : i32
    return %arg0, %c0_i32, %c0_i32_0 : i32, i32, i32
  }
  func.func @transform_3(%arg0: i32, %arg1: i32, %arg2: memref<4xi32, #tpu.memory_space<smem>>) -> (i32, i32, i32) {
    %c0_i32 = arith.constant 0 : i32
    %c0_i32_0 = arith.constant 0 : i32
    %c0_i32_1 = arith.constant 0 : i32
    return %arg0, %c0_i32, %c0_i32_0 : i32, i32, i32
  }
  func.func @transform_4(%arg0: i32, %arg1: i32, %arg2: memref<4xi32, #tpu.memory_space<smem>>) -> (i32, i32, i32) {
    %c0_i32 = arith.constant 0 : i32
    %c0_i32_0 = arith.constant 0 : i32
    %c0_i32_1 = arith.constant 0 : i32
    return %arg0, %c0_i32, %c0_i32_0 : i32, i32, i32
  }
  func.func @transform_5(%arg0: i32, %arg1: i32, %arg2: memref<4xi32, #tpu.memory_space<smem>>) -> (i32, i32, i32) {
    %c0_i32 = arith.constant 0 : i32
    %c0_i32_0 = arith.constant 0 : i32
    %c0_i32_1 = arith.constant 0 : i32
    return %arg0, %c0_i32, %c0_i32_0 : i32, i32, i32
  }
  func.func @transform_6(%arg0: i32, %arg1: i32, %arg2: memref<4xi32, #tpu.memory_space<smem>>) -> (i32, i32, i32) {
    %c0_i32 = arith.constant 0 : i32
    %c0_i32_0 = arith.constant 0 : i32
    %c0_i32_1 = arith.constant 0 : i32
    return %arg0, %c0_i32, %c0_i32_0 : i32, i32, i32
  }
  func.func @transform_7(%arg0: i32, %arg1: i32, %arg2: memref<4xi32, #tpu.memory_space<smem>>) -> (i32, i32, i32) {
    %c0_i32 = arith.constant 0 : i32
    %c0_i32_0 = arith.constant 0 : i32
    %c0_i32_1 = arith.constant 0 : i32
    return %arg0, %c0_i32, %c0_i32_0 : i32, i32, i32
  }
}

</mosaic_0001>

<llo_original>
// kernel: custom-call
$region0: #{custom-call}
  %s0 = inlined_call_operand.vmem [shape: f32[1024], index: 0, kind: output, shape index: {}]

// kernel: forward.1
$region0: #{forward.1}
  #allocation0 [shape = 'u32[]', space=smem, size = 0x4, offset = 0x4, fixed_abs, tag = 'smem constant byte address 0x4 - core index']
  #allocation1 [shape = 'u32[144,128]{1,0:T(1,128)}', space=vmem, size = 0x12000, scoped, tag = 'internal scratch']
  #allocation2 [shape = 's32[1]{0}', space=sflag, size = 0x4, scoped, tag = 'scoped memory for forward.1']
  #allocation3 [shape = 'u8[512]{0}', space=smem, size = 0x200, scoped, tag = 'prefetched SMEM operand 0']
  %s0 = inlined_call_operand.hbm [shape: s32[4], index: 0, kind: input, shape index: {}]
  %s1 = inlined_call_operand.vmem [shape: f32[8,896], index: 1, kind: input, shape index: {}]
  %s2 = inlined_call_operand.hbm [shape: f32[4,32,160], index: 2, kind: input, shape index: {}]
  %s3 = inlined_call_operand.vmem [shape: f32[4,32,1], index: 3, kind: input, shape index: {}]
  %s4 = inlined_call_operand.hbm [shape: bf16[4,64,640], index: 4, kind: input, shape index: {}]
  %s5 = inlined_call_operand.vmem [shape: f32[4,64,1], index: 5, kind: input, shape index: {}]
  %s6 = inlined_call_operand.hbm [shape: bf16[4,128,1280], index: 6, kind: input, shape index: {}]
  %s7 = inlined_call_operand.vmem [shape: f32[4,128,1], index: 7, kind: input, shape index: {}]
  %s8 = inlined_call_operand.vmem [shape: f32[4,128,256], index: 8, kind: output, shape index: {}]
  %s9 = sld [smem:[#allocation0]]
  $region77: #{forward.1} parent=0
    _
  %s11 = ssub.s32 1, %s9
  %s12 = scalar_select 0, %s11, %s9
  %14 = dma.hbm_to_smem %s0, 16, [#allocation3], [#allocation2]
  %15 = dma.done [#allocation2], 16
  %16 = sfence
  $region1: #{forward.1} parent=0
    #allocation4 [shape = 'u8[65536]{0}', space=vmem, size = 0x10000, scoped, tag = 'input window, operand 2']
    #allocation5 [shape = 's32[2]{0}', space=sflag, size = 0x8, scoped, tag = 'scoped memory for forward.1']
    #allocation6 [shape = 'u8[163840]{0}', space=vmem, size = 0x28000, scoped, tag = 'input window, operand 4']
    #allocation7 [shape = 's32[2]{0}', space=sflag, size = 0x8, scoped, tag = 'scoped memory for forward.1']
    #allocation8 [shape = 'u8[655360]{0}', space=vmem, size = 0xa0000, scoped, tag = 'input window, operand 6']
    %17 = vsyncpa [#allocation5], 0
    %s18 = scalar_lea.sflag [#allocation5], 1
    %19 = vsyncpa %s18, 0
    %20 = vsyncpa [#allocation7], 0
    %s21 = scalar_lea.sflag [#allocation7], 1
    %22 = vsyncpa %s21, 0
    loop: start=0, step=1, limit=6
    $region2: #{forward.1} parent=1 // loop_pre_header
      _
    $region3: #{forward.1} parent=1 // loop_header
      %s24 = sphi 0, %s28
      %p25 = scmp.ge.s32.totalorder %s24, 6
      %s31 = sphi 0, %s43
      %s32 = sphi 0, %s39
      %s33 = sphi 0, %s31
      %s34 = sphi 0, %s32
      %s35 = sphi 0, %s33
      %s36 = sphi 0, %s34
      %s44 = sphi 0, %s44
      %s46 = sphi 0, %s44
      %s47 = sphi 0, %s46
      %s61 = sphi 0, %s47
      %s67 = sphi 0, %s69
      %s70 = sphi 0, %s67
      %s71 = sphi 0, %s70
      %s87 = sphi 0, %s71
      %s93 = sphi 0, %s95
      %s96 = sphi 0, %s93
      %s97 = sphi 0, %s96
      %s113 = sphi 0, %s97
      %s119 = sphi 0, %s121
      %s122 = sphi 0, %s119
      %s123 = sphi 0, %s122
      %s139 = sphi 0, %s123
      %s145 = sphi 0, %s147
      %s148 = sphi 0, %s145
      %s149 = sphi 0, %s148
      %s165 = sphi 0, %s149
      %s171 = sphi 0, %s173
      %s174 = sphi 0, %s171
      %s175 = sphi 0, %s174
      %s191 = sphi 0, %s175
      %s197 = sphi 0, %s199
      %s200 = sphi 0, %s197
      %s201 = sphi 0, %s200
      %s217 = sphi 0, %s201
      %s223 = sphi 0, %s225
      %s226 = sphi 0, %s223
      %s227 = sphi 0, %s226
      %s243 = sphi 0, %s227
    $region4: #{forward.1} parent=1 // loop_header_branch
      %27 = sbr.rel (%p25) target = $region8
    $region5: #{forward.1} parent=1 // loop_body
      %s29 = ssub.s32 %s24, 1
      %s30 = ssub.s32 %s24, 2
      %s37 = sadd.s32 1, %s32
      %p38 = scmp.ge.s32.totalorder %s37, 1
      %s39 = scalar_select %p38, 0, %s37
      %s40 = sadd.s32 1, %s31
      %s41 = scalar_select %p38, %s40, %s31
      %p42 = scmp.ge.s32.totalorder %s41, 4
      %s43 = scalar_select %p42, 0, %s41
      %s45 = sadd.s32 %s44, 1
      %p48 = scmp.eq.s32.totalorder %s24, 3
      %p49 = scmp.ne.s32.totalorder %s44, %s46
      %p50 = scmp.eq.s32.totalorder %s24, 0
      %p51 = por %p49, %p50
      %p52 = scmp.ne.s32.totalorder %s44, %s46
      %p53 = scmp.eq.s32.totalorder %s29, 3
      %p54 = por %p52, %p53
      %p55 = scmp.ne.s32.totalorder %s46, %s47
      %p56 = scmp.eq.s32.totalorder %s29, 0
      %p57 = por %p55, %p56
      %p58 = scmp.ne.s32.totalorder %s46, %s47
      %p59 = scmp.eq.s32.totalorder %s30, 3
      %p60 = por %p58, %p59
      %p62 = scmp.ne.s32.totalorder %s47, %s61
      %p63 = scmp.eq.s32.totalorder %s30, 0
      %p64 = por %p62, %p63
      %s65 = ssub.s32 %s31, %s43
      %p66 = scmp.eq.s32.totalorder %s65, 0
      %s68 = sadd.s32 %s67, 1
      %s69 = scalar_select %p66, %s67, %s68
      %p72 = pneg %p66
      %p73 = scmp.eq.s32.totalorder %s24, 3
      %p74 = por %p72, %p73
      %p75 = scmp.ne.s32.totalorder %s67, %s70
      %p76 = scmp.eq.s32.totalorder %s24, 0
      %p77 = por %p75, %p76
      %p78 = scmp.ne.s32.totalorder %s67, %s70
      %p79 = scmp.eq.s32.totalorder %s29, 3
      %p80 = por %p78, %p79
      %p81 = scmp.ne.s32.totalorder %s70, %s71
      %p82 = scmp.eq.s32.totalorder %s29, 0
      %p83 = por %p81, %p82
      %p84 = scmp.ne.s32.totalorder %s70, %s71
      %p85 = scmp.eq.s32.totalorder %s30, 3
      %p86 = por %p84, %p85
      %p88 = scmp.ne.s32.totalorder %s71, %s87
      %p89 = scmp.eq.s32.totalorder %s30, 0
      %p90 = por %p88, %p89
      %s91 = ssub.s32 %s31, %s43
      %p92 = scmp.eq.s32.totalorder %s91, 0
      %s94 = sadd.s32 %s93, 1
      %s95 = scalar_select %p92, %s93, %s94
      %p98 = pneg %p92
      %p99 = scmp.eq.s32.totalorder %s24, 3
      %p100 = por %p98, %p99
      %p101 = scmp.ne.s32.totalorder %s93, %s96
      %p102 = scmp.eq.s32.totalorder %s24, 0
      %p103 = por %p101, %p102
      %p104 = scmp.ne.s32.totalorder %s93, %s96
      %p105 = scmp.eq.s32.totalorder %s29, 3
      %p106 = por %p104, %p105
      %p107 = scmp.ne.s32.totalorder %s96, %s97
      %p108 = scmp.eq.s32.totalorder %s29, 0
      %p109 = por %p107, %p108
      %p110 = scmp.ne.s32.totalorder %s96, %s97
      %p111 = scmp.eq.s32.totalorder %s30, 3
      %p112 = por %p110, %p111
      %p114 = scmp.ne.s32.totalorder %s97, %s113
      %p115 = scmp.eq.s32.totalorder %s30, 0
      %p116 = por %p114, %p115
      %s117 = ssub.s32 %s31, %s43
      %p118 = scmp.eq.s32.totalorder %s117, 0
      %s120 = sadd.s32 %s119, 1
      %s121 = scalar_select %p118, %s119, %s120
      %p124 = pneg %p118
      %p125 = scmp.eq.s32.totalorder %s24, 3
      %p126 = por %p124, %p125
      %p127 = scmp.ne.s32.totalorder %s119, %s122
      %p128 = scmp.eq.s32.totalorder %s24, 0
      %p129 = por %p127, %p128
      %p130 = scmp.ne.s32.totalorder %s119, %s122
      %p131 = scmp.eq.s32.totalorder %s29, 3
      %p132 = por %p130, %p131
      %p133 = scmp.ne.s32.totalorder %s122, %s123
      %p134 = scmp.eq.s32.totalorder %s29, 0
      %p135 = por %p133, %p134
      %p136 = scmp.ne.s32.totalorder %s122, %s123
      %p137 = scmp.eq.s32.totalorder %s30, 3
      %p138 = por %p136, %p137
      %p140 = scmp.ne.s32.totalorder %s123, %s139
      %p141 = scmp.eq.s32.totalorder %s30, 0
      %p142 = por %p140, %p141
      %s143 = ssub.s32 %s31, %s43
      %p144 = scmp.eq.s32.totalorder %s143, 0
      %s146 = sadd.s32 %s145, 1
      %s147 = scalar_select %p144, %s145, %s146
      %p150 = pneg %p144
      %p151 = scmp.eq.s32.totalorder %s24, 3
      %p152 = por %p150, %p151
      %p153 = scmp.ne.s32.totalorder %s145, %s148
      %p154 = scmp.eq.s32.totalorder %s24, 0
      %p155 = por %p153, %p154
      %p156 = scmp.ne.s32.totalorder %s145, %s148
      %p157 = scmp.eq.s32.totalorder %s29, 3
      %p158 = por %p156, %p157
      %p159 = scmp.ne.s32.totalorder %s148, %s149
      %p160 = scmp.eq.s32.totalorder %s29, 0
      %p161 = por %p159, %p160
      %p162 = scmp.ne.s32.totalorder %s148, %s149
      %p163 = scmp.eq.s32.totalorder %s30, 3
      %p164 = por %p162, %p163
      %p166 = scmp.ne.s32.totalorder %s149, %s165
      %p167 = scmp.eq.s32.totalorder %s30, 0
      %p168 = por %p166, %p167
      %s169 = ssub.s32 %s31, %s43
      %p170 = scmp.eq.s32.totalorder %s169, 0
      %s172 = sadd.s32 %s171, 1
      %s173 = scalar_select %p170, %s171, %s172
      %p176 = pneg %p170
      %p177 = scmp.eq.s32.totalorder %s24, 3
      %p178 = por %p176, %p177
      %p179 = scmp.ne.s32.totalorder %s171, %s174
      %p180 = scmp.eq.s32.totalorder %s24, 0
      %p181 = por %p179, %p180
      %p182 = scmp.ne.s32.totalorder %s171, %s174
      %p183 = scmp.eq.s32.totalorder %s29, 3
      %p184 = por %p182, %p183
      %p185 = scmp.ne.s32.totalorder %s174, %s175
      %p186 = scmp.eq.s32.totalorder %s29, 0
      %p187 = por %p185, %p186
      %p188 = scmp.ne.s32.totalorder %s174, %s175
      %p189 = scmp.eq.s32.totalorder %s30, 3
      %p190 = por %p188, %p189
      %p192 = scmp.ne.s32.totalorder %s175, %s191
      %p193 = scmp.eq.s32.totalorder %s30, 0
      %p194 = por %p192, %p193
      %s195 = ssub.s32 %s31, %s43
      %p196 = scmp.eq.s32.totalorder %s195, 0
      %s198 = sadd.s32 %s197, 1
      %s199 = scalar_select %p196, %s197, %s198
      %p202 = pneg %p196
      %p203 = scmp.eq.s32.totalorder %s24, 3
      %p204 = por %p202, %p203
      %p205 = scmp.ne.s32.totalorder %s197, %s200
      %p206 = scmp.eq.s32.totalorder %s24, 0
      %p207 = por %p205, %p206
      %p208 = scmp.ne.s32.totalorder %s197, %s200
      %p209 = scmp.eq.s32.totalorder %s29, 3
      %p210 = por %p208, %p209
      %p211 = scmp.ne.s32.totalorder %s200, %s201
      %p212 = scmp.eq.s32.totalorder %s29, 0
      %p213 = por %p211, %p212
      %p214 = scmp.ne.s32.totalorder %s200, %s201
      %p215 = scmp.eq.s32.totalorder %s30, 3
      %p216 = por %p214, %p215
      %p218 = scmp.ne.s32.totalorder %s201, %s217
      %p219 = scmp.eq.s32.totalorder %s30, 0
      %p220 = por %p218, %p219
      %s221 = ssub.s32 %s31, %s43
      %p222 = scmp.eq.s32.totalorder %s221, 0
      %s224 = sadd.s32 %s223, 1
      %s225 = scalar_select %p222, %s223, %s224
      %p228 = pneg %p222
      %p229 = scmp.eq.s32.totalorder %s24, 3
      %p230 = por %p228, %p229
      %p231 = scmp.ne.s32.totalorder %s223, %s226
      %p232 = scmp.eq.s32.totalorder %s24, 0
      %p233 = por %p231, %p232
      %p234 = scmp.ne.s32.totalorder %s223, %s226
      %p235 = scmp.eq.s32.totalorder %s29, 3
      %p236 = por %p234, %p235
      %p237 = scmp.ne.s32.totalorder %s226, %s227
      %p238 = scmp.eq.s32.totalorder %s29, 0
      %p239 = por %p237, %p238
      %p240 = scmp.ne.s32.totalorder %s226, %s227
      %p241 = scmp.eq.s32.totalorder %s30, 3
      %p242 = por %p240, %p241
      %p244 = scmp.ne.s32.totalorder %s227, %s243
      %p245 = scmp.eq.s32.totalorder %s30, 0
      %p246 = por %p244, %p245
      %p247 = scmp.le.s32.totalorder 1, %s24
      %p248 = scmp.lt.s32.totalorder %s24, 5
      %p249 = pnand %p247, %p248
      %p250 = pneg %p249
      // Predicated region
      $region9: #{forward.1} parent=5 // pred_check
        _
      $region10: #{forward.1} parent=5 // pred_check_branch
        %252 = sbr.rel (%p249) target = $region12
      $region11: #{forward.1} parent=5 // pred_region
        %s253 = ssub.s32 %s24, 1
        // Predicated region
        $region13: #{forward.1} parent=11 // pred_check
          %p254 = pneg %p57
        $region14: #{forward.1} parent=11 // pred_check_branch
          %256 = sbr.rel (%p254) target = $region16
        $region15: #{forward.1} parent=11 // pred_region
          _
        $region16: #{forward.1} parent=11 // pred_fallthru
          _
      $region12: #{forward.1} parent=5 // pred_fallthru
        _
      %p257 = scmp.lt.s32.totalorder %s24, 4
      // Predicated region
      $region17: #{forward.1} parent=5 // pred_check
        %p258 = pneg %p257
      $region18: #{forward.1} parent=5 // pred_check_branch
        %260 = sbr.rel (%p258) target = $region20
      $region19: #{forward.1} parent=5 // pred_region
        // Predicated region
        $region21: #{forward.1} parent=19 // pred_check
          %p261 = pneg %p77
        $region22: #{forward.1} parent=19 // pred_check_branch
          %263 = sbr.rel (%p261) target = $region24
        $region23: #{forward.1} parent=19 // pred_region
          %s264 = sand.u32 %s67, 1
          %s265 = scalar_lea.sflag [#allocation5], %s264
          %s266 = sand.u32 %s67, 1
          %s267 = smul.addr %s266, 64
          %s268 = scalar_lea.vmem [#allocation4], %s267
          %s270 = ssub.s32 1024, 1024
          %271 = vsyncadd %s265, %s270
          %s272 = smul.addr %s31, 8
          %s273 = smul.addr %s272, 128
          %s274 = scalar_lea.hbm %s2, %s273
          %s275 = sshll.u32 %s268, 4
          %s276 = int_to_ptr.vmem [resolvable:$true] %s275
          %281 = dma.hbm_to_vmem [thread:$0]  %s274, 1024, %s276, %s265, 256, 256, 16
        $region24: #{forward.1} parent=19 // pred_fallthru
          _
        // Predicated region
        $region25: #{forward.1} parent=19 // pred_check
          %p282 = pneg %p103
        $region26: #{forward.1} parent=19 // pred_check_branch
          %284 = sbr.rel (%p282) target = $region28
        $region27: #{forward.1} parent=19 // pred_region
          %p285 = scmp.lt.s32.totalorder %s31, 3
          %s286 = scalar_select %p285, %s31, 3
          %s287 = smul.addr %s286, 4
          %s288 = smul.addr %s287, 8
          %s289 = scalar_lea.vmem %s3, %s288
        $region28: #{forward.1} parent=19 // pred_fallthru
          _
        // Predicated region
        $region29: #{forward.1} parent=19 // pred_check
          %p290 = pneg %p129
        $region30: #{forward.1} parent=19 // pred_check_branch
          %292 = sbr.rel (%p290) target = $region32
        $region31: #{forward.1} parent=19 // pred_region
          %s293 = sand.u32 %s24, 1
          %s294 = scalar_lea.sflag [#allocation7], %s293
          %s295 = sand.u32 %s119, 1
          %s296 = smul.addr %s295, 160
          %s297 = scalar_lea.vmem [#allocation6], %s296
          %s299 = ssub.s32 2560, 2560
          %300 = vsyncadd %s294, %s299
          %s301 = smul.addr %s31, 40
          %s302 = smul.addr %s301, 64
          %s303 = scalar_lea.hbm %s4, %s302
          %s304 = sshll.u32 %s297, 4
          %s305 = int_to_ptr.vmem [resolvable:$true] %s304
          %310 = dma.hbm_to_vmem [thread:$0]  %s303, 2560, %s305, %s294, 320, 320, 20
        $region32: #{forward.1} parent=19 // pred_fallthru
          _
        // Predicated region
        $region33: #{forward.1} parent=19 // pred_check
          %p311 = pneg %p155
        $region34: #{forward.1} parent=19 // pred_check_branch
          %313 = sbr.rel (%p311) target = $region36
        $region35: #{forward.1} parent=19 // pred_region
          %p314 = scmp.lt.s32.totalorder %s31, 3
          %s315 = scalar_select %p314, %s31, 3
          %s316 = smul.addr %s315, 8
          %s317 = smul.addr %s316, 8
          %s318 = scalar_lea.vmem %s5, %s317
        $region36: #{forward.1} parent=19 // pred_fallthru
          _
        // Predicated region
        $region37: #{forward.1} parent=19 // pred_check
          %p319 = pneg %p181
        $region38: #{forward.1} parent=19 // pred_check_branch
          %321 = sbr.rel (%p319) target = $region40
        $region39: #{forward.1} parent=19 // pred_region
          %s322 = sand.u32 %s24, 1
          %s323 = scalar_lea.sflag [#allocation7], %s322
          %s324 = sand.u32 %s171, 1
          %s325 = smul.addr %s324, 640
          %s326 = scalar_lea.vmem [#allocation8], %s325
          %s328 = ssub.s32 10240, 10240
          %329 = vsyncadd %s323, %s328
          %s330 = smul.addr %s31, 160
          %s331 = smul.addr %s330, 64
          %s332 = scalar_lea.hbm %s6, %s331
          %s333 = sshll.u32 %s326, 4
          %s334 = int_to_ptr.vmem [resolvable:$true] %s333
          %339 = dma.hbm_to_vmem [thread:$0]  %s332, 10240, %s334, %s323, 640, 640, 40
        $region40: #{forward.1} parent=19 // pred_fallthru
          _
        // Predicated region
        $region41: #{forward.1} parent=19 // pred_check
          %p340 = pneg %p207
        $region42: #{forward.1} parent=19 // pred_check_branch
          %342 = sbr.rel (%p340) target = $region44
        $region43: #{forward.1} parent=19 // pred_region
          %p343 = scmp.lt.s32.totalorder %s31, 3
          %s344 = scalar_select %p343, %s31, 3
          %s345 = smul.addr %s344, 16
          %s346 = smul.addr %s345, 8
          %s347 = scalar_lea.vmem %s7, %s346
        $region44: #{forward.1} parent=19 // pred_fallthru
          _
      $region20: #{forward.1} parent=5 // pred_fallthru
        _
      %p348 = scmp.le.s32.totalorder 1, %s24
      %p349 = scmp.lt.s32.totalorder %s24, 5
      %p350 = pnand %p348, %p349
      %p351 = pneg %p350
      // Predicated region
      $region45: #{forward.1} parent=5 // pred_check
        _
      $region46: #{forward.1} parent=5 // pred_check_branch
        %353 = sbr.rel (%p350) target = $region48
      $region47: #{forward.1} parent=5 // pred_region
        %s354 = ssub.s32 %s24, 1
        %s355 = sand.u32 %s70, 1
        %s356 = scalar_lea.sflag [#allocation5], %s355
        %s357 = sand.u32 %s70, 1
        %s358 = smul.addr %s357, 64
        %s359 = scalar_lea.vmem [#allocation4], %s358
        // Predicated region
        $region49: #{forward.1} parent=47 // pred_check
          %p360 = pneg %p83
        $region50: #{forward.1} parent=47 // pred_check_branch
          %362 = sbr.rel (%p360) target = $region52
        $region51: #{forward.1} parent=47 // pred_region
          %363 = dma.done %s356, 1024
        $region52: #{forward.1} parent=47 // pred_fallthru
          _
        %s364 = sand.u32 %s29, 1
        %s365 = scalar_lea.sflag [#allocation7], %s364
        %s366 = sand.u32 %s122, 1
        %s367 = smul.addr %s366, 160
        %s368 = scalar_lea.vmem [#allocation6], %s367
        // Predicated region
        $region53: #{forward.1} parent=47 // pred_check
          %p369 = pneg %p135
        $region54: #{forward.1} parent=47 // pred_check_branch
          %371 = sbr.rel (%p369) target = $region56
        $region55: #{forward.1} parent=47 // pred_region
          %372 = dma.done %s365, 2560
        $region56: #{forward.1} parent=47 // pred_fallthru
          _
        %s373 = sand.u32 %s29, 1
        %s374 = scalar_lea.sflag [#allocation7], %s373
        %s375 = sand.u32 %s174, 1
        %s376 = smul.addr %s375, 640
        %s377 = scalar_lea.vmem [#allocation8], %s376
        // Predicated region
        $region57: #{forward.1} parent=47 // pred_check
          %p378 = pneg %p187
        $region58: #{forward.1} parent=47 // pred_check_branch
          %380 = sbr.rel (%p378) target = $region60
        $region59: #{forward.1} parent=47 // pred_region
          %381 = dma.done %s374, 10240
        $region60: #{forward.1} parent=47 // pred_fallthru
          _
        %p382 = pneg %p57
        %p383 = pneg %p54
        %s384 = sand.u32 %s70, 1
        %s385 = scalar_lea.sflag [#allocation5], %s384
        %s386 = sand.u32 %s70, 1
        %s387 = smul.addr %s386, 64
        %s388 = scalar_lea.vmem [#allocation4], %s387
        %p389 = pneg %p83
        %p390 = pneg %p80
        %p391 = scmp.lt.s32.totalorder %s33, 3
        %s392 = scalar_select %p391, %s33, 3
        %s393 = smul.addr %s392, 4
        %s394 = smul.addr %s393, 8
        %s395 = scalar_lea.vmem %s3, %s394
        %p396 = pneg %p109
        %p397 = pneg %p106
        %s398 = sand.u32 %s29, 1
        %s399 = scalar_lea.sflag [#allocation7], %s398
        %s400 = sand.u32 %s122, 1
        %s401 = smul.addr %s400, 160
        %s402 = scalar_lea.vmem [#allocation6], %s401
        %p403 = pneg %p135
        %p404 = pneg %p132
        %p405 = scmp.lt.s32.totalorder %s33, 3
        %s406 = scalar_select %p405, %s33, 3
        %s407 = smul.addr %s406, 8
        %s408 = smul.addr %s407, 8
        %s409 = scalar_lea.vmem %s5, %s408
        %p410 = pneg %p161
        %p411 = pneg %p158
        %s412 = sand.u32 %s29, 1
        %s413 = scalar_lea.sflag [#allocation7], %s412
        %s414 = sand.u32 %s174, 1
        %s415 = smul.addr %s414, 640
        %s416 = scalar_lea.vmem [#allocation8], %s415
        %p417 = pneg %p187
        %p418 = pneg %p184
        %p419 = scmp.lt.s32.totalorder %s33, 3
        %s420 = scalar_select %p419, %s33, 3
        %s421 = smul.addr %s420, 16
        %s422 = smul.addr %s421, 8
        %s423 = scalar_lea.vmem %s7, %s422
        %p424 = pneg %p213
        %p425 = pneg %p210
        %p426 = pneg %p239
        %p427 = pneg %p236
        %p428 = scmp.lt.s32.totalorder %s33, 3
        %s429 = scalar_select %p428, %s33, 3
        %s430 = smul.addr %s429, 32
        %s431 = smul.addr %s430, 8
        %s432 = scalar_lea.vmem %s8, %s431
        %p433 = scmp.lt.s32.totalorder %s33, 3
        %s434 = scalar_select %p433, %s33, 3
        %s435 = smul.addr %s434, 4
        %s436 = smul.addr %s435, 8
        %s437 = scalar_lea.vmem %s3, %s436
        %p438 = scmp.lt.s32.totalorder %s33, 3
        %s439 = scalar_select %p438, %s33, 3
        %s440 = smul.addr %s439, 8
        %s441 = smul.addr %s440, 8
        %s442 = scalar_lea.vmem %s5, %s441
        %p443 = scmp.lt.s32.totalorder %s33, 3
        %s444 = scalar_select %p443, %s33, 3
        %s445 = smul.addr %s444, 16
        %s446 = smul.addr %s445, 8
        %s447 = scalar_lea.vmem %s7, %s446
        %p448 = scmp.lt.s32.totalorder %s33, 3
        %s449 = scalar_select %p448, %s33, 3
        %s450 = smul.addr %s449, 32
        %s451 = smul.addr %s450, 8
        %s452 = scalar_lea.vmem %s8, %s451
        %s454 = sld [smem:[#allocation3 + %s33]]
        %s455 = smul.u32 %s34, 512
        %p456 = scmp.eq.s32.totalorder %s34, 0
        // Predicated region
        $region61: #{forward.1} parent=47 // pred_check
          %p457 = pneg %p456
        $region62: #{forward.1} parent=47 // pred_check_branch
          %459 = sbr.rel (%p457) target = $region64
        $region63: #{forward.1} parent=47 // pred_region
          %460 = vst [vmem:[%s452] sm:$0xff] 0.0
          %461 = vst [vmem:[%s452 + $0x8] sm:$0xff] 0.0
          %462 = vst [vmem:[%s452 + $0x10] sm:$0xff] 0.0
          %463 = vst [vmem:[%s452 + $0x18] sm:$0xff] 0.0
          %464 = vst [vmem:[%s452 + $0x20] sm:$0xff] 0.0
          %465 = vst [vmem:[%s452 + $0x28] sm:$0xff] 0.0
          %466 = vst [vmem:[%s452 + $0x30] sm:$0xff] 0.0
          %467 = vst [vmem:[%s452 + $0x38] sm:$0xff] 0.0
          %468 = vst [vmem:[%s452 + $0x40] sm:$0xff] 0.0
          %469 = vst [vmem:[%s452 + $0x48] sm:$0xff] 0.0
          %470 = vst [vmem:[%s452 + $0x50] sm:$0xff] 0.0
          %471 = vst [vmem:[%s452 + $0x58] sm:$0xff] 0.0
          %472 = vst [vmem:[%s452 + $0x60] sm:$0xff] 0.0
          %473 = vst [vmem:[%s452 + $0x68] sm:$0xff] 0.0
          %474 = vst [vmem:[%s452 + $0x70] sm:$0xff] 0.0
          %475 = vst [vmem:[%s452 + $0x78] sm:$0xff] 0.0
          %476 = vst [vmem:[%s452 + $0x80] sm:$0xff] 0.0
          %477 = vst [vmem:[%s452 + $0x88] sm:$0xff] 0.0
          %478 = vst [vmem:[%s452 + $0x90] sm:$0xff] 0.0
          %479 = vst [vmem:[%s452 + $0x98] sm:$0xff] 0.0
          %480 = vst [vmem:[%s452 + $0xa0] sm:$0xff] 0.0
          %481 = vst [vmem:[%s452 + $0xa8] sm:$0xff] 0.0
          %482 = vst [vmem:[%s452 + $0xb0] sm:$0xff] 0.0
          %483 = vst [vmem:[%s452 + $0xb8] sm:$0xff] 0.0
          %484 = vst [vmem:[%s452 + $0xc0] sm:$0xff] 0.0
          %485 = vst [vmem:[%s452 + $0xc8] sm:$0xff] 0.0
          %486 = vst [vmem:[%s452 + $0xd0] sm:$0xff] 0.0
          %487 = vst [vmem:[%s452 + $0xd8] sm:$0xff] 0.0
          %488 = vst [vmem:[%s452 + $0xe0] sm:$0xff] 0.0
          %489 = vst [vmem:[%s452 + $0xe8] sm:$0xff] 0.0
          %490 = vst [vmem:[%s452 + $0xf0] sm:$0xff] 0.0
          %491 = vst [vmem:[%s452 + $0xf8] sm:$0xff] 0.0
        $region64: #{forward.1} parent=47 // pred_fallthru
          _
        %s492 = sshra.s32 %s455, 7
        %s493 = sand.u32 %s455, 127
        %s494 = smul.addr %s492, 8
        %s495 = scalar_lea.vmem %s1, %s494
        %v496 = vld [vmem:[%s495] sm:$0xff]
        %v497 = vld [vmem:[%s495 + $0x8] sm:$0xff]
        %v498 = vld [vmem:[%s495 + $0x10] sm:$0xff]
        %v499 = vld [vmem:[%s495 + $0x18] sm:$0xff]
        %v500 = vld [vmem:[%s495 + $0x20] sm:$0xff]
        %v501 = vld [vmem:[%s495 + $0x28] sm:$0xff]
        %v502 = vld [vmem:[%s495 + $0x30] sm:$0xff]
        %510 = vrot.lane.b32.xlu0 %v496, 127
        %v511 = vpop.permute.xlu0 %510
        %512 = vrot.lane.b32.xlu0 %v497, 127
        %v513 = vpop.permute.xlu0 %512
        %514 = vrot.lane.b32.xlu0 %v498, 127
        %v515 = vpop.permute.xlu0 %514
        %516 = vrot.lane.b32.xlu0 %v499, 127
        %v517 = vpop.permute.xlu0 %516
        %518 = vrot.lane.b32.xlu0 %v500, 127
        %v519 = vpop.permute.xlu0 %518
        %520 = vrot.lane.b32.xlu0 %v501, 127
        %v521 = vpop.permute.xlu0 %520
        %522 = vrot.lane.b32.xlu0 %v502, 127
        %v523 = vpop.permute.xlu0 %522
        %vm524 = vcmask 1039360
        %v525 = vsel %vm524, %v511, %v513
        %v526 = vsel %vm524, %v513, %v515
        %v527 = vsel %vm524, %v515, %v517
        %v528 = vsel %vm524, %v517, %v519
        %v529 = vsel %vm524, %v519, %v521
        %v530 = vsel %vm524, %v521, %v523
        %537 = vrot.lane.b32.xlu0 %v496, 126
        %v538 = vpop.permute.xlu0 %537
        %539 = vrot.lane.b32.xlu0 %v497, 126
        %v540 = vpop.permute.xlu0 %539
        %541 = vrot.lane.b32.xlu0 %v498, 126
        %v542 = vpop.permute.xlu0 %541
        %543 = vrot.lane.b32.xlu0 %v499, 126
        %v544 = vpop.permute.xlu0 %543
        %545 = vrot.lane.b32.xlu0 %v500, 126
        %v546 = vpop.permute.xlu0 %545
        %547 = vrot.lane.b32.xlu0 %v501, 126
        %v548 = vpop.permute.xlu0 %547
        %549 = vrot.lane.b32.xlu0 %v502, 126
        %v550 = vpop.permute.xlu0 %549
        %vm551 = vcmask 1031168
        %v552 = vsel %vm551, %v538, %v540
        %v553 = vsel %vm551, %v540, %v542
        %v554 = vsel %vm551, %v542, %v544
        %v555 = vsel %vm551, %v544, %v546
        %v556 = vsel %vm551, %v546, %v548
        %v557 = vsel %vm551, %v548, %v550
        %564 = vrot.lane.b32.xlu0 %v496, 125
        %v565 = vpop.permute.xlu0 %564
        %566 = vrot.lane.b32.xlu0 %v497, 125
        %v567 = vpop.permute.xlu0 %566
        %568 = vrot.lane.b32.xlu0 %v498, 125
        %v569 = vpop.permute.xlu0 %568
        %570 = vrot.lane.b32.xlu0 %v499, 125
        %v571 = vpop.permute.xlu0 %570
        %572 = vrot.lane.b32.xlu0 %v500, 125
        %v573 = vpop.permute.xlu0 %572
        %574 = vrot.lane.b32.xlu0 %v501, 125
        %v575 = vpop.permute.xlu0 %574
        %576 = vrot.lane.b32.xlu0 %v502, 125
        %v577 = vpop.permute.xlu0 %576
        %vm578 = vcmask 1022976
        %v579 = vsel %vm578, %v565, %v567
        %v580 = vsel %vm578, %v567, %v569
        %v581 = vsel %vm578, %v569, %v571
        %v582 = vsel %vm578, %v571, %v573
        %v583 = vsel %vm578, %v573, %v575
        %v584 = vsel %vm578, %v575, %v577
        %591 = vrot.lane.b32.xlu0 %v496, 124
        %v592 = vpop.permute.xlu0 %591
        %593 = vrot.lane.b32.xlu0 %v497, 124
        %v594 = vpop.permute.xlu0 %593
        %595 = vrot.lane.b32.xlu0 %v498, 124
        %v596 = vpop.permute.xlu0 %595
        %597 = vrot.lane.b32.xlu0 %v499, 124
        %v598 = vpop.permute.xlu0 %597
        %599 = vrot.lane.b32.xlu0 %v500, 124
        %v600 = vpop.permute.xlu0 %599
        %601 = vrot.lane.b32.xlu0 %v501, 124
        %v602 = vpop.permute.xlu0 %601
        %603 = vrot.lane.b32.xlu0 %v502, 124
        %v604 = vpop.permute.xlu0 %603
        %vm605 = vcmask 1014784
        %v606 = vsel %vm605, %v592, %v594
        %v607 = vsel %vm605, %v594, %v596
        %v608 = vsel %vm605, %v596, %v598
        %v609 = vsel %vm605, %v598, %v600
        %v610 = vsel %vm605, %v600, %v602
        %v611 = vsel %vm605, %v602, %v604
        %618 = vrot.lane.b32.xlu0 %v496, 123
        %v619 = vpop.permute.xlu0 %618
        %620 = vrot.lane.b32.xlu0 %v497, 123
        %v621 = vpop.permute.xlu0 %620
        %622 = vrot.lane.b32.xlu0 %v498, 123
        %v623 = vpop.permute.xlu0 %622
        %624 = vrot.lane.b32.xlu0 %v499, 123
        %v625 = vpop.permute.xlu0 %624
        %626 = vrot.lane.b32.xlu0 %v500, 123
        %v627 = vpop.permute.xlu0 %626
        %628 = vrot.lane.b32.xlu0 %v501, 123
        %v629 = vpop.permute.xlu0 %628
        %630 = vrot.lane.b32.xlu0 %v502, 123
        %v631 = vpop.permute.xlu0 %630
        %vm632 = vcmask 1006592
        %v633 = vsel %vm632, %v619, %v621
        %v634 = vsel %vm632, %v621, %v623
        %v635 = vsel %vm632, %v623, %v625
        %v636 = vsel %vm632, %v625, %v627
        %v637 = vsel %vm632, %v627, %v629
        %v638 = vsel %vm632, %v629, %v631
        %645 = vrot.lane.b32.xlu0 %v496, 122
        %v646 = vpop.permute.xlu0 %645
        %647 = vrot.lane.b32.xlu0 %v497, 122
        %v648 = vpop.permute.xlu0 %647
        %649 = vrot.lane.b32.xlu0 %v498, 122
        %v650 = vpop.permute.xlu0 %649
        %651 = vrot.lane.b32.xlu0 %v499, 122
        %v652 = vpop.permute.xlu0 %651
        %653 = vrot.lane.b32.xlu0 %v500, 122
        %v654 = vpop.permute.xlu0 %653
        %655 = vrot.lane.b32.xlu0 %v501, 122
        %v656 = vpop.permute.xlu0 %655
        %657 = vrot.lane.b32.xlu0 %v502, 122
        %v658 = vpop.permute.xlu0 %657
        %vm659 = vcmask 998400
        %v660 = vsel %vm659, %v646, %v648
        %v661 = vsel %vm659, %v648, %v650
        %v662 = vsel %vm659, %v650, %v652
        %v663 = vsel %vm659, %v652, %v654
        %v664 = vsel %vm659, %v654, %v656
        %v665 = vsel %vm659, %v656, %v658
        %672 = vrot.lane.b32.xlu0 %v496, 121
        %v673 = vpop.permute.xlu0 %672
        %674 = vrot.lane.b32.xlu0 %v497, 121
        %v675 = vpop.permute.xlu0 %674
        %676 = vrot.lane.b32.xlu0 %v498, 121
        %v677 = vpop.permute.xlu0 %676
        %678 = vrot.lane.b32.xlu0 %v499, 121
        %v679 = vpop.permute.xlu0 %678
        %680 = vrot.lane.b32.xlu0 %v500, 121
        %v681 = vpop.permute.xlu0 %680
        %682 = vrot.lane.b32.xlu0 %v501, 121
        %v683 = vpop.permute.xlu0 %682
        %684 = vrot.lane.b32.xlu0 %v502, 121
        %v685 = vpop.permute.xlu0 %684
        %vm686 = vcmask 990208
        %v687 = vsel %vm686, %v673, %v675
        %v688 = vsel %vm686, %v675, %v677
        %v689 = vsel %vm686, %v677, %v679
        %v690 = vsel %vm686, %v679, %v681
        %v691 = vsel %vm686, %v681, %v683
        %v692 = vsel %vm686, %v683, %v685
        %699 = vrot.lane.b32.xlu0 %v496, 120
        %v700 = vpop.permute.xlu0 %699
        %701 = vrot.lane.b32.xlu0 %v497, 120
        %v702 = vpop.permute.xlu0 %701
        %703 = vrot.lane.b32.xlu0 %v498, 120
        %v704 = vpop.permute.xlu0 %703
        %705 = vrot.lane.b32.xlu0 %v499, 120
        %v706 = vpop.permute.xlu0 %705
        %707 = vrot.lane.b32.xlu0 %v500, 120
        %v708 = vpop.permute.xlu0 %707
        %709 = vrot.lane.b32.xlu0 %v501, 120
        %v710 = vpop.permute.xlu0 %709
        %711 = vrot.lane.b32.xlu0 %v502, 120
        %v712 = vpop.permute.xlu0 %711
        %vm713 = vcmask 982016
        %v714 = vsel %vm713, %v700, %v702
        %v715 = vsel %vm713, %v702, %v704
        %v716 = vsel %vm713, %v704, %v706
        %v717 = vsel %vm713, %v706, %v708
        %v718 = vsel %vm713, %v708, %v710
        %v719 = vsel %vm713, %v710, %v712
        %726 = vrot.lane.b32.xlu0 %v496, 119
        %v727 = vpop.permute.xlu0 %726
        %728 = vrot.lane.b32.xlu0 %v497, 119
        %v729 = vpop.permute.xlu0 %728
        %730 = vrot.lane.b32.xlu0 %v498, 119
        %v731 = vpop.permute.xlu0 %730
        %732 = vrot.lane.b32.xlu0 %v499, 119
        %v733 = vpop.permute.xlu0 %732
        %734 = vrot.lane.b32.xlu0 %v500, 119
        %v735 = vpop.permute.xlu0 %734
        %736 = vrot.lane.b32.xlu0 %v501, 119
        %v737 = vpop.permute.xlu0 %736
        %738 = vrot.lane.b32.xlu0 %v502, 119
        %v739 = vpop.permute.xlu0 %738
        %vm740 = vcmask 973824
        %v741 = vsel %vm740, %v727, %v729
        %v742 = vsel %vm740, %v729, %v731
        %v743 = vsel %vm740, %v731, %v733
        %v744 = vsel %vm740, %v733, %v735
        %v745 = vsel %vm740, %v735, %v737
        %v746 = vsel %vm740, %v737, %v739
        %753 = vrot.lane.b32.xlu0 %v496, 118
        %v754 = vpop.permute.xlu0 %753
        %755 = vrot.lane.b32.xlu0 %v497, 118
        %v756 = vpop.permute.xlu0 %755
        %757 = vrot.lane.b32.xlu0 %v498, 118
        %v758 = vpop.permute.xlu0 %757
        %759 = vrot.lane.b32.xlu0 %v499, 118
        %v760 = vpop.permute.xlu0 %759
        %761 = vrot.lane.b32.xlu0 %v500, 118
        %v762 = vpop.permute.xlu0 %761
        %763 = vrot.lane.b32.xlu0 %v501, 118
        %v764 = vpop.permute.xlu0 %763
        %765 = vrot.lane.b32.xlu0 %v502, 118
        %v766 = vpop.permute.xlu0 %765
        %vm767 = vcmask 965632
        %v768 = vsel %vm767, %v754, %v756
        %v769 = vsel %vm767, %v756, %v758
        %v770 = vsel %vm767, %v758, %v760
        %v771 = vsel %vm767, %v760, %v762
        %v772 = vsel %vm767, %v762, %v764
        %v773 = vsel %vm767, %v764, %v766
        %780 = vrot.lane.b32.xlu0 %v496, 117
        %v781 = vpop.permute.xlu0 %780
        %782 = vrot.lane.b32.xlu0 %v497, 117
        %v783 = vpop.permute.xlu0 %782
        %784 = vrot.lane.b32.xlu0 %v498, 117
        %v785 = vpop.permute.xlu0 %784
        %786 = vrot.lane.b32.xlu0 %v499, 117
        %v787 = vpop.permute.xlu0 %786
        %788 = vrot.lane.b32.xlu0 %v500, 117
        %v789 = vpop.permute.xlu0 %788
        %790 = vrot.lane.b32.xlu0 %v501, 117
        %v791 = vpop.permute.xlu0 %790
        %792 = vrot.lane.b32.xlu0 %v502, 117
        %v793 = vpop.permute.xlu0 %792
        %vm794 = vcmask 957440
        %v795 = vsel %vm794, %v781, %v783
        %v796 = vsel %vm794, %v783, %v785
        %v797 = vsel %vm794, %v785, %v787
        %v798 = vsel %vm794, %v787, %v789
        %v799 = vsel %vm794, %v789, %v791
        %v800 = vsel %vm794, %v791, %v793
        %807 = vrot.lane.b32.xlu0 %v496, 116
        %v808 = vpop.permute.xlu0 %807
        %809 = vrot.lane.b32.xlu0 %v497, 116
        %v810 = vpop.permute.xlu0 %809
        %811 = vrot.lane.b32.xlu0 %v498, 116
        %v812 = vpop.permute.xlu0 %811
        %813 = vrot.lane.b32.xlu0 %v499, 116
        %v814 = vpop.permute.xlu0 %813
        %815 = vrot.lane.b32.xlu0 %v500, 116
        %v816 = vpop.permute.xlu0 %815
        %817 = vrot.lane.b32.xlu0 %v501, 116
        %v818 = vpop.permute.xlu0 %817
        %819 = vrot.lane.b32.xlu0 %v502, 116
        %v820 = vpop.permute.xlu0 %819
        %vm821 = vcmask 949248
        %v822 = vsel %vm821, %v808, %v810
        %v823 = vsel %vm821, %v810, %v812
        %v824 = vsel %vm821, %v812, %v814
        %v825 = vsel %vm821, %v814, %v816
        %v826 = vsel %vm821, %v816, %v818
        %v827 = vsel %vm821, %v818, %v820
        %834 = vrot.lane.b32.xlu0 %v496, 115
        %v835 = vpop.permute.xlu0 %834
        %836 = vrot.lane.b32.xlu0 %v497, 115
        %v837 = vpop.permute.xlu0 %836
        %838 = vrot.lane.b32.xlu0 %v498, 115
        %v839 = vpop.permute.xlu0 %838
        %840 = vrot.lane.b32.xlu0 %v499, 115
        %v841 = vpop.permute.xlu0 %840
        %842 = vrot.lane.b32.xlu0 %v500, 115
        %v843 = vpop.permute.xlu0 %842
        %844 = vrot.lane.b32.xlu0 %v501, 115
        %v845 = vpop.permute.xlu0 %844
        %846 = vrot.lane.b32.xlu0 %v502, 115
        %v847 = vpop.permute.xlu0 %846
        %vm848 = vcmask 941056
        %v849 = vsel %vm848, %v835, %v837
        %v850 = vsel %vm848, %v837, %v839
        %v851 = vsel %vm848, %v839, %v841
        %v852 = vsel %vm848, %v841, %v843
        %v853 = vsel %vm848, %v843, %v845
        %v854 = vsel %vm848, %v845, %v847
        %861 = vrot.lane.b32.xlu0 %v496, 114
        %v862 = vpop.permute.xlu0 %861
        %863 = vrot.lane.b32.xlu0 %v497, 114
        %v864 = vpop.permute.xlu0 %863
        %865 = vrot.lane.b32.xlu0 %v498, 114
        %v866 = vpop.permute.xlu0 %865
        %867 = vrot.lane.b32.xlu0 %v499, 114
        %v868 = vpop.permute.xlu0 %867
        %869 = vrot.lane.b32.xlu0 %v500, 114
        %v870 = vpop.permute.xlu0 %869
        %871 = vrot.lane.b32.xlu0 %v501, 114
        %v872 = vpop.permute.xlu0 %871
        %873 = vrot.lane.b32.xlu0 %v502, 114
        %v874 = vpop.permute.xlu0 %873
        %vm875 = vcmask 932864
        %v876 = vsel %vm875, %v862, %v864
        %v877 = vsel %vm875, %v864, %v866
        %v878 = vsel %vm875, %v866, %v868
        %v879 = vsel %vm875, %v868, %v870
        %v880 = vsel %vm875, %v870, %v872
        %v881 = vsel %vm875, %v872, %v874
        %888 = vrot.lane.b32.xlu0 %v496, 113
        %v889 = vpop.permute.xlu0 %888
        %890 = vrot.lane.b32.xlu0 %v497, 113
        %v891 = vpop.permute.xlu0 %890
        %892 = vrot.lane.b32.xlu0 %v498, 113
        %v893 = vpop.permute.xlu0 %892
        %894 = vrot.lane.b32.xlu0 %v499, 113
        %v895 = vpop.permute.xlu0 %894
        %896 = vrot.lane.b32.xlu0 %v500, 113
        %v897 = vpop.permute.xlu0 %896
        %898 = vrot.lane.b32.xlu0 %v501, 113
        %v899 = vpop.permute.xlu0 %898
        %900 = vrot.lane.b32.xlu0 %v502, 113
        %v901 = vpop.permute.xlu0 %900
        %vm902 = vcmask 924672
        %v903 = vsel %vm902, %v889, %v891
        %v904 = vsel %vm902, %v891, %v893
        %v905 = vsel %vm902, %v893, %v895
        %v906 = vsel %vm902, %v895, %v897
        %v907 = vsel %vm902, %v897, %v899
        %v908 = vsel %vm902, %v899, %v901
        %915 = vrot.lane.b32.xlu0 %v496, 112
        %v916 = vpop.permute.xlu0 %915
        %917 = vrot.lane.b32.xlu0 %v497, 112
        %v918 = vpop.permute.xlu0 %917
        %919 = vrot.lane.b32.xlu0 %v498, 112
        %v920 = vpop.permute.xlu0 %919
        %921 = vrot.lane.b32.xlu0 %v499, 112
        %v922 = vpop.permute.xlu0 %921
        %923 = vrot.lane.b32.xlu0 %v500, 112
        %v924 = vpop.permute.xlu0 %923
        %925 = vrot.lane.b32.xlu0 %v501, 112
        %v926 = vpop.permute.xlu0 %925
        %927 = vrot.lane.b32.xlu0 %v502, 112
        %v928 = vpop.permute.xlu0 %927
        %929 = vrot.lane.b32.xlu0 %v525, 112
        %v930 = vpop.permute.xlu0 %929
        %931 = vrot.lane.b32.xlu0 %v526, 112
        %v932 = vpop.permute.xlu0 %931
        %933 = vrot.lane.b32.xlu0 %v527, 112
        %v934 = vpop.permute.xlu0 %933
        %935 = vrot.lane.b32.xlu0 %v528, 112
        %v936 = vpop.permute.xlu0 %935
        %937 = vrot.lane.b32.xlu0 %v529, 112
        %v938 = vpop.permute.xlu0 %937
        %939 = vrot.lane.b32.xlu0 %v530, 112
        %v940 = vpop.permute.xlu0 %939
        %941 = vrot.lane.b32.xlu0 %v523, 112
        %v942 = vpop.permute.xlu0 %941
        %943 = vrot.lane.b32.xlu0 %v552, 112
        %v944 = vpop.permute.xlu0 %943
        %945 = vrot.lane.b32.xlu0 %v553, 112
        %v946 = vpop.permute.xlu0 %945
        %947 = vrot.lane.b32.xlu0 %v554, 112
        %v948 = vpop.permute.xlu0 %947
        %949 = vrot.lane.b32.xlu0 %v555, 112
        %v950 = vpop.permute.xlu0 %949
        %951 = vrot.lane.b32.xlu0 %v556, 112
        %v952 = vpop.permute.xlu0 %951
        %953 = vrot.lane.b32.xlu0 %v557, 112
        %v954 = vpop.permute.xlu0 %953
        %955 = vrot.lane.b32.xlu0 %v550, 112
        %v956 = vpop.permute.xlu0 %955
        %957 = vrot.lane.b32.xlu0 %v579, 112
        %v958 = vpop.permute.xlu0 %957
        %959 = vrot.lane.b32.xlu0 %v580, 112
        %v960 = vpop.permute.xlu0 %959
        %961 = vrot.lane.b32.xlu0 %v581, 112
        %v962 = vpop.permute.xlu0 %961
        %963 = vrot.lane.b32.xlu0 %v582, 112
        %v964 = vpop.permute.xlu0 %963
        %965 = vrot.lane.b32.xlu0 %v583, 112
        %v966 = vpop.permute.xlu0 %965
        %967 = vrot.lane.b32.xlu0 %v584, 112
        %v968 = vpop.permute.xlu0 %967
        %969 = vrot.lane.b32.xlu0 %v577, 112
        %v970 = vpop.permute.xlu0 %969
        %vm971 = vcmask 916480
        %v972 = vsel %vm971, %v916, %v918
        %v973 = vsel %vm971, %v918, %v920
        %v974 = vsel %vm971, %v920, %v922
        %v975 = vsel %vm971, %v922, %v924
        %v976 = vsel %vm971, %v924, %v926
        %v977 = vsel %vm971, %v926, %v928
        %v978 = vsel %vm971, %v930, %v932
        %v979 = vsel %vm971, %v932, %v934
        %v980 = vsel %vm971, %v934, %v936
        %v981 = vsel %vm971, %v936, %v938
        %v982 = vsel %vm971, %v938, %v940
        %v983 = vsel %vm971, %v940, %v942
        %v984 = vsel %vm971, %v944, %v946
        %v985 = vsel %vm971, %v946, %v948
        %v986 = vsel %vm971, %v948, %v950
        %v987 = vsel %vm971, %v950, %v952
        %v988 = vsel %vm971, %v952, %v954
        %v989 = vsel %vm971, %v954, %v956
        %v990 = vsel %vm971, %v958, %v960
        %v991 = vsel %vm971, %v960, %v962
        %v992 = vsel %vm971, %v962, %v964
        %v993 = vsel %vm971, %v964, %v966
        %v994 = vsel %vm971, %v966, %v968
        %v995 = vsel %vm971, %v968, %v970
        %v1020 = vld [vmem:[%s359] sm:$0xff]
        %v1021 = vld [vmem:[%s359 + $0x8] sm:$0xff]
        %v1022 = vld [vmem:[%s359 + $0x10] sm:$0xff]
        %v1023 = vld [vmem:[%s359 + $0x18] sm:$0xff]
        %v1024 = vld [vmem:[%s359 + $0x20] sm:$0xff]
        %v1025 = vld [vmem:[%s359 + $0x28] sm:$0xff]
        %v1026 = vld [vmem:[%s359 + $0x30] sm:$0xff]
        %v1027 = vld [vmem:[%s359 + $0x38] sm:$0xff]
        %v1028 = vld [vmem:[%s437] sm:$0xff]
        %v1029 = vld [vmem:[%s437 + $0x8] sm:$0xff]
        %v1030 = vld [vmem:[%s437 + $0x10] sm:$0xff]
        %v1031 = vld [vmem:[%s437 + $0x18] sm:$0xff]
        %1033 = vset.pattern.permute.xlu0 0
        %1034 = vperm.xlu0 %1033, %v1028
        %v1035 = vpop.permute.xlu0 %1034
        %1038 = vset.pattern.permute.xlu0 0
        %1039 = vperm.xlu0 %1038, %v1029
        %v1040 = vpop.permute.xlu0 %1039
        %1043 = vset.pattern.permute.xlu0 0
        %1044 = vperm.xlu0 %1043, %v1030
        %v1045 = vpop.permute.xlu0 %1044
        %1048 = vset.pattern.permute.xlu0 0
        %1049 = vperm.xlu0 %1048, %v1031
        %v1050 = vpop.permute.xlu0 %1049
        %vm1052 = vcmask 261120
        %v1054 = vsel %vm1052, %v1021, 0
        %v1057 = vsel %vm1052, %v1023, 0
        %v1060 = vsel %vm1052, %v1025, 0
        %v1063 = vsel %vm1052, %v1027, 0
        %1065 = vmatprep.subr.mxu0 %v904
        %1066 = vmatpush1.msra.mxu0 %v903
        %1067 = vmatprep.subr.mxu0 %v877
        %1068 = vmatpush1.msra.mxu0 %v876
        %1069 = vmatprep.subr.mxu0 %v850
        %1070 = vmatpush1.msra.mxu0 %v849
        %1071 = vmatprep.subr.mxu0 %v823
        %1072 = vmatpush1.msra.mxu0 %v822
        %1073 = vmatprep.subr.mxu0 %v796
        %1074 = vmatpush1.msra.mxu0 %v795
        %1075 = vmatprep.subr.mxu0 %v769
        %1076 = vmatpush1.msra.mxu0 %v768
        %1077 = vmatprep.subr.mxu0 %v742
        %1078 = vmatpush1.msra.mxu0 %v741
        %1079 = vmatprep.subr.mxu0 %v715
        %1080 = vmatpush1.msra.mxu0 %v714
        %1081 = vmatprep.subr.mxu0 %v688
        %1082 = vmatpush1.msra.mxu0 %v687
        %1083 = vmatprep.subr.mxu0 %v661
        %1084 = vmatpush1.msra.mxu0 %v660
        %1085 = vmatprep.subr.mxu0 %v634
        %1086 = vmatpush1.msra.mxu0 %v633
        %1087 = vmatprep.subr.mxu0 %v607
        %1088 = vmatpush1.msra.mxu0 %v606
        %1089 = vmatprep.subr.mxu0 %v580
        %1090 = vmatpush1.msra.mxu0 %v579
        %1091 = vmatprep.subr.mxu0 %v553
        %1092 = vmatpush1.msra.mxu0 %v552
        %1093 = vmatprep.subr.mxu0 %v526
        %1094 = vmatpush1.msra.mxu0 %v525
        %1095 = vmatprep.subr.mxu0 %v497
        %1096 = vmatpush1.msra.mxu0 %v496
        %1097 = vmatprep.subr.mxu0 0.0
        %1098 = vmatpush2.msra.mxu0 0.0
        %1099 = vmatprep.subr.mxu0 0.0
        %1100 = vmatpush2.msra.mxu0 0.0
        %1101 = vmatprep.subr.mxu0 0.0
        %1102 = vmatpush2.msra.mxu0 0.0
        %1103 = vmatprep.subr.mxu0 0.0
        %1104 = vmatpush2.msra.mxu0 0.0
        %1105 = vmatprep.subr.mxu0 0.0
        %1106 = vmatpush2.msra.mxu0 0.0
        %1107 = vmatprep.subr.mxu0 0.0
        %1108 = vmatpush2.msra.mxu0 0.0
        %1109 = vmatprep.subr.mxu0 0.0
        %1110 = vmatpush2.msra.mxu0 0.0
        %1111 = vmatprep.subr.mxu0 0.0
        %1112 = vmatpush2.msra.mxu0 0.0
        %1113 = vmatprep.subr.mxu0 0.0
        %1114 = vmatpush2.msra.mxu0 0.0
        %1115 = vmatprep.subr.mxu0 0.0
        %1116 = vmatpush2.msra.mxu0 0.0
        %1117 = vmatprep.subr.mxu0 0.0
        %1118 = vmatpush2.msra.mxu0 0.0
        %1119 = vmatprep.subr.mxu0 0.0
        %1120 = vmatpush2.msra.mxu0 0.0
        %1121 = vmatprep.subr.mxu0 %v991
        %1122 = vmatpush2.msra.mxu0 %v990
        %1123 = vmatprep.subr.mxu0 %v985
        %1124 = vmatpush2.msra.mxu0 %v984
        %1125 = vmatprep.subr.mxu0 %v979
        %1126 = vmatpush2.msra.mxu0 %v978
        %1127 = vmatprep.subr.mxu0 %v973
        %1128 = vmatpush2.msra.mxu0 %v972
        %1129 = vmatprep.mubr.f32.mxu0 %v1054
        %1130 = vmatmul.mubr.f32.gmra.mxu0 %v1020
        %v1131 = vpop.f32.mrf.mxu0
        %v1132 = vadd.f32 %v1035, %v1131
        %v1133 = vpop.f32.mrf.mxu0
        %v1134 = vadd.f32 %v1035, %v1133
        %1135 = vmatprep.mubr.f32.mxu0 %v1057
        %1136 = vmatmul.mubr.f32.gmra.mxu0 %v1022
        %v1137 = vpop.f32.mrf.mxu0
        %v1138 = vadd.f32 %v1040, %v1137
        %v1139 = vpop.f32.mrf.mxu0
        %v1140 = vadd.f32 %v1040, %v1139
        %1141 = vmatprep.mubr.f32.mxu0 %v1060
        %1142 = vmatmul.mubr.f32.gmra.mxu0 %v1024
        %v1143 = vpop.f32.mrf.mxu0
        %v1144 = vadd.f32 %v1045, %v1143
        %v1145 = vpop.f32.mrf.mxu0
        %v1146 = vadd.f32 %v1045, %v1145
        %1147 = vmatprep.mubr.f32.mxu0 %v1063
        %1148 = vmatmul.mubr.f32.gmra.mxu0 %v1026
        %v1149 = vpop.f32.mrf.mxu0
        %v1150 = vadd.f32 %v1050, %v1149
        %v1151 = vpop.f32.mrf.mxu0
        %v1152 = vadd.f32 %v1050, %v1151
        %1153 = vdwg.mxu0
        %1154 = vmatprep.subr.mxu0 %v906
        %1155 = vmatpush1.msra.mxu0 %v905
        %1156 = vmatprep.subr.mxu0 %v879
        %1157 = vmatpush1.msra.mxu0 %v878
        %1158 = vmatprep.subr.mxu0 %v852
        %1159 = vmatpush1.msra.mxu0 %v851
        %1160 = vmatprep.subr.mxu0 %v825
        %1161 = vmatpush1.msra.mxu0 %v824
        %1162 = vmatprep.subr.mxu0 %v798
        %1163 = vmatpush1.msra.mxu0 %v797
        %1164 = vmatprep.subr.mxu0 %v771
        %1165 = vmatpush1.msra.mxu0 %v770
        %1166 = vmatprep.subr.mxu0 %v744
        %1167 = vmatpush1.msra.mxu0 %v743
        %1168 = vmatprep.subr.mxu0 %v717
        %1169 = vmatpush1.msra.mxu0 %v716
        %1170 = vmatprep.subr.mxu0 %v690
        %1171 = vmatpush1.msra.mxu0 %v689
        %1172 = vmatprep.subr.mxu0 %v663
        %1173 = vmatpush1.msra.mxu0 %v662
        %1174 = vmatprep.subr.mxu0 %v636
        %1175 = vmatpush1.msra.mxu0 %v635
        %1176 = vmatprep.subr.mxu0 %v609
        %1177 = vmatpush1.msra.mxu0 %v608
        %1178 = vmatprep.subr.mxu0 %v582
        %1179 = vmatpush1.msra.mxu0 %v581
        %1180 = vmatprep.subr.mxu0 %v555
        %1181 = vmatpush1.msra.mxu0 %v554
        %1182 = vmatprep.subr.mxu0 %v528
        %1183 = vmatpush1.msra.mxu0 %v527
        %1184 = vmatprep.subr.mxu0 %v499
        %1185 = vmatpush1.msra.mxu0 %v498
        %1186 = vmatprep.subr.mxu0 0.0
        %1187 = vmatpush2.msra.mxu0 0.0
        %1188 = vmatprep.subr.mxu0 0.0
        %1189 = vmatpush2.msra.mxu0 0.0
        %1190 = vmatprep.subr.mxu0 0.0
        %1191 = vmatpush2.msra.mxu0 0.0
        %1192 = vmatprep.subr.mxu0 0.0
        %1193 = vmatpush2.msra.mxu0 0.0
        %1194 = vmatprep.subr.mxu0 0.0
        %1195 = vmatpush2.msra.mxu0 0.0
        %1196 = vmatprep.subr.mxu0 0.0
        %1197 = vmatpush2.msra.mxu0 0.0
        %1198 = vmatprep.subr.mxu0 0.0
        %1199 = vmatpush2.msra.mxu0 0.0
        %1200 = vmatprep.subr.mxu0 0.0
        %1201 = vmatpush2.msra.mxu0 0.0
        %1202 = vmatprep.subr.mxu0 0.0
        %1203 = vmatpush2.msra.mxu0 0.0
        %1204 = vmatprep.subr.mxu0 0.0
        %1205 = vmatpush2.msra.mxu0 0.0
        %1206 = vmatprep.subr.mxu0 0.0
        %1207 = vmatpush2.msra.mxu0 0.0
        %1208 = vmatprep.subr.mxu0 0.0
        %1209 = vmatpush2.msra.mxu0 0.0
        %1210 = vmatprep.subr.mxu0 %v993
        %1211 = vmatpush2.msra.mxu0 %v992
        %1212 = vmatprep.subr.mxu0 %v987
        %1213 = vmatpush2.msra.mxu0 %v986
        %1214 = vmatprep.subr.mxu0 %v981
        %1215 = vmatpush2.msra.mxu0 %v980
        %1216 = vmatprep.subr.mxu0 %v975
        %1217 = vmatpush2.msra.mxu0 %v974
        %1218 = vmatprep.mubr.f32.mxu0 %v1054
        %1219 = vmatmul.mubr.f32.gmra.mxu0 %v1020
        %v1220 = vpop.f32.mrf.mxu0
        %v1221 = vadd.f32 %v1035, %v1220
        %v1222 = vpop.f32.mrf.mxu0
        %v1223 = vadd.f32 %v1035, %v1222
        %1224 = vmatprep.mubr.f32.mxu0 %v1057
        %1225 = vmatmul.mubr.f32.gmra.mxu0 %v1022
        %v1226 = vpop.f32.mrf.mxu0
        %v1227 = vadd.f32 %v1040, %v1226
        %v1228 = vpop.f32.mrf.mxu0
        %v1229 = vadd.f32 %v1040, %v1228
        %1230 = vmatprep.mubr.f32.mxu0 %v1060
        %1231 = vmatmul.mubr.f32.gmra.mxu0 %v1024
        %v1232 = vpop.f32.mrf.mxu0
        %v1233 = vadd.f32 %v1045, %v1232
        %v1234 = vpop.f32.mrf.mxu0
        %v1235 = vadd.f32 %v1045, %v1234
        %1236 = vmatprep.mubr.f32.mxu0 %v1063
        %1237 = vmatmul.mubr.f32.gmra.mxu0 %v1026
        %v1238 = vpop.f32.mrf.mxu0
        %v1239 = vadd.f32 %v1050, %v1238
        %v1240 = vpop.f32.mrf.mxu0
        %v1241 = vadd.f32 %v1050, %v1240
        %1242 = vdwg.mxu0
        %1243 = vmatprep.subr.mxu0 %v908
        %1244 = vmatpush1.msra.mxu0 %v907
        %1245 = vmatprep.subr.mxu0 %v881
        %1246 = vmatpush1.msra.mxu0 %v880
        %1247 = vmatprep.subr.mxu0 %v854
        %1248 = vmatpush1.msra.mxu0 %v853
        %1249 = vmatprep.subr.mxu0 %v827
        %1250 = vmatpush1.msra.mxu0 %v826
        %1251 = vmatprep.subr.mxu0 %v800
        %1252 = vmatpush1.msra.mxu0 %v799
        %1253 = vmatprep.subr.mxu0 %v773
        %1254 = vmatpush1.msra.mxu0 %v772
        %1255 = vmatprep.subr.mxu0 %v746
        %1256 = vmatpush1.msra.mxu0 %v745
        %1257 = vmatprep.subr.mxu0 %v719
        %1258 = vmatpush1.msra.mxu0 %v718
        %1259 = vmatprep.subr.mxu0 %v692
        %1260 = vmatpush1.msra.mxu0 %v691
        %1261 = vmatprep.subr.mxu0 %v665
        %1262 = vmatpush1.msra.mxu0 %v664
        %1263 = vmatprep.subr.mxu0 %v638
        %1264 = vmatpush1.msra.mxu0 %v637
        %1265 = vmatprep.subr.mxu0 %v611
        %1266 = vmatpush1.msra.mxu0 %v610
        %1267 = vmatprep.subr.mxu0 %v584
        %1268 = vmatpush1.msra.mxu0 %v583
        %1269 = vmatprep.subr.mxu0 %v557
        %1270 = vmatpush1.msra.mxu0 %v556
        %1271 = vmatprep.subr.mxu0 %v530
        %1272 = vmatpush1.msra.mxu0 %v529
        %1273 = vmatprep.subr.mxu0 %v501
        %1274 = vmatpush1.msra.mxu0 %v500
        %1275 = vmatprep.subr.mxu0 0.0
        %1276 = vmatpush2.msra.mxu0 0.0
        %1277 = vmatprep.subr.mxu0 0.0
        %1278 = vmatpush2.msra.mxu0 0.0
        %1279 = vmatprep.subr.mxu0 0.0
        %1280 = vmatpush2.msra.mxu0 0.0
        %1281 = vmatprep.subr.mxu0 0.0
        %1282 = vmatpush2.msra.mxu0 0.0
        %1283 = vmatprep.subr.mxu0 0.0
        %1284 = vmatpush2.msra.mxu0 0.0
        %1285 = vmatprep.subr.mxu0 0.0
        %1286 = vmatpush2.msra.mxu0 0.0
        %1287 = vmatprep.subr.mxu0 0.0
        %1288 = vmatpush2.msra.mxu0 0.0
        %1289 = vmatprep.subr.mxu0 0.0
        %1290 = vmatpush2.msra.mxu0 0.0
        %1291 = vmatprep.subr.mxu0 0.0
        %1292 = vmatpush2.msra.mxu0 0.0
        %1293 = vmatprep.subr.mxu0 0.0
        %1294 = vmatpush2.msra.mxu0 0.0
        %1295 = vmatprep.subr.mxu0 0.0
        %1296 = vmatpush2.msra.mxu0 0.0
        %1297 = vmatprep.subr.mxu0 0.0
        %1298 = vmatpush2.msra.mxu0 0.0
        %1299 = vmatprep.subr.mxu0 %v995
        %1300 = vmatpush2.msra.mxu0 %v994
        %1301 = vmatprep.subr.mxu0 %v989
        %1302 = vmatpush2.msra.mxu0 %v988
        %1303 = vmatprep.subr.mxu0 %v983
        %1304 = vmatpush2.msra.mxu0 %v982
        %1305 = vmatprep.subr.mxu0 %v977
        %1306 = vmatpush2.msra.mxu0 %v976
        %1307 = vmatprep.mubr.f32.mxu0 %v1054
        %1308 = vmatmul.mubr.f32.gmra.mxu0 %v1020
        %v1309 = vpop.f32.mrf.mxu0
        %v1310 = vadd.f32 %v1035, %v1309
        %v1311 = vpop.f32.mrf.mxu0
        %v1312 = vadd.f32 %v1035, %v1311
        %1313 = vmatprep.mubr.f32.mxu0 %v1057
        %1314 = vmatmul.mubr.f32.gmra.mxu0 %v1022
        %v1315 = vpop.f32.mrf.mxu0
        %v1316 = vadd.f32 %v1040, %v1315
        %v1317 = vpop.f32.mrf.mxu0
        %v1318 = vadd.f32 %v1040, %v1317
        %1319 = vmatprep.mubr.f32.mxu0 %v1060
        %1320 = vmatmul.mubr.f32.gmra.mxu0 %v1024
        %v1321 = vpop.f32.mrf.mxu0
        %v1322 = vadd.f32 %v1045, %v1321
        %v1323 = vpop.f32.mrf.mxu0
        %v1324 = vadd.f32 %v1045, %v1323
        %1325 = vmatprep.mubr.f32.mxu0 %v1063
        %1326 = vmatmul.mubr.f32.gmra.mxu0 %v1026
        %v1327 = vpop.f32.mrf.mxu0
        %v1328 = vadd.f32 %v1050, %v1327
        %v1329 = vpop.f32.mrf.mxu0
        %v1330 = vadd.f32 %v1050, %v1329
        %1331 = vdwg.mxu0
        %v1332 = vpack.c.bf16 %v1138, %v1132
        %v1333 = vpack.c.bf16 %v1140, %v1134
        %v1334 = vpack.c.bf16 %v1227, %v1221
        %v1335 = vpack.c.bf16 %v1229, %v1223
        %v1336 = vpack.c.bf16 %v1316, %v1310
        %v1337 = vpack.c.bf16 %v1318, %v1312
        %v1338 = vpack.c.bf16 %v1150, %v1144
        %v1339 = vpack.c.bf16 %v1152, %v1146
        %v1340 = vpack.c.bf16 %v1239, %v1233
        %v1341 = vpack.c.bf16 %v1241, %v1235
        %v1342 = vpack.c.bf16 %v1328, %v1322
        %v1343 = vpack.c.bf16 %v1330, %v1324
        %1356 = vrot.lane.b32.xlu0 %v1332, 127
        %v1357 = vpop.permute.xlu0 %1356
        %1358 = vrot.lane.b32.xlu0 %v1333, 127
        %v1359 = vpop.permute.xlu0 %1358
        %1360 = vrot.lane.b32.xlu0 %v1334, 127
        %v1361 = vpop.permute.xlu0 %1360
        %1362 = vrot.lane.b32.xlu0 %v1335, 127
        %v1363 = vpop.permute.xlu0 %1362
        %1364 = vrot.lane.b32.xlu0 %v1336, 127
        %v1365 = vpop.permute.xlu0 %1364
        %1366 = vrot.lane.b32.xlu0 %v1337, 127
        %v1367 = vpop.permute.xlu0 %1366
        %1368 = vrot.lane.b32.xlu0 %v1338, 127
        %v1369 = vpop.permute.xlu0 %1368
        %1370 = vrot.lane.b32.xlu0 %v1339, 127
        %v1371 = vpop.permute.xlu0 %1370
        %1372 = vrot.lane.b32.xlu0 %v1340, 127
        %v1373 = vpop.permute.xlu0 %1372
        %1374 = vrot.lane.b32.xlu0 %v1341, 127
        %v1375 = vpop.permute.xlu0 %1374
        %1376 = vrot.lane.b32.xlu0 %v1342, 127
        %v1377 = vpop.permute.xlu0 %1376
        %1378 = vrot.lane.b32.xlu0 %v1343, 127
        %v1379 = vpop.permute.xlu0 %1378
        %vm1380 = vcmask 1039360
        %v1381 = vsel %vm1380, %v1357, %v1359
        %v1382 = vsel %vm1380, %v1359, %v1361
        %v1383 = vsel %vm1380, %v1361, %v1363
        %v1384 = vsel %vm1380, %v1363, %v1365
        %v1385 = vsel %vm1380, %v1365, %v1367
        %v1386 = vsel %vm1380, %v1369, %v1371
        %v1387 = vsel %vm1380, %v1371, %v1373
        %v1388 = vsel %vm1380, %v1373, %v1375
        %v1389 = vsel %vm1380, %v1375, %v1377
        %v1390 = vsel %vm1380, %v1377, %v1379
        %1401 = vrot.lane.b32.xlu0 %v1332, 126
        %v1402 = vpop.permute.xlu0 %1401
        %1403 = vrot.lane.b32.xlu0 %v1333, 126
        %v1404 = vpop.permute.xlu0 %1403
        %1405 = vrot.lane.b32.xlu0 %v1334, 126
        %v1406 = vpop.permute.xlu0 %1405
        %1407 = vrot.lane.b32.xlu0 %v1335, 126
        %v1408 = vpop.permute.xlu0 %1407
        %1409 = vrot.lane.b32.xlu0 %v1336, 126
        %v1410 = vpop.permute.xlu0 %1409
        %1411 = vrot.lane.b32.xlu0 %v1337, 126
        %v1412 = vpop.permute.xlu0 %1411
        %1413 = vrot.lane.b32.xlu0 %v1338, 126
        %v1414 = vpop.permute.xlu0 %1413
        %1415 = vrot.lane.b32.xlu0 %v1339, 126
        %v1416 = vpop.permute.xlu0 %1415
        %1417 = vrot.lane.b32.xlu0 %v1340, 126
        %v1418 = vpop.permute.xlu0 %1417
        %1419 = vrot.lane.b32.xlu0 %v1341, 126
        %v1420 = vpop.permute.xlu0 %1419
        %1421 = vrot.lane.b32.xlu0 %v1342, 126
        %v1422 = vpop.permute.xlu0 %1421
        %1423 = vrot.lane.b32.xlu0 %v1343, 126
        %v1424 = vpop.permute.xlu0 %1423
        %vm1425 = vcmask 1031168
        %v1426 = vsel %vm1425, %v1402, %v1404
        %v1427 = vsel %vm1425, %v1404, %v1406
        %v1428 = vsel %vm1425, %v1406, %v1408
        %v1429 = vsel %vm1425, %v1408, %v1410
        %v1430 = vsel %vm1425, %v1410, %v1412
        %v1431 = vsel %vm1425, %v1414, %v1416
        %v1432 = vsel %vm1425, %v1416, %v1418
        %v1433 = vsel %vm1425, %v1418, %v1420
        %v1434 = vsel %vm1425, %v1420, %v1422
        %v1435 = vsel %vm1425, %v1422, %v1424
        %1446 = vrot.lane.b32.xlu0 %v1332, 125
        %v1447 = vpop.permute.xlu0 %1446
        %1448 = vrot.lane.b32.xlu0 %v1333, 125
        %v1449 = vpop.permute.xlu0 %1448
        %1450 = vrot.lane.b32.xlu0 %v1334, 125
        %v1451 = vpop.permute.xlu0 %1450
        %1452 = vrot.lane.b32.xlu0 %v1335, 125
        %v1453 = vpop.permute.xlu0 %1452
        %1454 = vrot.lane.b32.xlu0 %v1336, 125
        %v1455 = vpop.permute.xlu0 %1454
        %1456 = vrot.lane.b32.xlu0 %v1337, 125
        %v1457 = vpop.permute.xlu0 %1456
        %1458 = vrot.lane.b32.xlu0 %v1338, 125
        %v1459 = vpop.permute.xlu0 %1458
        %1460 = vrot.lane.b32.xlu0 %v1339, 125
        %v1461 = vpop.permute.xlu0 %1460
        %1462 = vrot.lane.b32.xlu0 %v1340, 125
        %v1463 = vpop.permute.xlu0 %1462
        %1464 = vrot.lane.b32.xlu0 %v1341, 125
        %v1465 = vpop.permute.xlu0 %1464
        %1466 = vrot.lane.b32.xlu0 %v1342, 125
        %v1467 = vpop.permute.xlu0 %1466
        %1468 = vrot.lane.b32.xlu0 %v1343, 125
        %v1469 = vpop.permute.xlu0 %1468
        %vm1470 = vcmask 1022976
        %v1471 = vsel %vm1470, %v1447, %v1449
        %v1472 = vsel %vm1470, %v1449, %v1451
        %v1473 = vsel %vm1470, %v1451, %v1453
        %v1474 = vsel %vm1470, %v1453, %v1455
        %v1475 = vsel %vm1470, %v1455, %v1457
        %v1476 = vsel %vm1470, %v1459, %v1461
        %v1477 = vsel %vm1470, %v1461, %v1463
        %v1478 = vsel %vm1470, %v1463, %v1465
        %v1479 = vsel %vm1470, %v1465, %v1467
        %v1480 = vsel %vm1470, %v1467, %v1469
        %1491 = vrot.lane.b32.xlu0 %v1332, 124
        %v1492 = vpop.permute.xlu0 %1491
        %1493 = vrot.lane.b32.xlu0 %v1333, 124
        %v1494 = vpop.permute.xlu0 %1493
        %1495 = vrot.lane.b32.xlu0 %v1334, 124
        %v1496 = vpop.permute.xlu0 %1495
        %1497 = vrot.lane.b32.xlu0 %v1335, 124
        %v1498 = vpop.permute.xlu0 %1497
        %1499 = vrot.lane.b32.xlu0 %v1336, 124
        %v1500 = vpop.permute.xlu0 %1499
        %1501 = vrot.lane.b32.xlu0 %v1337, 124
        %v1502 = vpop.permute.xlu0 %1501
        %1503 = vrot.lane.b32.xlu0 %v1338, 124
        %v1504 = vpop.permute.xlu0 %1503
        %1505 = vrot.lane.b32.xlu0 %v1339, 124
        %v1506 = vpop.permute.xlu0 %1505
        %1507 = vrot.lane.b32.xlu0 %v1340, 124
        %v1508 = vpop.permute.xlu0 %1507
        %1509 = vrot.lane.b32.xlu0 %v1341, 124
        %v1510 = vpop.permute.xlu0 %1509
        %1511 = vrot.lane.b32.xlu0 %v1342, 124
        %v1512 = vpop.permute.xlu0 %1511
        %1513 = vrot.lane.b32.xlu0 %v1343, 124
        %v1514 = vpop.permute.xlu0 %1513
        %vm1515 = vcmask 1014784
        %v1516 = vsel %vm1515, %v1492, %v1494
        %v1517 = vsel %vm1515, %v1494, %v1496
        %v1518 = vsel %vm1515, %v1496, %v1498
        %v1519 = vsel %vm1515, %v1498, %v1500
        %v1520 = vsel %vm1515, %v1500, %v1502
        %v1521 = vsel %vm1515, %v1504, %v1506
        %v1522 = vsel %vm1515, %v1506, %v1508
        %v1523 = vsel %vm1515, %v1508, %v1510
        %v1524 = vsel %vm1515, %v1510, %v1512
        %v1525 = vsel %vm1515, %v1512, %v1514
        %1536 = vrot.lane.b32.xlu0 %v1332, 123
        %v1537 = vpop.permute.xlu0 %1536
        %1538 = vrot.lane.b32.xlu0 %v1333, 123
        %v1539 = vpop.permute.xlu0 %1538
        %1540 = vrot.lane.b32.xlu0 %v1334, 123
        %v1541 = vpop.permute.xlu0 %1540
        %1542 = vrot.lane.b32.xlu0 %v1335, 123
        %v1543 = vpop.permute.xlu0 %1542
        %1544 = vrot.lane.b32.xlu0 %v1336, 123
        %v1545 = vpop.permute.xlu0 %1544
        %1546 = vrot.lane.b32.xlu0 %v1337, 123
        %v1547 = vpop.permute.xlu0 %1546
        %1548 = vrot.lane.b32.xlu0 %v1338, 123
        %v1549 = vpop.permute.xlu0 %1548
        %1550 = vrot.lane.b32.xlu0 %v1339, 123
        %v1551 = vpop.permute.xlu0 %1550
        %1552 = vrot.lane.b32.xlu0 %v1340, 123
        %v1553 = vpop.permute.xlu0 %1552
        %1554 = vrot.lane.b32.xlu0 %v1341, 123
        %v1555 = vpop.permute.xlu0 %1554
        %1556 = vrot.lane.b32.xlu0 %v1342, 123
        %v1557 = vpop.permute.xlu0 %1556
        %1558 = vrot.lane.b32.xlu0 %v1343, 123
        %v1559 = vpop.permute.xlu0 %1558
        %vm1560 = vcmask 1006592
        %v1561 = vsel %vm1560, %v1537, %v1539
        %v1562 = vsel %vm1560, %v1539, %v1541
        %v1563 = vsel %vm1560, %v1541, %v1543
        %v1564 = vsel %vm1560, %v1543, %v1545
        %v1565 = vsel %vm1560, %v1545, %v1547
        %v1566 = vsel %vm1560, %v1549, %v1551
        %v1567 = vsel %vm1560, %v1551, %v1553
        %v1568 = vsel %vm1560, %v1553, %v1555
        %v1569 = vsel %vm1560, %v1555, %v1557
        %v1570 = vsel %vm1560, %v1557, %v1559
        %1581 = vrot.lane.b32.xlu0 %v1332, 122
        %v1582 = vpop.permute.xlu0 %1581
        %1583 = vrot.lane.b32.xlu0 %v1333, 122
        %v1584 = vpop.permute.xlu0 %1583
        %1585 = vrot.lane.b32.xlu0 %v1334, 122
        %v1586 = vpop.permute.xlu0 %1585
        %1587 = vrot.lane.b32.xlu0 %v1335, 122
        %v1588 = vpop.permute.xlu0 %1587
        %1589 = vrot.lane.b32.xlu0 %v1336, 122
        %v1590 = vpop.permute.xlu0 %1589
        %1591 = vrot.lane.b32.xlu0 %v1337, 122
        %v1592 = vpop.permute.xlu0 %1591
        %1593 = vrot.lane.b32.xlu0 %v1338, 122
        %v1594 = vpop.permute.xlu0 %1593
        %1595 = vrot.lane.b32.xlu0 %v1339, 122
        %v1596 = vpop.permute.xlu0 %1595
        %1597 = vrot.lane.b32.xlu0 %v1340, 122
        %v1598 = vpop.permute.xlu0 %1597
        %1599 = vrot.lane.b32.xlu0 %v1341, 122
        %v1600 = vpop.permute.xlu0 %1599
        %1601 = vrot.lane.b32.xlu0 %v1342, 122
        %v1602 = vpop.permute.xlu0 %1601
        %1603 = vrot.lane.b32.xlu0 %v1343, 122
        %v1604 = vpop.permute.xlu0 %1603
        %vm1605 = vcmask 998400
        %v1606 = vsel %vm1605, %v1582, %v1584
        %v1607 = vsel %vm1605, %v1584, %v1586
        %v1608 = vsel %vm1605, %v1586, %v1588
        %v1609 = vsel %vm1605, %v1588, %v1590
        %v1610 = vsel %vm1605, %v1590, %v1592
        %v1611 = vsel %vm1605, %v1594, %v1596
        %v1612 = vsel %vm1605, %v1596, %v1598
        %v1613 = vsel %vm1605, %v1598, %v1600
        %v1614 = vsel %vm1605, %v1600, %v1602
        %v1615 = vsel %vm1605, %v1602, %v1604
        %1626 = vrot.lane.b32.xlu0 %v1332, 121
        %v1627 = vpop.permute.xlu0 %1626
        %1628 = vrot.lane.b32.xlu0 %v1333, 121
        %v1629 = vpop.permute.xlu0 %1628
        %1630 = vrot.lane.b32.xlu0 %v1334, 121
        %v1631 = vpop.permute.xlu0 %1630
        %1632 = vrot.lane.b32.xlu0 %v1335, 121
        %v1633 = vpop.permute.xlu0 %1632
        %1634 = vrot.lane.b32.xlu0 %v1336, 121
        %v1635 = vpop.permute.xlu0 %1634
        %1636 = vrot.lane.b32.xlu0 %v1337, 121
        %v1637 = vpop.permute.xlu0 %1636
        %1638 = vrot.lane.b32.xlu0 %v1338, 121
        %v1639 = vpop.permute.xlu0 %1638
        %1640 = vrot.lane.b32.xlu0 %v1339, 121
        %v1641 = vpop.permute.xlu0 %1640
        %1642 = vrot.lane.b32.xlu0 %v1340, 121
        %v1643 = vpop.permute.xlu0 %1642
        %1644 = vrot.lane.b32.xlu0 %v1341, 121
        %v1645 = vpop.permute.xlu0 %1644
        %1646 = vrot.lane.b32.xlu0 %v1342, 121
        %v1647 = vpop.permute.xlu0 %1646
        %1648 = vrot.lane.b32.xlu0 %v1343, 121
        %v1649 = vpop.permute.xlu0 %1648
        %vm1650 = vcmask 990208
        %v1651 = vsel %vm1650, %v1627, %v1629
        %v1652 = vsel %vm1650, %v1629, %v1631
        %v1653 = vsel %vm1650, %v1631, %v1633
        %v1654 = vsel %vm1650, %v1633, %v1635
        %v1655 = vsel %vm1650, %v1635, %v1637
        %v1656 = vsel %vm1650, %v1639, %v1641
        %v1657 = vsel %vm1650, %v1641, %v1643
        %v1658 = vsel %vm1650, %v1643, %v1645
        %v1659 = vsel %vm1650, %v1645, %v1647
        %v1660 = vsel %vm1650, %v1647, %v1649
        %1671 = vrot.lane.b32.xlu0 %v1332, 120
        %v1672 = vpop.permute.xlu0 %1671
        %1673 = vrot.lane.b32.xlu0 %v1333, 120
        %v1674 = vpop.permute.xlu0 %1673
        %1675 = vrot.lane.b32.xlu0 %v1334, 120
        %v1676 = vpop.permute.xlu0 %1675
        %1677 = vrot.lane.b32.xlu0 %v1335, 120
        %v1678 = vpop.permute.xlu0 %1677
        %1679 = vrot.lane.b32.xlu0 %v1336, 120
        %v1680 = vpop.permute.xlu0 %1679
        %1681 = vrot.lane.b32.xlu0 %v1337, 120
        %v1682 = vpop.permute.xlu0 %1681
        %1683 = vrot.lane.b32.xlu0 %v1338, 120
        %v1684 = vpop.permute.xlu0 %1683
        %1685 = vrot.lane.b32.xlu0 %v1339, 120
        %v1686 = vpop.permute.xlu0 %1685
        %1687 = vrot.lane.b32.xlu0 %v1340, 120
        %v1688 = vpop.permute.xlu0 %1687
        %1689 = vrot.lane.b32.xlu0 %v1341, 120
        %v1690 = vpop.permute.xlu0 %1689
        %1691 = vrot.lane.b32.xlu0 %v1342, 120
        %v1692 = vpop.permute.xlu0 %1691
        %1693 = vrot.lane.b32.xlu0 %v1343, 120
        %v1694 = vpop.permute.xlu0 %1693
        %vm1695 = vcmask 982016
        %v1696 = vsel %vm1695, %v1672, %v1674
        %v1697 = vsel %vm1695, %v1674, %v1676
        %v1698 = vsel %vm1695, %v1676, %v1678
        %v1699 = vsel %vm1695, %v1678, %v1680
        %v1700 = vsel %vm1695, %v1680, %v1682
        %v1701 = vsel %vm1695, %v1684, %v1686
        %v1702 = vsel %vm1695, %v1686, %v1688
        %v1703 = vsel %vm1695, %v1688, %v1690
        %v1704 = vsel %vm1695, %v1690, %v1692
        %v1705 = vsel %vm1695, %v1692, %v1694
        %1716 = vrot.lane.b32.xlu0 %v1332, 119
        %v1717 = vpop.permute.xlu0 %1716
        %1718 = vrot.lane.b32.xlu0 %v1333, 119
        %v1719 = vpop.permute.xlu0 %1718
        %1720 = vrot.lane.b32.xlu0 %v1334, 119
        %v1721 = vpop.permute.xlu0 %1720
        %1722 = vrot.lane.b32.xlu0 %v1335, 119
        %v1723 = vpop.permute.xlu0 %1722
        %1724 = vrot.lane.b32.xlu0 %v1336, 119
        %v1725 = vpop.permute.xlu0 %1724
        %1726 = vrot.lane.b32.xlu0 %v1337, 119
        %v1727 = vpop.permute.xlu0 %1726
        %1728 = vrot.lane.b32.xlu0 %v1338, 119
        %v1729 = vpop.permute.xlu0 %1728
        %1730 = vrot.lane.b32.xlu0 %v1339, 119
        %v1731 = vpop.permute.xlu0 %1730
        %1732 = vrot.lane.b32.xlu0 %v1340, 119
        %v1733 = vpop.permute.xlu0 %1732
        %1734 = vrot.lane.b32.xlu0 %v1341, 119
        %v1735 = vpop.permute.xlu0 %1734
        %1736 = vrot.lane.b32.xlu0 %v1342, 119
        %v1737 = vpop.permute.xlu0 %1736
        %1738 = vrot.lane.b32.xlu0 %v1343, 119
        %v1739 = vpop.permute.xlu0 %1738
        %vm1740 = vcmask 973824
        %v1741 = vsel %vm1740, %v1717, %v1719
        %v1742 = vsel %vm1740, %v1719, %v1721
        %v1743 = vsel %vm1740, %v1721, %v1723
        %v1744 = vsel %vm1740, %v1723, %v1725
        %v1745 = vsel %vm1740, %v1725, %v1727
        %v1746 = vsel %vm1740, %v1729, %v1731
        %v1747 = vsel %vm1740, %v1731, %v1733
        %v1748 = vsel %vm1740, %v1733, %v1735
        %v1749 = vsel %vm1740, %v1735, %v1737
        %v1750 = vsel %vm1740, %v1737, %v1739
        %1761 = vrot.lane.b32.xlu0 %v1332, 118
        %v1762 = vpop.permute.xlu0 %1761
        %1763 = vrot.lane.b32.xlu0 %v1333, 118
        %v1764 = vpop.permute.xlu0 %1763
        %1765 = vrot.lane.b32.xlu0 %v1334, 118
        %v1766 = vpop.permute.xlu0 %1765
        %1767 = vrot.lane.b32.xlu0 %v1335, 118
        %v1768 = vpop.permute.xlu0 %1767
        %1769 = vrot.lane.b32.xlu0 %v1336, 118
        %v1770 = vpop.permute.xlu0 %1769
        %1771 = vrot.lane.b32.xlu0 %v1337, 118
        %v1772 = vpop.permute.xlu0 %1771
        %1773 = vrot.lane.b32.xlu0 %v1338, 118
        %v1774 = vpop.permute.xlu0 %1773
        %1775 = vrot.lane.b32.xlu0 %v1339, 118
        %v1776 = vpop.permute.xlu0 %1775
        %1777 = vrot.lane.b32.xlu0 %v1340, 118
        %v1778 = vpop.permute.xlu0 %1777
        %1779 = vrot.lane.b32.xlu0 %v1341, 118
        %v1780 = vpop.permute.xlu0 %1779
        %1781 = vrot.lane.b32.xlu0 %v1342, 118
        %v1782 = vpop.permute.xlu0 %1781
        %1783 = vrot.lane.b32.xlu0 %v1343, 118
        %v1784 = vpop.permute.xlu0 %1783
        %vm1785 = vcmask 965632
        %v1786 = vsel %vm1785, %v1762, %v1764
        %v1787 = vsel %vm1785, %v1764, %v1766
        %v1788 = vsel %vm1785, %v1766, %v1768
        %v1789 = vsel %vm1785, %v1768, %v1770
        %v1790 = vsel %vm1785, %v1770, %v1772
        %v1791 = vsel %vm1785, %v1774, %v1776
        %v1792 = vsel %vm1785, %v1776, %v1778
        %v1793 = vsel %vm1785, %v1778, %v1780
        %v1794 = vsel %vm1785, %v1780, %v1782
        %v1795 = vsel %vm1785, %v1782, %v1784
        %1806 = vrot.lane.b32.xlu0 %v1332, 117
        %v1807 = vpop.permute.xlu0 %1806
        %1808 = vrot.lane.b32.xlu0 %v1333, 117
        %v1809 = vpop.permute.xlu0 %1808
        %1810 = vrot.lane.b32.xlu0 %v1334, 117
        %v1811 = vpop.permute.xlu0 %1810
        %1812 = vrot.lane.b32.xlu0 %v1335, 117
        %v1813 = vpop.permute.xlu0 %1812
        %1814 = vrot.lane.b32.xlu0 %v1336, 117
        %v1815 = vpop.permute.xlu0 %1814
        %1816 = vrot.lane.b32.xlu0 %v1337, 117
        %v1817 = vpop.permute.xlu0 %1816
        %1818 = vrot.lane.b32.xlu0 %v1338, 117
        %v1819 = vpop.permute.xlu0 %1818
        %1820 = vrot.lane.b32.xlu0 %v1339, 117
        %v1821 = vpop.permute.xlu0 %1820
        %1822 = vrot.lane.b32.xlu0 %v1340, 117
        %v1823 = vpop.permute.xlu0 %1822
        %1824 = vrot.lane.b32.xlu0 %v1341, 117
        %v1825 = vpop.permute.xlu0 %1824
        %1826 = vrot.lane.b32.xlu0 %v1342, 117
        %v1827 = vpop.permute.xlu0 %1826
        %1828 = vrot.lane.b32.xlu0 %v1343, 117
        %v1829 = vpop.permute.xlu0 %1828
        %vm1830 = vcmask 957440
        %v1831 = vsel %vm1830, %v1807, %v1809
        %v1832 = vsel %vm1830, %v1809, %v1811
        %v1833 = vsel %vm1830, %v1811, %v1813
        %v1834 = vsel %vm1830, %v1813, %v1815
        %v1835 = vsel %vm1830, %v1815, %v1817
        %v1836 = vsel %vm1830, %v1819, %v1821
        %v1837 = vsel %vm1830, %v1821, %v1823
        %v1838 = vsel %vm1830, %v1823, %v1825
        %v1839 = vsel %vm1830, %v1825, %v1827
        %v1840 = vsel %vm1830, %v1827, %v1829
        %1851 = vrot.lane.b32.xlu0 %v1332, 116
        %v1852 = vpop.permute.xlu0 %1851
        %1853 = vrot.lane.b32.xlu0 %v1333, 116
        %v1854 = vpop.permute.xlu0 %1853
        %1855 = vrot.lane.b32.xlu0 %v1334, 116
        %v1856 = vpop.permute.xlu0 %1855
        %1857 = vrot.lane.b32.xlu0 %v1335, 116
        %v1858 = vpop.permute.xlu0 %1857
        %1859 = vrot.lane.b32.xlu0 %v1336, 116
        %v1860 = vpop.permute.xlu0 %1859
        %1861 = vrot.lane.b32.xlu0 %v1337, 116
        %v1862 = vpop.permute.xlu0 %1861
        %1863 = vrot.lane.b32.xlu0 %v1338, 116
        %v1864 = vpop.permute.xlu0 %1863
        %1865 = vrot.lane.b32.xlu0 %v1339, 116
        %v1866 = vpop.permute.xlu0 %1865
        %1867 = vrot.lane.b32.xlu0 %v1340, 116
        %v1868 = vpop.permute.xlu0 %1867
        %1869 = vrot.lane.b32.xlu0 %v1341, 116
        %v1870 = vpop.permute.xlu0 %1869
        %1871 = vrot.lane.b32.xlu0 %v1342, 116
        %v1872 = vpop.permute.xlu0 %1871
        %1873 = vrot.lane.b32.xlu0 %v1343, 116
        %v1874 = vpop.permute.xlu0 %1873
        %vm1875 = vcmask 949248
        %v1876 = vsel %vm1875, %v1852, %v1854
        %v1877 = vsel %vm1875, %v1854, %v1856
        %v1878 = vsel %vm1875, %v1856, %v1858
        %v1879 = vsel %vm1875, %v1858, %v1860
        %v1880 = vsel %vm1875, %v1860, %v1862
        %v1881 = vsel %vm1875, %v1864, %v1866
        %v1882 = vsel %vm1875, %v1866, %v1868
        %v1883 = vsel %vm1875, %v1868, %v1870
        %v1884 = vsel %vm1875, %v1870, %v1872
        %v1885 = vsel %vm1875, %v1872, %v1874
        %1896 = vrot.lane.b32.xlu0 %v1332, 115
        %v1897 = vpop.permute.xlu0 %1896
        %1898 = vrot.lane.b32.xlu0 %v1333, 115
        %v1899 = vpop.permute.xlu0 %1898
        %1900 = vrot.lane.b32.xlu0 %v1334, 115
        %v1901 = vpop.permute.xlu0 %1900
        %1902 = vrot.lane.b32.xlu0 %v1335, 115
        %v1903 = vpop.permute.xlu0 %1902
        %1904 = vrot.lane.b32.xlu0 %v1336, 115
        %v1905 = vpop.permute.xlu0 %1904
        %1906 = vrot.lane.b32.xlu0 %v1337, 115
        %v1907 = vpop.permute.xlu0 %1906
        %1908 = vrot.lane.b32.xlu0 %v1338, 115
        %v1909 = vpop.permute.xlu0 %1908
        %1910 = vrot.lane.b32.xlu0 %v1339, 115
        %v1911 = vpop.permute.xlu0 %1910
        %1912 = vrot.lane.b32.xlu0 %v1340, 115
        %v1913 = vpop.permute.xlu0 %1912
        %1914 = vrot.lane.b32.xlu0 %v1341, 115
        %v1915 = vpop.permute.xlu0 %1914
        %1916 = vrot.lane.b32.xlu0 %v1342, 115
        %v1917 = vpop.permute.xlu0 %1916
        %1918 = vrot.lane.b32.xlu0 %v1343, 115
        %v1919 = vpop.permute.xlu0 %1918
        %vm1920 = vcmask 941056
        %v1921 = vsel %vm1920, %v1897, %v1899
        %v1922 = vsel %vm1920, %v1899, %v1901
        %v1923 = vsel %vm1920, %v1901, %v1903
        %v1924 = vsel %vm1920, %v1903, %v1905
        %v1925 = vsel %vm1920, %v1905, %v1907
        %v1926 = vsel %vm1920, %v1909, %v1911
        %v1927 = vsel %vm1920, %v1911, %v1913
        %v1928 = vsel %vm1920, %v1913, %v1915
        %v1929 = vsel %vm1920, %v1915, %v1917
        %v1930 = vsel %vm1920, %v1917, %v1919
        %1941 = vrot.lane.b32.xlu0 %v1332, 114
        %v1942 = vpop.permute.xlu0 %1941
        %1943 = vrot.lane.b32.xlu0 %v1333, 114
        %v1944 = vpop.permute.xlu0 %1943
        %1945 = vrot.lane.b32.xlu0 %v1334, 114
        %v1946 = vpop.permute.xlu0 %1945
        %1947 = vrot.lane.b32.xlu0 %v1335, 114
        %v1948 = vpop.permute.xlu0 %1947
        %1949 = vrot.lane.b32.xlu0 %v1336, 114
        %v1950 = vpop.permute.xlu0 %1949
        %1951 = vrot.lane.b32.xlu0 %v1337, 114
        %v1952 = vpop.permute.xlu0 %1951
        %1953 = vrot.lane.b32.xlu0 %v1338, 114
        %v1954 = vpop.permute.xlu0 %1953
        %1955 = vrot.lane.b32.xlu0 %v1339, 114
        %v1956 = vpop.permute.xlu0 %1955
        %1957 = vrot.lane.b32.xlu0 %v1340, 114
        %v1958 = vpop.permute.xlu0 %1957
        %1959 = vrot.lane.b32.xlu0 %v1341, 114
        %v1960 = vpop.permute.xlu0 %1959
        %1961 = vrot.lane.b32.xlu0 %v1342, 114
        %v1962 = vpop.permute.xlu0 %1961
        %1963 = vrot.lane.b32.xlu0 %v1343, 114
        %v1964 = vpop.permute.xlu0 %1963
        %vm1965 = vcmask 932864
        %v1966 = vsel %vm1965, %v1942, %v1944
        %v1967 = vsel %vm1965, %v1944, %v1946
        %v1968 = vsel %vm1965, %v1946, %v1948
        %v1969 = vsel %vm1965, %v1948, %v1950
        %v1970 = vsel %vm1965, %v1950, %v1952
        %v1971 = vsel %vm1965, %v1954, %v1956
        %v1972 = vsel %vm1965, %v1956, %v1958
        %v1973 = vsel %vm1965, %v1958, %v1960
        %v1974 = vsel %vm1965, %v1960, %v1962
        %v1975 = vsel %vm1965, %v1962, %v1964
        %1986 = vrot.lane.b32.xlu0 %v1332, 113
        %v1987 = vpop.permute.xlu0 %1986
        %1988 = vrot.lane.b32.xlu0 %v1333, 113
        %v1989 = vpop.permute.xlu0 %1988
        %1990 = vrot.lane.b32.xlu0 %v1334, 113
        %v1991 = vpop.permute.xlu0 %1990
        %1992 = vrot.lane.b32.xlu0 %v1335, 113
        %v1993 = vpop.permute.xlu0 %1992
        %1994 = vrot.lane.b32.xlu0 %v1336, 113
        %v1995 = vpop.permute.xlu0 %1994
        %1996 = vrot.lane.b32.xlu0 %v1337, 113
        %v1997 = vpop.permute.xlu0 %1996
        %1998 = vrot.lane.b32.xlu0 %v1338, 113
        %v1999 = vpop.permute.xlu0 %1998
        %2000 = vrot.lane.b32.xlu0 %v1339, 113
        %v2001 = vpop.permute.xlu0 %2000
        %2002 = vrot.lane.b32.xlu0 %v1340, 113
        %v2003 = vpop.permute.xlu0 %2002
        %2004 = vrot.lane.b32.xlu0 %v1341, 113
        %v2005 = vpop.permute.xlu0 %2004
        %2006 = vrot.lane.b32.xlu0 %v1342, 113
        %v2007 = vpop.permute.xlu0 %2006
        %2008 = vrot.lane.b32.xlu0 %v1343, 113
        %v2009 = vpop.permute.xlu0 %2008
        %vm2010 = vcmask 924672
        %v2011 = vsel %vm2010, %v1987, %v1989
        %v2012 = vsel %vm2010, %v1989, %v1991
        %v2013 = vsel %vm2010, %v1991, %v1993
        %v2014 = vsel %vm2010, %v1993, %v1995
        %v2015 = vsel %vm2010, %v1995, %v1997
        %v2016 = vsel %vm2010, %v1999, %v2001
        %v2017 = vsel %vm2010, %v2001, %v2003
        %v2018 = vsel %vm2010, %v2003, %v2005
        %v2019 = vsel %vm2010, %v2005, %v2007
        %v2020 = vsel %vm2010, %v2007, %v2009
        %2031 = vrot.lane.b32.xlu0 %v1332, 112
        %v2032 = vpop.permute.xlu0 %2031
        %2033 = vrot.lane.b32.xlu0 %v1333, 112
        %v2034 = vpop.permute.xlu0 %2033
        %2035 = vrot.lane.b32.xlu0 %v1334, 112
        %v2036 = vpop.permute.xlu0 %2035
        %2037 = vrot.lane.b32.xlu0 %v1335, 112
        %v2038 = vpop.permute.xlu0 %2037
        %2039 = vrot.lane.b32.xlu0 %v1336, 112
        %v2040 = vpop.permute.xlu0 %2039
        %2041 = vrot.lane.b32.xlu0 %v1337, 112
        %v2042 = vpop.permute.xlu0 %2041
        %2043 = vrot.lane.b32.xlu0 %v1338, 112
        %v2044 = vpop.permute.xlu0 %2043
        %2045 = vrot.lane.b32.xlu0 %v1339, 112
        %v2046 = vpop.permute.xlu0 %2045
        %2047 = vrot.lane.b32.xlu0 %v1340, 112
        %v2048 = vpop.permute.xlu0 %2047
        %2049 = vrot.lane.b32.xlu0 %v1341, 112
        %v2050 = vpop.permute.xlu0 %2049
        %2051 = vrot.lane.b32.xlu0 %v1342, 112
        %v2052 = vpop.permute.xlu0 %2051
        %2053 = vrot.lane.b32.xlu0 %v1343, 112
        %v2054 = vpop.permute.xlu0 %2053
        %2055 = vrot.lane.b32.xlu0 %v1381, 112
        %v2056 = vpop.permute.xlu0 %2055
        %2057 = vrot.lane.b32.xlu0 %v1382, 112
        %v2058 = vpop.permute.xlu0 %2057
        %2059 = vrot.lane.b32.xlu0 %v1383, 112
        %v2060 = vpop.permute.xlu0 %2059
        %2061 = vrot.lane.b32.xlu0 %v1384, 112
        %v2062 = vpop.permute.xlu0 %2061
        %2063 = vrot.lane.b32.xlu0 %v1385, 112
        %v2064 = vpop.permute.xlu0 %2063
        %2065 = vrot.lane.b32.xlu0 %v1367, 112
        %v2066 = vpop.permute.xlu0 %2065
        %2067 = vrot.lane.b32.xlu0 %v1386, 112
        %v2068 = vpop.permute.xlu0 %2067
        %2069 = vrot.lane.b32.xlu0 %v1387, 112
        %v2070 = vpop.permute.xlu0 %2069
        %2071 = vrot.lane.b32.xlu0 %v1388, 112
        %v2072 = vpop.permute.xlu0 %2071
        %2073 = vrot.lane.b32.xlu0 %v1389, 112
        %v2074 = vpop.permute.xlu0 %2073
        %2075 = vrot.lane.b32.xlu0 %v1390, 112
        %v2076 = vpop.permute.xlu0 %2075
        %2077 = vrot.lane.b32.xlu0 %v1379, 112
        %v2078 = vpop.permute.xlu0 %2077
        %2079 = vrot.lane.b32.xlu0 %v1426, 112
        %v2080 = vpop.permute.xlu0 %2079
        %2081 = vrot.lane.b32.xlu0 %v1427, 112
        %v2082 = vpop.permute.xlu0 %2081
        %2083 = vrot.lane.b32.xlu0 %v1428, 112
        %v2084 = vpop.permute.xlu0 %2083
        %2085 = vrot.lane.b32.xlu0 %v1429, 112
        %v2086 = vpop.permute.xlu0 %2085
        %2087 = vrot.lane.b32.xlu0 %v1430, 112
        %v2088 = vpop.permute.xlu0 %2087
        %2089 = vrot.lane.b32.xlu0 %v1412, 112
        %v2090 = vpop.permute.xlu0 %2089
        %2091 = vrot.lane.b32.xlu0 %v1431, 112
        %v2092 = vpop.permute.xlu0 %2091
        %2093 = vrot.lane.b32.xlu0 %v1432, 112
        %v2094 = vpop.permute.xlu0 %2093
        %2095 = vrot.lane.b32.xlu0 %v1433, 112
        %v2096 = vpop.permute.xlu0 %2095
        %2097 = vrot.lane.b32.xlu0 %v1434, 112
        %v2098 = vpop.permute.xlu0 %2097
        %2099 = vrot.lane.b32.xlu0 %v1435, 112
        %v2100 = vpop.permute.xlu0 %2099
        %2101 = vrot.lane.b32.xlu0 %v1424, 112
        %v2102 = vpop.permute.xlu0 %2101
        %2103 = vrot.lane.b32.xlu0 %v1471, 112
        %v2104 = vpop.permute.xlu0 %2103
        %2105 = vrot.lane.b32.xlu0 %v1472, 112
        %v2106 = vpop.permute.xlu0 %2105
        %2107 = vrot.lane.b32.xlu0 %v1473, 112
        %v2108 = vpop.permute.xlu0 %2107
        %2109 = vrot.lane.b32.xlu0 %v1474, 112
        %v2110 = vpop.permute.xlu0 %2109
        %2111 = vrot.lane.b32.xlu0 %v1475, 112
        %v2112 = vpop.permute.xlu0 %2111
        %2113 = vrot.lane.b32.xlu0 %v1457, 112
        %v2114 = vpop.permute.xlu0 %2113
        %2115 = vrot.lane.b32.xlu0 %v1476, 112
        %v2116 = vpop.permute.xlu0 %2115
        %2117 = vrot.lane.b32.xlu0 %v1477, 112
        %v2118 = vpop.permute.xlu0 %2117
        %2119 = vrot.lane.b32.xlu0 %v1478, 112
        %v2120 = vpop.permute.xlu0 %2119
        %2121 = vrot.lane.b32.xlu0 %v1479, 112
        %v2122 = vpop.permute.xlu0 %2121
        %2123 = vrot.lane.b32.xlu0 %v1480, 112
        %v2124 = vpop.permute.xlu0 %2123
        %2125 = vrot.lane.b32.xlu0 %v1469, 112
        %v2126 = vpop.permute.xlu0 %2125
        %vm2127 = vcmask 916480
        %v2128 = vsel %vm2127, %v2032, %v2034
        %v2129 = vsel %vm2127, %v2034, %v2036
        %v2130 = vsel %vm2127, %v2036, %v2038
        %v2131 = vsel %vm2127, %v2038, %v2040
        %v2132 = vsel %vm2127, %v2040, %v2042
        %v2133 = vsel %vm2127, %v2044, %v2046
        %v2134 = vsel %vm2127, %v2046, %v2048
        %v2135 = vsel %vm2127, %v2048, %v2050
        %v2136 = vsel %vm2127, %v2050, %v2052
        %v2137 = vsel %vm2127, %v2052, %v2054
        %v2138 = vsel %vm2127, %v2056, %v2058
        %v2139 = vsel %vm2127, %v2058, %v2060
        %v2140 = vsel %vm2127, %v2060, %v2062
        %v2141 = vsel %vm2127, %v2062, %v2064
        %v2142 = vsel %vm2127, %v2064, %v2066
        %v2143 = vsel %vm2127, %v2068, %v2070
        %v2144 = vsel %vm2127, %v2070, %v2072
        %v2145 = vsel %vm2127, %v2072, %v2074
        %v2146 = vsel %vm2127, %v2074, %v2076
        %v2147 = vsel %vm2127, %v2076, %v2078
        %v2148 = vsel %vm2127, %v2080, %v2082
        %v2149 = vsel %vm2127, %v2082, %v2084
        %v2150 = vsel %vm2127, %v2084, %v2086
        %v2151 = vsel %vm2127, %v2086, %v2088
        %v2152 = vsel %vm2127, %v2088, %v2090
        %v2153 = vsel %vm2127, %v2092, %v2094
        %v2154 = vsel %vm2127, %v2094, %v2096
        %v2155 = vsel %vm2127, %v2096, %v2098
        %v2156 = vsel %vm2127, %v2098, %v2100
        %v2157 = vsel %vm2127, %v2100, %v2102
        %v2158 = vsel %vm2127, %v2104, %v2106
        %v2159 = vsel %vm2127, %v2106, %v2108
        %v2160 = vsel %vm2127, %v2108, %v2110
        %v2161 = vsel %vm2127, %v2110, %v2112
        %v2162 = vsel %vm2127, %v2112, %v2114
        %v2163 = vsel %vm2127, %v2116, %v2118
        %v2164 = vsel %vm2127, %v2118, %v2120
        %v2165 = vsel %vm2127, %v2120, %v2122
        %v2166 = vsel %vm2127, %v2122, %v2124
        %v2167 = vsel %vm2127, %v2124, %v2126
        %v2208 = vld [vmem:[%s368] sm:$0xff]
        %v2209 = vld [vmem:[%s368 + $0x8] sm:$0xff]
        %v2210 = vld [vmem:[%s368 + $0x10] sm:$0xf]
        %v2211 = vld [vmem:[%s368 + $0x14] sm:$0xff]
        %v2212 = vld [vmem:[%s368 + $0x1c] sm:$0xff]
        %v2213 = vld [vmem:[%s368 + $0x24] sm:$0xf]
        %v2214 = vld [vmem:[%s368 + $0x28] sm:$0xff]
        %v2215 = vld [vmem:[%s368 + $0x30] sm:$0xff]
        %v2216 = vld [vmem:[%s368 + $0x38] sm:$0xf]
        %v2217 = vld [vmem:[%s368 + $0x3c] sm:$0xff]
        %v2218 = vld [vmem:[%s368 + $0x44] sm:$0xff]
        %v2219 = vld [vmem:[%s368 + $0x4c] sm:$0xf]
        %v2220 = vld [vmem:[%s368 + $0x50] sm:$0xff]
        %v2221 = vld [vmem:[%s368 + $0x58] sm:$0xff]
        %v2222 = vld [vmem:[%s368 + $0x60] sm:$0xf]
        %v2223 = vld [vmem:[%s368 + $0x64] sm:$0xff]
        %v2224 = vld [vmem:[%s368 + $0x6c] sm:$0xff]
        %v2225 = vld [vmem:[%s368 + $0x74] sm:$0xf]
        %v2226 = vld [vmem:[%s368 + $0x78] sm:$0xff]
        %v2227 = vld [vmem:[%s368 + $0x80] sm:$0xff]
        %v2228 = vld [vmem:[%s368 + $0x88] sm:$0xf]
        %v2229 = vld [vmem:[%s368 + $0x8c] sm:$0xff]
        %v2230 = vld [vmem:[%s368 + $0x94] sm:$0xff]
        %v2231 = vld [vmem:[%s368 + $0x9c] sm:$0xf]
        %v2232 = vld [vmem:[%s442] sm:$0xff]
        %v2233 = vld [vmem:[%s442 + $0x8] sm:$0xff]
        %v2234 = vld [vmem:[%s442 + $0x10] sm:$0xff]
        %v2235 = vld [vmem:[%s442 + $0x18] sm:$0xff]
        %v2236 = vld [vmem:[%s442 + $0x20] sm:$0xff]
        %v2237 = vld [vmem:[%s442 + $0x28] sm:$0xff]
        %v2238 = vld [vmem:[%s442 + $0x30] sm:$0xff]
        %v2239 = vld [vmem:[%s442 + $0x38] sm:$0xff]
        %2241 = vset.pattern.permute.xlu0 0
        %2242 = vperm.xlu0 %2241, %v2232
        %v2243 = vpop.permute.xlu0 %2242
        %2246 = vset.pattern.permute.xlu0 0
        %2247 = vperm.xlu0 %2246, %v2233
        %v2248 = vpop.permute.xlu0 %2247
        %2251 = vset.pattern.permute.xlu0 0
        %2252 = vperm.xlu0 %2251, %v2234
        %v2253 = vpop.permute.xlu0 %2252
        %2256 = vset.pattern.permute.xlu0 0
        %2257 = vperm.xlu0 %2256, %v2235
        %v2258 = vpop.permute.xlu0 %2257
        %2261 = vset.pattern.permute.xlu0 0
        %2262 = vperm.xlu0 %2261, %v2236
        %v2263 = vpop.permute.xlu0 %2262
        %2266 = vset.pattern.permute.xlu0 0
        %2267 = vperm.xlu0 %2266, %v2237
        %v2268 = vpop.permute.xlu0 %2267
        %2271 = vset.pattern.permute.xlu0 0
        %2272 = vperm.xlu0 %2271, %v2238
        %v2273 = vpop.permute.xlu0 %2272
        %2276 = vset.pattern.permute.xlu0 0
        %2277 = vperm.xlu0 %2276, %v2239
        %v2278 = vpop.permute.xlu0 %2277
        %v2304 = vunpack.c.l.b16 %v2208
        %v2305 = vunpack.c.h.b16 %v2208
        %v2306 = vunpack.c.l.b16 %v2209
        %v2307 = vunpack.c.h.b16 %v2209
        %v2308 = vunpack.c.l.b16 %v2210
        %v2309 = vunpack.c.l.b16 %v2211
        %v2310 = vunpack.c.h.b16 %v2211
        %v2311 = vunpack.c.l.b16 %v2212
        %v2312 = vunpack.c.h.b16 %v2212
        %v2313 = vunpack.c.l.b16 %v2213
        %v2314 = vunpack.c.l.b16 %v2214
        %v2315 = vunpack.c.h.b16 %v2214
        %v2316 = vunpack.c.l.b16 %v2215
        %v2317 = vunpack.c.h.b16 %v2215
        %v2318 = vunpack.c.l.b16 %v2216
        %v2319 = vunpack.c.l.b16 %v2217
        %v2320 = vunpack.c.h.b16 %v2217
        %v2321 = vunpack.c.l.b16 %v2218
        %v2322 = vunpack.c.h.b16 %v2218
        %v2323 = vunpack.c.l.b16 %v2219
        %v2324 = vunpack.c.l.b16 %v2220
        %v2325 = vunpack.c.h.b16 %v2220
        %v2326 = vunpack.c.l.b16 %v2221
        %v2327 = vunpack.c.h.b16 %v2221
        %v2328 = vunpack.c.l.b16 %v2222
        %v2329 = vunpack.c.l.b16 %v2223
        %v2330 = vunpack.c.h.b16 %v2223
        %v2331 = vunpack.c.l.b16 %v2224
        %v2332 = vunpack.c.h.b16 %v2224
        %v2333 = vunpack.c.l.b16 %v2225
        %v2334 = vunpack.c.l.b16 %v2226
        %v2335 = vunpack.c.h.b16 %v2226
        %v2336 = vunpack.c.l.b16 %v2227
        %v2337 = vunpack.c.h.b16 %v2227
        %v2338 = vunpack.c.l.b16 %v2228
        %v2339 = vunpack.c.l.b16 %v2229
        %v2340 = vunpack.c.h.b16 %v2229
        %v2341 = vunpack.c.l.b16 %v2230
        %v2342 = vunpack.c.h.b16 %v2230
        %v2343 = vunpack.c.l.b16 %v2231
        %v2344 = vpack.c.b16 %v2309, %v2304
        %v2345 = vpack.c.b16 %v2310, %v2305
        %v2346 = vpack.c.b16 %v2311, %v2306
        %v2347 = vpack.c.b16 %v2312, %v2307
        %v2348 = vpack.c.b16 %v2313, %v2308
        %v2349 = vpack.c.b16 %v2319, %v2314
        %v2350 = vpack.c.b16 %v2320, %v2315
        %v2351 = vpack.c.b16 %v2321, %v2316
        %v2352 = vpack.c.b16 %v2322, %v2317
        %v2353 = vpack.c.b16 %v2323, %v2318
        %v2354 = vpack.c.b16 %v2329, %v2324
        %v2355 = vpack.c.b16 %v2330, %v2325
        %v2356 = vpack.c.b16 %v2331, %v2326
        %v2357 = vpack.c.b16 %v2332, %v2327
        %v2358 = vpack.c.b16 %v2333, %v2328
        %v2359 = vpack.c.b16 %v2339, %v2334
        %v2360 = vpack.c.b16 %v2340, %v2335
        %v2361 = vpack.c.b16 %v2341, %v2336
        %v2362 = vpack.c.b16 %v2342, %v2337
        %v2363 = vpack.c.b16 %v2343, %v2338
        %2384 = vmatprep.subr.bf16.mxu0 %v1477
        %2385 = vmatpush1.bf16.msra.mxu0 %v1476
        %2386 = vmatprep.subr.bf16.mxu0 %v1472
        %2387 = vmatpush1.bf16.msra.mxu0 %v1471
        %2388 = vmatprep.subr.bf16.mxu0 %v1432
        %2389 = vmatpush1.bf16.msra.mxu0 %v1431
        %2390 = vmatprep.subr.bf16.mxu0 %v1427
        %2391 = vmatpush1.bf16.msra.mxu0 %v1426
        %2392 = vmatprep.subr.bf16.mxu0 %v1387
        %2393 = vmatpush1.bf16.msra.mxu0 %v1386
        %2394 = vmatprep.subr.bf16.mxu0 %v1382
        %2395 = vmatpush1.bf16.msra.mxu0 %v1381
        %2396 = vmatprep.subr.bf16.mxu0 %v1339
        %2397 = vmatpush1.bf16.msra.mxu0 %v1338
        %2398 = vmatprep.subr.bf16.mxu0 %v1333
        %2399 = vmatpush1.bf16.msra.mxu0 %v1332
        %2400 = vmatprep.subr.bf16.mxu0 %v1657
        %2401 = vmatpush2.bf16.msra.mxu0 %v1656
        %2402 = vmatprep.subr.bf16.mxu0 %v1652
        %2403 = vmatpush2.bf16.msra.mxu0 %v1651
        %2404 = vmatprep.subr.bf16.mxu0 %v1612
        %2405 = vmatpush2.bf16.msra.mxu0 %v1611
        %2406 = vmatprep.subr.bf16.mxu0 %v1607
        %2407 = vmatpush2.bf16.msra.mxu0 %v1606
        %2408 = vmatprep.subr.bf16.mxu0 %v1567
        %2409 = vmatpush2.bf16.msra.mxu0 %v1566
        %2410 = vmatprep.subr.bf16.mxu0 %v1562
        %2411 = vmatpush2.bf16.msra.mxu0 %v1561
        %2412 = vmatprep.subr.bf16.mxu0 %v1522
        %2413 = vmatpush2.bf16.msra.mxu0 %v1521
        %2414 = vmatprep.subr.bf16.mxu0 %v1517
        %2415 = vmatpush2.bf16.msra.mxu0 %v1516
        %2416 = vmatprep.mubr.bf16.mxu0 %v2345
        %2417 = vmatmul.mubr.bf16.gmra.mxu0 %v2344
        %v2418 = vpop.f32.mrf.mxu0
        %v2419 = vadd.f32 %v2243, %v2418
        %v2420 = vpop.f32.mrf.mxu0
        %v2421 = vadd.f32 %v2243, %v2420
        %v2422 = vpop.f32.mrf.mxu0
        %v2423 = vadd.f32 %v2248, %v2422
        %v2424 = vpop.f32.mrf.mxu0
        %v2425 = vadd.f32 %v2248, %v2424
        %2426 = vmatprep.mubr.bf16.mxu0 %v2350
        %2427 = vmatmul.mubr.bf16.gmra.mxu0 %v2349
        %v2428 = vpop.f32.mrf.mxu0
        %v2429 = vadd.f32 %v2253, %v2428
        %v2430 = vpop.f32.mrf.mxu0
        %v2431 = vadd.f32 %v2253, %v2430
        %v2432 = vpop.f32.mrf.mxu0
        %v2433 = vadd.f32 %v2258, %v2432
        %v2434 = vpop.f32.mrf.mxu0
        %v2435 = vadd.f32 %v2258, %v2434
        %2436 = vmatprep.mubr.bf16.mxu0 %v2355
        %2437 = vmatmul.mubr.bf16.gmra.mxu0 %v2354
        %v2438 = vpop.f32.mrf.mxu0
        %v2439 = vadd.f32 %v2263, %v2438
        %v2440 = vpop.f32.mrf.mxu0
        %v2441 = vadd.f32 %v2263, %v2440
        %v2442 = vpop.f32.mrf.mxu0
        %v2443 = vadd.f32 %v2268, %v2442
        %v2444 = vpop.f32.mrf.mxu0
        %v2445 = vadd.f32 %v2268, %v2444
        %2446 = vmatprep.mubr.bf16.mxu0 %v2360
        %2447 = vmatmul.mubr.bf16.gmra.mxu0 %v2359
        %v2448 = vpop.f32.mrf.mxu0
        %v2449 = vadd.f32 %v2273, %v2448
        %v2450 = vpop.f32.mrf.mxu0
        %v2451 = vadd.f32 %v2273, %v2450
        %v2452 = vpop.f32.mrf.mxu0
        %v2453 = vadd.f32 %v2278, %v2452
        %v2454 = vpop.f32.mrf.mxu0
        %v2455 = vadd.f32 %v2278, %v2454
        %2456 = vdwg.mxu0
        %2457 = vmatprep.subr.bf16.mxu0 %v1837
        %2458 = vmatpush1.bf16.msra.mxu0 %v1836
        %2459 = vmatprep.subr.bf16.mxu0 %v1832
        %2460 = vmatpush1.bf16.msra.mxu0 %v1831
        %2461 = vmatprep.subr.bf16.mxu0 %v1792
        %2462 = vmatpush1.bf16.msra.mxu0 %v1791
        %2463 = vmatprep.subr.bf16.mxu0 %v1787
        %2464 = vmatpush1.bf16.msra.mxu0 %v1786
        %2465 = vmatprep.subr.bf16.mxu0 %v1747
        %2466 = vmatpush1.bf16.msra.mxu0 %v1746
        %2467 = vmatprep.subr.bf16.mxu0 %v1742
        %2468 = vmatpush1.bf16.msra.mxu0 %v1741
        %2469 = vmatprep.subr.bf16.mxu0 %v1702
        %2470 = vmatpush1.bf16.msra.mxu0 %v1701
        %2471 = vmatprep.subr.bf16.mxu0 %v1697
        %2472 = vmatpush1.bf16.msra.mxu0 %v1696
        %2473 = vmatprep.subr.bf16.mxu0 %v2017
        %2474 = vmatpush2.bf16.msra.mxu0 %v2016
        %2475 = vmatprep.subr.bf16.mxu0 %v2012
        %2476 = vmatpush2.bf16.msra.mxu0 %v2011
        %2477 = vmatprep.subr.bf16.mxu0 %v1972
        %2478 = vmatpush2.bf16.msra.mxu0 %v1971
        %2479 = vmatprep.subr.bf16.mxu0 %v1967
        %2480 = vmatpush2.bf16.msra.mxu0 %v1966
        %2481 = vmatprep.subr.bf16.mxu0 %v1927
        %2482 = vmatpush2.bf16.msra.mxu0 %v1926
        %2483 = vmatprep.subr.bf16.mxu0 %v1922
        %2484 = vmatpush2.bf16.msra.mxu0 %v1921
        %2485 = vmatprep.subr.bf16.mxu0 %v1882
        %2486 = vmatpush2.bf16.msra.mxu0 %v1881
        %2487 = vmatprep.subr.bf16.mxu0 %v1877
        %2488 = vmatpush2.bf16.msra.mxu0 %v1876
        %2489 = vmatprep.mubr.bf16.mxu0 %v2347
        %2490 = vmatmul.mubr.bf16.gmra.mxu0 %v2346
        %v2491 = vpop.f32.mrf.mxu0
        %v2492 = vadd.f32 %v2419, %v2491
        %v2493 = vpop.f32.mrf.mxu0
        %v2494 = vadd.f32 %v2421, %v2493
        %v2495 = vpop.f32.mrf.mxu0
        %v2496 = vadd.f32 %v2423, %v2495
        %v2497 = vpop.f32.mrf.mxu0
        %v2498 = vadd.f32 %v2425, %v2497
        %2499 = vmatprep.mubr.bf16.mxu0 %v2352
        %2500 = vmatmul.mubr.bf16.gmra.mxu0 %v2351
        %v2501 = vpop.f32.mrf.mxu0
        %v2502 = vadd.f32 %v2429, %v2501
        %v2503 = vpop.f32.mrf.mxu0
        %v2504 = vadd.f32 %v2431, %v2503
        %v2505 = vpop.f32.mrf.mxu0
        %v2506 = vadd.f32 %v2433, %v2505
        %v2507 = vpop.f32.mrf.mxu0
        %v2508 = vadd.f32 %v2435, %v2507
        %2509 = vmatprep.mubr.bf16.mxu0 %v2357
        %2510 = vmatmul.mubr.bf16.gmra.mxu0 %v2356
        %v2511 = vpop.f32.mrf.mxu0
        %v2512 = vadd.f32 %v2439, %v2511
        %v2513 = vpop.f32.mrf.mxu0
        %v2514 = vadd.f32 %v2441, %v2513
        %v2515 = vpop.f32.mrf.mxu0
        %v2516 = vadd.f32 %v2443, %v2515
        %v2517 = vpop.f32.mrf.mxu0
        %v2518 = vadd.f32 %v2445, %v2517
        %2519 = vmatprep.mubr.bf16.mxu0 %v2362
        %2520 = vmatmul.mubr.bf16.gmra.mxu0 %v2361
        %v2521 = vpop.f32.mrf.mxu0
        %v2522 = vadd.f32 %v2449, %v2521
        %v2523 = vpop.f32.mrf.mxu0
        %v2524 = vadd.f32 %v2451, %v2523
        %v2525 = vpop.f32.mrf.mxu0
        %v2526 = vadd.f32 %v2453, %v2525
        %v2527 = vpop.f32.mrf.mxu0
        %v2528 = vadd.f32 %v2455, %v2527
        %2529 = vdwg.mxu0
        %2530 = vmatprep.subr.bf16.mxu0 %v2164
        %2531 = vmatpush1.bf16.msra.mxu0 %v2163
        %2532 = vmatprep.subr.bf16.mxu0 %v2159
        %2533 = vmatpush1.bf16.msra.mxu0 %v2158
        %2534 = vmatprep.subr.bf16.mxu0 %v2154
        %2535 = vmatpush1.bf16.msra.mxu0 %v2153
        %2536 = vmatprep.subr.bf16.mxu0 %v2149
        %2537 = vmatpush1.bf16.msra.mxu0 %v2148
        %2538 = vmatprep.subr.bf16.mxu0 %v2144
        %2539 = vmatpush1.bf16.msra.mxu0 %v2143
        %2540 = vmatprep.subr.bf16.mxu0 %v2139
        %2541 = vmatpush1.bf16.msra.mxu0 %v2138
        %2542 = vmatprep.subr.bf16.mxu0 %v2134
        %2543 = vmatpush1.bf16.msra.mxu0 %v2133
        %2544 = vmatprep.subr.bf16.mxu0 %v2129
        %2545 = vmatpush1.bf16.msra.mxu0 %v2128
        %2546 = vmatprep.subr.bf16.mxu0 0
        %2547 = vmatpush2.bf16.msra.mxu0 0
        %2548 = vmatprep.subr.bf16.mxu0 0
        %2549 = vmatpush2.bf16.msra.mxu0 0
        %2550 = vmatprep.subr.bf16.mxu0 0
        %2551 = vmatpush2.bf16.msra.mxu0 0
        %2552 = vmatprep.subr.bf16.mxu0 0
        %2553 = vmatpush2.bf16.msra.mxu0 0
        %2554 = vmatprep.subr.bf16.mxu0 0
        %2555 = vmatpush2.bf16.msra.mxu0 0
        %2556 = vmatprep.subr.bf16.mxu0 0
        %2557 = vmatpush2.bf16.msra.mxu0 0
        %2558 = vmatprep.subr.bf16.mxu0 0
        %2559 = vmatpush2.bf16.msra.mxu0 0
        %2560 = vmatprep.subr.bf16.mxu0 0
        %2561 = vmatpush2.bf16.msra.mxu0 0
        %2562 = vmatprep.mubr.bf16.mxu0 0
        %2563 = vmatmul.mubr.bf16.gmra.mxu0 %v2348
        %v2564 = vpop.f32.mrf.mxu0
        %v2565 = vadd.f32 %v2492, %v2564
        %v2566 = vpop.f32.mrf.mxu0
        %v2567 = vadd.f32 %v2494, %v2566
        %v2568 = vpop.f32.mrf.mxu0
        %v2569 = vadd.f32 %v2496, %v2568
        %v2570 = vpop.f32.mrf.mxu0
        %v2571 = vadd.f32 %v2498, %v2570
        %2572 = vmatprep.mubr.bf16.mxu0 0
        %2573 = vmatmul.mubr.bf16.gmra.mxu0 %v2353
        %v2574 = vpop.f32.mrf.mxu0
        %v2575 = vadd.f32 %v2502, %v2574
        %v2576 = vpop.f32.mrf.mxu0
        %v2577 = vadd.f32 %v2504, %v2576
        %v2578 = vpop.f32.mrf.mxu0
        %v2579 = vadd.f32 %v2506, %v2578
        %v2580 = vpop.f32.mrf.mxu0
        %v2581 = vadd.f32 %v2508, %v2580
        %2582 = vmatprep.mubr.bf16.mxu0 0
        %2583 = vmatmul.mubr.bf16.gmra.mxu0 %v2358
        %v2584 = vpop.f32.mrf.mxu0
        %v2585 = vadd.f32 %v2512, %v2584
        %v2586 = vpop.f32.mrf.mxu0
        %v2587 = vadd.f32 %v2514, %v2586
        %v2588 = vpop.f32.mrf.mxu0
        %v2589 = vadd.f32 %v2516, %v2588
        %v2590 = vpop.f32.mrf.mxu0
        %v2591 = vadd.f32 %v2518, %v2590
        %2592 = vmatprep.mubr.bf16.mxu0 0
        %2593 = vmatmul.mubr.bf16.gmra.mxu0 %v2363
        %v2594 = vpop.f32.mrf.mxu0
        %v2595 = vadd.f32 %v2522, %v2594
        %v2596 = vpop.f32.mrf.mxu0
        %v2597 = vadd.f32 %v2524, %v2596
        %v2598 = vpop.f32.mrf.mxu0
        %v2599 = vadd.f32 %v2526, %v2598
        %v2600 = vpop.f32.mrf.mxu0
        %v2601 = vadd.f32 %v2528, %v2600
        %2602 = vdwg.mxu0
        %2603 = vmatprep.subr.bf16.mxu0 %v1479
        %2604 = vmatpush1.bf16.msra.mxu0 %v1478
        %2605 = vmatprep.subr.bf16.mxu0 %v1474
        %2606 = vmatpush1.bf16.msra.mxu0 %v1473
        %2607 = vmatprep.subr.bf16.mxu0 %v1434
        %2608 = vmatpush1.bf16.msra.mxu0 %v1433
        %2609 = vmatprep.subr.bf16.mxu0 %v1429
        %2610 = vmatpush1.bf16.msra.mxu0 %v1428
        %2611 = vmatprep.subr.bf16.mxu0 %v1389
        %2612 = vmatpush1.bf16.msra.mxu0 %v1388
        %2613 = vmatprep.subr.bf16.mxu0 %v1384
        %2614 = vmatpush1.bf16.msra.mxu0 %v1383
        %2615 = vmatprep.subr.bf16.mxu0 %v1341
        %2616 = vmatpush1.bf16.msra.mxu0 %v1340
        %2617 = vmatprep.subr.bf16.mxu0 %v1335
        %2618 = vmatpush1.bf16.msra.mxu0 %v1334
        %2619 = vmatprep.subr.bf16.mxu0 %v1659
        %2620 = vmatpush2.bf16.msra.mxu0 %v1658
        %2621 = vmatprep.subr.bf16.mxu0 %v1654
        %2622 = vmatpush2.bf16.msra.mxu0 %v1653
        %2623 = vmatprep.subr.bf16.mxu0 %v1614
        %2624 = vmatpush2.bf16.msra.mxu0 %v1613
        %2625 = vmatprep.subr.bf16.mxu0 %v1609
        %2626 = vmatpush2.bf16.msra.mxu0 %v1608
        %2627 = vmatprep.subr.bf16.mxu0 %v1569
        %2628 = vmatpush2.bf16.msra.mxu0 %v1568
        %2629 = vmatprep.subr.bf16.mxu0 %v1564
        %2630 = vmatpush2.bf16.msra.mxu0 %v1563
        %2631 = vmatprep.subr.bf16.mxu0 %v1524
        %2632 = vmatpush2.bf16.msra.mxu0 %v1523
        %2633 = vmatprep.subr.bf16.mxu0 %v1519
        %2634 = vmatpush2.bf16.msra.mxu0 %v1518
        %2635 = vmatprep.mubr.bf16.mxu0 %v2345
        %2636 = vmatmul.mubr.bf16.gmra.mxu0 %v2344
        %v2637 = vpop.f32.mrf.mxu0
        %v2638 = vadd.f32 %v2243, %v2637
        %v2639 = vpop.f32.mrf.mxu0
        %v2640 = vadd.f32 %v2243, %v2639
        %v2641 = vpop.f32.mrf.mxu0
        %v2642 = vadd.f32 %v2248, %v2641
        %v2643 = vpop.f32.mrf.mxu0
        %v2644 = vadd.f32 %v2248, %v2643
        %2645 = vmatprep.mubr.bf16.mxu0 %v2350
        %2646 = vmatmul.mubr.bf16.gmra.mxu0 %v2349
        %v2647 = vpop.f32.mrf.mxu0
        %v2648 = vadd.f32 %v2253, %v2647
        %v2649 = vpop.f32.mrf.mxu0
        %v2650 = vadd.f32 %v2253, %v2649
        %v2651 = vpop.f32.mrf.mxu0
        %v2652 = vadd.f32 %v2258, %v2651
        %v2653 = vpop.f32.mrf.mxu0
        %v2654 = vadd.f32 %v2258, %v2653
        %2655 = vmatprep.mubr.bf16.mxu0 %v2355
        %2656 = vmatmul.mubr.bf16.gmra.mxu0 %v2354
        %v2657 = vpop.f32.mrf.mxu0
        %v2658 = vadd.f32 %v2263, %v2657
        %v2659 = vpop.f32.mrf.mxu0
        %v2660 = vadd.f32 %v2263, %v2659
        %v2661 = vpop.f32.mrf.mxu0
        %v2662 = vadd.f32 %v2268, %v2661
        %v2663 = vpop.f32.mrf.mxu0
        %v2664 = vadd.f32 %v2268, %v2663
        %2665 = vmatprep.mubr.bf16.mxu0 %v2360
        %2666 = vmatmul.mubr.bf16.gmra.mxu0 %v2359
        %v2667 = vpop.f32.mrf.mxu0
        %v2668 = vadd.f32 %v2273, %v2667
        %v2669 = vpop.f32.mrf.mxu0
        %v2670 = vadd.f32 %v2273, %v2669
        %v2671 = vpop.f32.mrf.mxu0
        %v2672 = vadd.f32 %v2278, %v2671
        %v2673 = vpop.f32.mrf.mxu0
        %v2674 = vadd.f32 %v2278, %v2673
        %2675 = vdwg.mxu0
        %2676 = vmatprep.subr.bf16.mxu0 %v1839
        %2677 = vmatpush1.bf16.msra.mxu0 %v1838
        %2678 = vmatprep.subr.bf16.mxu0 %v1834
        %2679 = vmatpush1.bf16.msra.mxu0 %v1833
        %2680 = vmatprep.subr.bf16.mxu0 %v1794
        %2681 = vmatpush1.bf16.msra.mxu0 %v1793
        %2682 = vmatprep.subr.bf16.mxu0 %v1789
        %2683 = vmatpush1.bf16.msra.mxu0 %v1788
        %2684 = vmatprep.subr.bf16.mxu0 %v1749
        %2685 = vmatpush1.bf16.msra.mxu0 %v1748
        %2686 = vmatprep.subr.bf16.mxu0 %v1744
        %2687 = vmatpush1.bf16.msra.mxu0 %v1743
        %2688 = vmatprep.subr.bf16.mxu0 %v1704
        %2689 = vmatpush1.bf16.msra.mxu0 %v1703
        %2690 = vmatprep.subr.bf16.mxu0 %v1699
        %2691 = vmatpush1.bf16.msra.mxu0 %v1698
        %2692 = vmatprep.subr.bf16.mxu0 %v2019
        %2693 = vmatpush2.bf16.msra.mxu0 %v2018
        %2694 = vmatprep.subr.bf16.mxu0 %v2014
        %2695 = vmatpush2.bf16.msra.mxu0 %v2013
        %2696 = vmatprep.subr.bf16.mxu0 %v1974
        %2697 = vmatpush2.bf16.msra.mxu0 %v1973
        %2698 = vmatprep.subr.bf16.mxu0 %v1969
        %2699 = vmatpush2.bf16.msra.mxu0 %v1968
        %2700 = vmatprep.subr.bf16.mxu0 %v1929
        %2701 = vmatpush2.bf16.msra.mxu0 %v1928
        %2702 = vmatprep.subr.bf16.mxu0 %v1924
        %2703 = vmatpush2.bf16.msra.mxu0 %v1923
        %2704 = vmatprep.subr.bf16.mxu0 %v1884
        %2705 = vmatpush2.bf16.msra.mxu0 %v1883
        %2706 = vmatprep.subr.bf16.mxu0 %v1879
        %2707 = vmatpush2.bf16.msra.mxu0 %v1878
        %2708 = vmatprep.mubr.bf16.mxu0 %v2347
        %2709 = vmatmul.mubr.bf16.gmra.mxu0 %v2346
        %v2710 = vpop.f32.mrf.mxu0
        %v2711 = vadd.f32 %v2638, %v2710
        %v2712 = vpop.f32.mrf.mxu0
        %v2713 = vadd.f32 %v2640, %v2712
        %v2714 = vpop.f32.mrf.mxu0
        %v2715 = vadd.f32 %v2642, %v2714
        %v2716 = vpop.f32.mrf.mxu0
        %v2717 = vadd.f32 %v2644, %v2716
        %2718 = vmatprep.mubr.bf16.mxu0 %v2352
        %2719 = vmatmul.mubr.bf16.gmra.mxu0 %v2351
        %v2720 = vpop.f32.mrf.mxu0
        %v2721 = vadd.f32 %v2648, %v2720
        %v2722 = vpop.f32.mrf.mxu0
        %v2723 = vadd.f32 %v2650, %v2722
        %v2724 = vpop.f32.mrf.mxu0
        %v2725 = vadd.f32 %v2652, %v2724
        %v2726 = vpop.f32.mrf.mxu0
        %v2727 = vadd.f32 %v2654, %v2726
        %2728 = vmatprep.mubr.bf16.mxu0 %v2357
        %2729 = vmatmul.mubr.bf16.gmra.mxu0 %v2356
        %v2730 = vpop.f32.mrf.mxu0
        %v2731 = vadd.f32 %v2658, %v2730
        %v2732 = vpop.f32.mrf.mxu0
        %v2733 = vadd.f32 %v2660, %v2732
        %v2734 = vpop.f32.mrf.mxu0
        %v2735 = vadd.f32 %v2662, %v2734
        %v2736 = vpop.f32.mrf.mxu0
        %v2737 = vadd.f32 %v2664, %v2736
        %2738 = vmatprep.mubr.bf16.mxu0 %v2362
        %2739 = vmatmul.mubr.bf16.gmra.mxu0 %v2361
        %v2740 = vpop.f32.mrf.mxu0
        %v2741 = vadd.f32 %v2668, %v2740
        %v2742 = vpop.f32.mrf.mxu0
        %v2743 = vadd.f32 %v2670, %v2742
        %v2744 = vpop.f32.mrf.mxu0
        %v2745 = vadd.f32 %v2672, %v2744
        %v2746 = vpop.f32.mrf.mxu0
        %v2747 = vadd.f32 %v2674, %v2746
        %2748 = vdwg.mxu0
        %2749 = vmatprep.subr.bf16.mxu0 %v2166
        %2750 = vmatpush1.bf16.msra.mxu0 %v2165
        %2751 = vmatprep.subr.bf16.mxu0 %v2161
        %2752 = vmatpush1.bf16.msra.mxu0 %v2160
        %2753 = vmatprep.subr.bf16.mxu0 %v2156
        %2754 = vmatpush1.bf16.msra.mxu0 %v2155
        %2755 = vmatprep.subr.bf16.mxu0 %v2151
        %2756 = vmatpush1.bf16.msra.mxu0 %v2150
        %2757 = vmatprep.subr.bf16.mxu0 %v2146
        %2758 = vmatpush1.bf16.msra.mxu0 %v2145
        %2759 = vmatprep.subr.bf16.mxu0 %v2141
        %2760 = vmatpush1.bf16.msra.mxu0 %v2140
        %2761 = vmatprep.subr.bf16.mxu0 %v2136
        %2762 = vmatpush1.bf16.msra.mxu0 %v2135
        %2763 = vmatprep.subr.bf16.mxu0 %v2131
        %2764 = vmatpush1.bf16.msra.mxu0 %v2130
        %2765 = vmatprep.subr.bf16.mxu0 0
        %2766 = vmatpush2.bf16.msra.mxu0 0
        %2767 = vmatprep.subr.bf16.mxu0 0
        %2768 = vmatpush2.bf16.msra.mxu0 0
        %2769 = vmatprep.subr.bf16.mxu0 0
        %2770 = vmatpush2.bf16.msra.mxu0 0
        %2771 = vmatprep.subr.bf16.mxu0 0
        %2772 = vmatpush2.bf16.msra.mxu0 0
        %2773 = vmatprep.subr.bf16.mxu0 0
        %2774 = vmatpush2.bf16.msra.mxu0 0
        %2775 = vmatprep.subr.bf16.mxu0 0
        %2776 = vmatpush2.bf16.msra.mxu0 0
        %2777 = vmatprep.subr.bf16.mxu0 0
        %2778 = vmatpush2.bf16.msra.mxu0 0
        %2779 = vmatprep.subr.bf16.mxu0 0
        %2780 = vmatpush2.bf16.msra.mxu0 0
        %2781 = vmatprep.mubr.bf16.mxu0 0
        %2782 = vmatmul.mubr.bf16.gmra.mxu0 %v2348
        %v2783 = vpop.f32.mrf.mxu0
        %v2784 = vadd.f32 %v2711, %v2783
        %v2785 = vpop.f32.mrf.mxu0
        %v2786 = vadd.f32 %v2713, %v2785
        %v2787 = vpop.f32.mrf.mxu0
        %v2788 = vadd.f32 %v2715, %v2787
        %v2789 = vpop.f32.mrf.mxu0
        %v2790 = vadd.f32 %v2717, %v2789
        %2791 = vmatprep.mubr.bf16.mxu0 0
        %2792 = vmatmul.mubr.bf16.gmra.mxu0 %v2353
        %v2793 = vpop.f32.mrf.mxu0
        %v2794 = vadd.f32 %v2721, %v2793
        %v2795 = vpop.f32.mrf.mxu0
        %v2796 = vadd.f32 %v2723, %v2795
        %v2797 = vpop.f32.mrf.mxu0
        %v2798 = vadd.f32 %v2725, %v2797
        %v2799 = vpop.f32.mrf.mxu0
        %v2800 = vadd.f32 %v2727, %v2799
        %2801 = vmatprep.mubr.bf16.mxu0 0
        %2802 = vmatmul.mubr.bf16.gmra.mxu0 %v2358
        %v2803 = vpop.f32.mrf.mxu0
        %v2804 = vadd.f32 %v2731, %v2803
        %v2805 = vpop.f32.mrf.mxu0
        %v2806 = vadd.f32 %v2733, %v2805
        %v2807 = vpop.f32.mrf.mxu0
        %v2808 = vadd.f32 %v2735, %v2807
        %v2809 = vpop.f32.mrf.mxu0
        %v2810 = vadd.f32 %v2737, %v2809
        %2811 = vmatprep.mubr.bf16.mxu0 0
        %2812 = vmatmul.mubr.bf16.gmra.mxu0 %v2363
        %v2813 = vpop.f32.mrf.mxu0
        %v2814 = vadd.f32 %v2741, %v2813
        %v2815 = vpop.f32.mrf.mxu0
        %v2816 = vadd.f32 %v2743, %v2815
        %v2817 = vpop.f32.mrf.mxu0
        %v2818 = vadd.f32 %v2745, %v2817
        %v2819 = vpop.f32.mrf.mxu0
        %v2820 = vadd.f32 %v2747, %v2819
        %2821 = vdwg.mxu0
        %2822 = vmatprep.subr.bf16.mxu0 0
        %2823 = vmatpush1.bf16.msra.mxu0 %v1480
        %2824 = vmatprep.subr.bf16.mxu0 0
        %2825 = vmatpush1.bf16.msra.mxu0 %v1475
        %2826 = vmatprep.subr.bf16.mxu0 0
        %2827 = vmatpush1.bf16.msra.mxu0 %v1435
        %2828 = vmatprep.subr.bf16.mxu0 0
        %2829 = vmatpush1.bf16.msra.mxu0 %v1430
        %2830 = vmatprep.subr.bf16.mxu0 0
        %2831 = vmatpush1.bf16.msra.mxu0 %v1390
        %2832 = vmatprep.subr.bf16.mxu0 0
        %2833 = vmatpush1.bf16.msra.mxu0 %v1385
        %2834 = vmatprep.subr.bf16.mxu0 0
        %2835 = vmatpush1.bf16.msra.mxu0 %v1342
        %2836 = vmatprep.subr.bf16.mxu0 0
        %2837 = vmatpush1.bf16.msra.mxu0 %v1336
        %2838 = vmatprep.subr.bf16.mxu0 0
        %2839 = vmatpush2.bf16.msra.mxu0 %v1660
        %2840 = vmatprep.subr.bf16.mxu0 0
        %2841 = vmatpush2.bf16.msra.mxu0 %v1655
        %2842 = vmatprep.subr.bf16.mxu0 0
        %2843 = vmatpush2.bf16.msra.mxu0 %v1615
        %2844 = vmatprep.subr.bf16.mxu0 0
        %2845 = vmatpush2.bf16.msra.mxu0 %v1610
        %2846 = vmatprep.subr.bf16.mxu0 0
        %2847 = vmatpush2.bf16.msra.mxu0 %v1570
        %2848 = vmatprep.subr.bf16.mxu0 0
        %2849 = vmatpush2.bf16.msra.mxu0 %v1565
        %2850 = vmatprep.subr.bf16.mxu0 0
        %2851 = vmatpush2.bf16.msra.mxu0 %v1525
        %2852 = vmatprep.subr.bf16.mxu0 0
        %2853 = vmatpush2.bf16.msra.mxu0 %v1520
        %2854 = vmatprep.mubr.bf16.mxu0 %v2345
        %2855 = vmatmul.mubr.bf16.gmra.mxu0 %v2344
        %v2856 = vpop.f32.mrf.mxu0
        %v2857 = vadd.f32 %v2243, %v2856
        %v2858 = vpop.f32.mrf.mxu0
        %v2859 = vpop.f32.mrf.mxu0
        %v2860 = vadd.f32 %v2248, %v2859
        %v2861 = vpop.f32.mrf.mxu0
        %2862 = vmatprep.mubr.bf16.mxu0 %v2350
        %2863 = vmatmul.mubr.bf16.gmra.mxu0 %v2349
        %v2864 = vpop.f32.mrf.mxu0
        %v2865 = vadd.f32 %v2253, %v2864
        %v2866 = vpop.f32.mrf.mxu0
        %v2867 = vpop.f32.mrf.mxu0
        %v2868 = vadd.f32 %v2258, %v2867
        %v2869 = vpop.f32.mrf.mxu0
        %2870 = vmatprep.mubr.bf16.mxu0 %v2355
        %2871 = vmatmul.mubr.bf16.gmra.mxu0 %v2354
        %v2872 = vpop.f32.mrf.mxu0
        %v2873 = vadd.f32 %v2263, %v2872
        %v2874 = vpop.f32.mrf.mxu0
        %v2875 = vpop.f32.mrf.mxu0
        %v2876 = vadd.f32 %v2268, %v2875
        %v2877 = vpop.f32.mrf.mxu0
        %2878 = vmatprep.mubr.bf16.mxu0 %v2360
        %2879 = vmatmul.mubr.bf16.gmra.mxu0 %v2359
        %v2880 = vpop.f32.mrf.mxu0
        %v2881 = vadd.f32 %v2273, %v2880
        %v2882 = vpop.f32.mrf.mxu0
        %v2883 = vpop.f32.mrf.mxu0
        %v2884 = vadd.f32 %v2278, %v2883
        %v2885 = vpop.f32.mrf.mxu0
        %2886 = vdwg.mxu0
        %2887 = vmatprep.subr.bf16.mxu0 0
        %2888 = vmatpush1.bf16.msra.mxu0 %v1840
        %2889 = vmatprep.subr.bf16.mxu0 0
        %2890 = vmatpush1.bf16.msra.mxu0 %v1835
        %2891 = vmatprep.subr.bf16.mxu0 0
        %2892 = vmatpush1.bf16.msra.mxu0 %v1795
        %2893 = vmatprep.subr.bf16.mxu0 0
        %2894 = vmatpush1.bf16.msra.mxu0 %v1790
        %2895 = vmatprep.subr.bf16.mxu0 0
        %2896 = vmatpush1.bf16.msra.mxu0 %v1750
        %2897 = vmatprep.subr.bf16.mxu0 0
        %2898 = vmatpush1.bf16.msra.mxu0 %v1745
        %2899 = vmatprep.subr.bf16.mxu0 0
        %2900 = vmatpush1.bf16.msra.mxu0 %v1705
        %2901 = vmatprep.subr.bf16.mxu0 0
        %2902 = vmatpush1.bf16.msra.mxu0 %v1700
        %2903 = vmatprep.subr.bf16.mxu0 0
        %2904 = vmatpush2.bf16.msra.mxu0 %v2020
        %2905 = vmatprep.subr.bf16.mxu0 0
        %2906 = vmatpush2.bf16.msra.mxu0 %v2015
        %2907 = vmatprep.subr.bf16.mxu0 0
        %2908 = vmatpush2.bf16.msra.mxu0 %v1975
        %2909 = vmatprep.subr.bf16.mxu0 0
        %2910 = vmatpush2.bf16.msra.mxu0 %v1970
        %2911 = vmatprep.subr.bf16.mxu0 0
        %2912 = vmatpush2.bf16.msra.mxu0 %v1930
        %2913 = vmatprep.subr.bf16.mxu0 0
        %2914 = vmatpush2.bf16.msra.mxu0 %v1925
        %2915 = vmatprep.subr.bf16.mxu0 0
        %2916 = vmatpush2.bf16.msra.mxu0 %v1885
        %2917 = vmatprep.subr.bf16.mxu0 0
        %2918 = vmatpush2.bf16.msra.mxu0 %v1880
        %2919 = vmatprep.mubr.bf16.mxu0 %v2347
        %2920 = vmatmul.mubr.bf16.gmra.mxu0 %v2346
        %v2921 = vpop.f32.mrf.mxu0
        %v2922 = vadd.f32 %v2857, %v2921
        %v2923 = vpop.f32.mrf.mxu0
        %v2924 = vpop.f32.mrf.mxu0
        %v2925 = vadd.f32 %v2860, %v2924
        %v2926 = vpop.f32.mrf.mxu0
        %2927 = vmatprep.mubr.bf16.mxu0 %v2352
        %2928 = vmatmul.mubr.bf16.gmra.mxu0 %v2351
        %v2929 = vpop.f32.mrf.mxu0
        %v2930 = vadd.f32 %v2865, %v2929
        %v2931 = vpop.f32.mrf.mxu0
        %v2932 = vpop.f32.mrf.mxu0
        %v2933 = vadd.f32 %v2868, %v2932
        %v2934 = vpop.f32.mrf.mxu0
        %2935 = vmatprep.mubr.bf16.mxu0 %v2357
        %2936 = vmatmul.mubr.bf16.gmra.mxu0 %v2356
        %v2937 = vpop.f32.mrf.mxu0
        %v2938 = vadd.f32 %v2873, %v2937
        %v2939 = vpop.f32.mrf.mxu0
        %v2940 = vpop.f32.mrf.mxu0
        %v2941 = vadd.f32 %v2876, %v2940
        %v2942 = vpop.f32.mrf.mxu0
        %2943 = vmatprep.mubr.bf16.mxu0 %v2362
        %2944 = vmatmul.mubr.bf16.gmra.mxu0 %v2361
        %v2945 = vpop.f32.mrf.mxu0
        %v2946 = vadd.f32 %v2881, %v2945
        %v2947 = vpop.f32.mrf.mxu0
        %v2948 = vpop.f32.mrf.mxu0
        %v2949 = vadd.f32 %v2884, %v2948
        %v2950 = vpop.f32.mrf.mxu0
        %2951 = vdwg.mxu0
        %2952 = vmatprep.subr.bf16.mxu0 0
        %2953 = vmatpush1.bf16.msra.mxu0 %v2167
        %2954 = vmatprep.subr.bf16.mxu0 0
        %2955 = vmatpush1.bf16.msra.mxu0 %v2162
        %2956 = vmatprep.subr.bf16.mxu0 0
        %2957 = vmatpush1.bf16.msra.mxu0 %v2157
        %2958 = vmatprep.subr.bf16.mxu0 0
        %2959 = vmatpush1.bf16.msra.mxu0 %v2152
        %2960 = vmatprep.subr.bf16.mxu0 0
        %2961 = vmatpush1.bf16.msra.mxu0 %v2147
        %2962 = vmatprep.subr.bf16.mxu0 0
        %2963 = vmatpush1.bf16.msra.mxu0 %v2142
        %2964 = vmatprep.subr.bf16.mxu0 0
        %2965 = vmatpush1.bf16.msra.mxu0 %v2137
        %2966 = vmatprep.subr.bf16.mxu0 0
        %2967 = vmatpush1.bf16.msra.mxu0 %v2132
        %2968 = vmatprep.subr.bf16.mxu0 0
        %2969 = vmatpush2.bf16.msra.mxu0 0
        %2970 = vmatprep.subr.bf16.mxu0 0
        %2971 = vmatpush2.bf16.msra.mxu0 0
        %2972 = vmatprep.subr.bf16.mxu0 0
        %2973 = vmatpush2.bf16.msra.mxu0 0
        %2974 = vmatprep.subr.bf16.mxu0 0
        %2975 = vmatpush2.bf16.msra.mxu0 0
        %2976 = vmatprep.subr.bf16.mxu0 0
        %2977 = vmatpush2.bf16.msra.mxu0 0
        %2978 = vmatprep.subr.bf16.mxu0 0
        %2979 = vmatpush2.bf16.msra.mxu0 0
        %2980 = vmatprep.subr.bf16.mxu0 0
        %2981 = vmatpush2.bf16.msra.mxu0 0
        %2982 = vmatprep.subr.bf16.mxu0 0
        %2983 = vmatpush2.bf16.msra.mxu0 0
        %2984 = vmatprep.mubr.bf16.mxu0 0
        %2985 = vmatmul.mubr.bf16.gmra.mxu0 %v2348
        %v2986 = vpop.f32.mrf.mxu0
        %v2987 = vadd.f32 %v2922, %v2986
        %v2988 = vpop.f32.mrf.mxu0
        %v2989 = vpop.f32.mrf.mxu0
        %v2990 = vadd.f32 %v2925, %v2989
        %v2991 = vpop.f32.mrf.mxu0
        %2992 = vmatprep.mubr.bf16.mxu0 0
        %2993 = vmatmul.mubr.bf16.gmra.mxu0 %v2353
        %v2994 = vpop.f32.mrf.mxu0
        %v2995 = vadd.f32 %v2930, %v2994
        %v2996 = vpop.f32.mrf.mxu0
        %v2997 = vpop.f32.mrf.mxu0
        %v2998 = vadd.f32 %v2933, %v2997
        %v2999 = vpop.f32.mrf.mxu0
        %3000 = vmatprep.mubr.bf16.mxu0 0
        %3001 = vmatmul.mubr.bf16.gmra.mxu0 %v2358
        %v3002 = vpop.f32.mrf.mxu0
        %v3003 = vadd.f32 %v2938, %v3002
        %v3004 = vpop.f32.mrf.mxu0
        %v3005 = vpop.f32.mrf.mxu0
        %v3006 = vadd.f32 %v2941, %v3005
        %v3007 = vpop.f32.mrf.mxu0
        %3008 = vmatprep.mubr.bf16.mxu0 0
        %3009 = vmatmul.mubr.bf16.gmra.mxu0 %v2363
        %v3010 = vpop.f32.mrf.mxu0
        %v3011 = vadd.f32 %v2946, %v3010
        %v3012 = vpop.f32.mrf.mxu0
        %v3013 = vpop.f32.mrf.mxu0
        %v3014 = vadd.f32 %v2949, %v3013
        %v3015 = vpop.f32.mrf.mxu0
        %3016 = vdwg.mxu0
        %v3017 = vpack.c.bf16 %v2569, %v2565
        %v3018 = vpack.c.bf16 %v2571, %v2567
        %v3019 = vpack.c.bf16 %v2788, %v2784
        %v3020 = vpack.c.bf16 %v2790, %v2786
        %v3021 = vpack.c.bf16 %v2990, %v2987
        %v3022 = vpack.c.bf16 %v2579, %v2575
        %v3023 = vpack.c.bf16 %v2581, %v2577
        %v3024 = vpack.c.bf16 %v2798, %v2794
        %v3025 = vpack.c.bf16 %v2800, %v2796
        %v3026 = vpack.c.bf16 %v2998, %v2995
        %v3027 = vpack.c.bf16 %v2589, %v2585
        %v3028 = vpack.c.bf16 %v2591, %v2587
        %v3029 = vpack.c.bf16 %v2808, %v2804
        %v3030 = vpack.c.bf16 %v2810, %v2806
        %v3031 = vpack.c.bf16 %v3006, %v3003
        %v3032 = vpack.c.bf16 %v2599, %v2595
        %v3033 = vpack.c.bf16 %v2601, %v2597
        %v3034 = vpack.c.bf16 %v2818, %v2814
        %v3035 = vpack.c.bf16 %v2820, %v2816
        %v3036 = vpack.c.bf16 %v3014, %v3011
        %3057 = vrot.lane.b32.xlu0 %v3017, 127
        %v3058 = vpop.permute.xlu0 %3057
        %3059 = vrot.lane.b32.xlu0 %v3018, 127
        %v3060 = vpop.permute.xlu0 %3059
        %3061 = vrot.lane.b32.xlu0 %v3019, 127
        %v3062 = vpop.permute.xlu0 %3061
        %3063 = vrot.lane.b32.xlu0 %v3020, 127
        %v3064 = vpop.permute.xlu0 %3063
        %3065 = vrot.lane.b32.xlu0 %v3021, 127
        %v3066 = vpop.permute.xlu0 %3065
        %3067 = vrot.lane.b32.xlu0 %v3022, 127
        %v3068 = vpop.permute.xlu0 %3067
        %3069 = vrot.lane.b32.xlu0 %v3023, 127
        %v3070 = vpop.permute.xlu0 %3069
        %3071 = vrot.lane.b32.xlu0 %v3024, 127
        %v3072 = vpop.permute.xlu0 %3071
        %3073 = vrot.lane.b32.xlu0 %v3025, 127
        %v3074 = vpop.permute.xlu0 %3073
        %3075 = vrot.lane.b32.xlu0 %v3026, 127
        %v3076 = vpop.permute.xlu0 %3075
        %3077 = vrot.lane.b32.xlu0 %v3027, 127
        %v3078 = vpop.permute.xlu0 %3077
        %3079 = vrot.lane.b32.xlu0 %v3028, 127
        %v3080 = vpop.permute.xlu0 %3079
        %3081 = vrot.lane.b32.xlu0 %v3029, 127
        %v3082 = vpop.permute.xlu0 %3081
        %3083 = vrot.lane.b32.xlu0 %v3030, 127
        %v3084 = vpop.permute.xlu0 %3083
        %3085 = vrot.lane.b32.xlu0 %v3031, 127
        %v3086 = vpop.permute.xlu0 %3085
        %3087 = vrot.lane.b32.xlu0 %v3032, 127
        %v3088 = vpop.permute.xlu0 %3087
        %3089 = vrot.lane.b32.xlu0 %v3033, 127
        %v3090 = vpop.permute.xlu0 %3089
        %3091 = vrot.lane.b32.xlu0 %v3034, 127
        %v3092 = vpop.permute.xlu0 %3091
        %3093 = vrot.lane.b32.xlu0 %v3035, 127
        %v3094 = vpop.permute.xlu0 %3093
        %3095 = vrot.lane.b32.xlu0 %v3036, 127
        %v3096 = vpop.permute.xlu0 %3095
        %v3097 = vsel %vm1380, %v3058, %v3060
        %v3098 = vsel %vm1380, %v3060, %v3062
        %v3099 = vsel %vm1380, %v3062, %v3064
        %v3100 = vsel %vm1380, %v3064, %v3066
        %v3101 = vsel %vm1380, %v3068, %v3070
        %v3102 = vsel %vm1380, %v3070, %v3072
        %v3103 = vsel %vm1380, %v3072, %v3074
        %v3104 = vsel %vm1380, %v3074, %v3076
        %v3105 = vsel %vm1380, %v3078, %v3080
        %v3106 = vsel %vm1380, %v3080, %v3082
        %v3107 = vsel %vm1380, %v3082, %v3084
        %v3108 = vsel %vm1380, %v3084, %v3086
        %v3109 = vsel %vm1380, %v3088, %v3090
        %v3110 = vsel %vm1380, %v3090, %v3092
        %v3111 = vsel %vm1380, %v3092, %v3094
        %v3112 = vsel %vm1380, %v3094, %v3096
        %3129 = vrot.lane.b32.xlu0 %v3017, 126
        %v3130 = vpop.permute.xlu0 %3129
        %3131 = vrot.lane.b32.xlu0 %v3018, 126
        %v3132 = vpop.permute.xlu0 %3131
        %3133 = vrot.lane.b32.xlu0 %v3019, 126
        %v3134 = vpop.permute.xlu0 %3133
        %3135 = vrot.lane.b32.xlu0 %v3020, 126
        %v3136 = vpop.permute.xlu0 %3135
        %3137 = vrot.lane.b32.xlu0 %v3021, 126
        %v3138 = vpop.permute.xlu0 %3137
        %3139 = vrot.lane.b32.xlu0 %v3022, 126
        %v3140 = vpop.permute.xlu0 %3139
        %3141 = vrot.lane.b32.xlu0 %v3023, 126
        %v3142 = vpop.permute.xlu0 %3141
        %3143 = vrot.lane.b32.xlu0 %v3024, 126
        %v3144 = vpop.permute.xlu0 %3143
        %3145 = vrot.lane.b32.xlu0 %v3025, 126
        %v3146 = vpop.permute.xlu0 %3145
        %3147 = vrot.lane.b32.xlu0 %v3026, 126
        %v3148 = vpop.permute.xlu0 %3147
        %3149 = vrot.lane.b32.xlu0 %v3027, 126
        %v3150 = vpop.permute.xlu0 %3149
        %3151 = vrot.lane.b32.xlu0 %v3028, 126
        %v3152 = vpop.permute.xlu0 %3151
        %3153 = vrot.lane.b32.xlu0 %v3029, 126
        %v3154 = vpop.permute.xlu0 %3153
        %3155 = vrot.lane.b32.xlu0 %v3030, 126
        %v3156 = vpop.permute.xlu0 %3155
        %3157 = vrot.lane.b32.xlu0 %v3031, 126
        %v3158 = vpop.permute.xlu0 %3157
        %3159 = vrot.lane.b32.xlu0 %v3032, 126
        %v3160 = vpop.permute.xlu0 %3159
        %3161 = vrot.lane.b32.xlu0 %v3033, 126
        %v3162 = vpop.permute.xlu0 %3161
        %3163 = vrot.lane.b32.xlu0 %v3034, 126
        %v3164 = vpop.permute.xlu0 %3163
        %3165 = vrot.lane.b32.xlu0 %v3035, 126
        %v3166 = vpop.permute.xlu0 %3165
        %3167 = vrot.lane.b32.xlu0 %v3036, 126
        %v3168 = vpop.permute.xlu0 %3167
        %v3169 = vsel %vm1425, %v3130, %v3132
        %v3170 = vsel %vm1425, %v3132, %v3134
        %v3171 = vsel %vm1425, %v3134, %v3136
        %v3172 = vsel %vm1425, %v3136, %v3138
        %v3173 = vsel %vm1425, %v3140, %v3142
        %v3174 = vsel %vm1425, %v3142, %v3144
        %v3175 = vsel %vm1425, %v3144, %v3146
        %v3176 = vsel %vm1425, %v3146, %v3148
        %v3177 = vsel %vm1425, %v3150, %v3152
        %v3178 = vsel %vm1425, %v3152, %v3154
        %v3179 = vsel %vm1425, %v3154, %v3156
        %v3180 = vsel %vm1425, %v3156, %v3158
        %v3181 = vsel %vm1425, %v3160, %v3162
        %v3182 = vsel %vm1425, %v3162, %v3164
        %v3183 = vsel %vm1425, %v3164, %v3166
        %v3184 = vsel %vm1425, %v3166, %v3168
        %3201 = vrot.lane.b32.xlu0 %v3017, 125
        %v3202 = vpop.permute.xlu0 %3201
        %3203 = vrot.lane.b32.xlu0 %v3018, 125
        %v3204 = vpop.permute.xlu0 %3203
        %3205 = vrot.lane.b32.xlu0 %v3019, 125
        %v3206 = vpop.permute.xlu0 %3205
        %3207 = vrot.lane.b32.xlu0 %v3020, 125
        %v3208 = vpop.permute.xlu0 %3207
        %3209 = vrot.lane.b32.xlu0 %v3021, 125
        %v3210 = vpop.permute.xlu0 %3209
        %3211 = vrot.lane.b32.xlu0 %v3022, 125
        %v3212 = vpop.permute.xlu0 %3211
        %3213 = vrot.lane.b32.xlu0 %v3023, 125
        %v3214 = vpop.permute.xlu0 %3213
        %3215 = vrot.lane.b32.xlu0 %v3024, 125
        %v3216 = vpop.permute.xlu0 %3215
        %3217 = vrot.lane.b32.xlu0 %v3025, 125
        %v3218 = vpop.permute.xlu0 %3217
        %3219 = vrot.lane.b32.xlu0 %v3026, 125
        %v3220 = vpop.permute.xlu0 %3219
        %3221 = vrot.lane.b32.xlu0 %v3027, 125
        %v3222 = vpop.permute.xlu0 %3221
        %3223 = vrot.lane.b32.xlu0 %v3028, 125
        %v3224 = vpop.permute.xlu0 %3223
        %3225 = vrot.lane.b32.xlu0 %v3029, 125
        %v3226 = vpop.permute.xlu0 %3225
        %3227 = vrot.lane.b32.xlu0 %v3030, 125
        %v3228 = vpop.permute.xlu0 %3227
        %3229 = vrot.lane.b32.xlu0 %v3031, 125
        %v3230 = vpop.permute.xlu0 %3229
        %3231 = vrot.lane.b32.xlu0 %v3032, 125
        %v3232 = vpop.permute.xlu0 %3231
        %3233 = vrot.lane.b32.xlu0 %v3033, 125
        %v3234 = vpop.permute.xlu0 %3233
        %3235 = vrot.lane.b32.xlu0 %v3034, 125
        %v3236 = vpop.permute.xlu0 %3235
        %3237 = vrot.lane.b32.xlu0 %v3035, 125
        %v3238 = vpop.permute.xlu0 %3237
        %3239 = vrot.lane.b32.xlu0 %v3036, 125
        %v3240 = vpop.permute.xlu0 %3239
        %v3241 = vsel %vm1470, %v3202, %v3204
        %v3242 = vsel %vm1470, %v3204, %v3206
        %v3243 = vsel %vm1470, %v3206, %v3208
        %v3244 = vsel %vm1470, %v3208, %v3210
        %v3245 = vsel %vm1470, %v3212, %v3214
        %v3246 = vsel %vm1470, %v3214, %v3216
        %v3247 = vsel %vm1470, %v3216, %v3218
        %v3248 = vsel %vm1470, %v3218, %v3220
        %v3249 = vsel %vm1470, %v3222, %v3224
        %v3250 = vsel %vm1470, %v3224, %v3226
        %v3251 = vsel %vm1470, %v3226, %v3228
        %v3252 = vsel %vm1470, %v3228, %v3230
        %v3253 = vsel %vm1470, %v3232, %v3234
        %v3254 = vsel %vm1470, %v3234, %v3236
        %v3255 = vsel %vm1470, %v3236, %v3238
        %v3256 = vsel %vm1470, %v3238, %v3240
        %3273 = vrot.lane.b32.xlu0 %v3017, 124
        %v3274 = vpop.permute.xlu0 %3273
        %3275 = vrot.lane.b32.xlu0 %v3018, 124
        %v3276 = vpop.permute.xlu0 %3275
        %3277 = vrot.lane.b32.xlu0 %v3019, 124
        %v3278 = vpop.permute.xlu0 %3277
        %3279 = vrot.lane.b32.xlu0 %v3020, 124
        %v3280 = vpop.permute.xlu0 %3279
        %3281 = vrot.lane.b32.xlu0 %v3021, 124
        %v3282 = vpop.permute.xlu0 %3281
        %3283 = vrot.lane.b32.xlu0 %v3022, 124
        %v3284 = vpop.permute.xlu0 %3283
        %3285 = vrot.lane.b32.xlu0 %v3023, 124
        %v3286 = vpop.permute.xlu0 %3285
        %3287 = vrot.lane.b32.xlu0 %v3024, 124
        %v3288 = vpop.permute.xlu0 %3287
        %3289 = vrot.lane.b32.xlu0 %v3025, 124
        %v3290 = vpop.permute.xlu0 %3289
        %3291 = vrot.lane.b32.xlu0 %v3026, 124
        %v3292 = vpop.permute.xlu0 %3291
        %3293 = vrot.lane.b32.xlu0 %v3027, 124
        %v3294 = vpop.permute.xlu0 %3293
        %3295 = vrot.lane.b32.xlu0 %v3028, 124
        %v3296 = vpop.permute.xlu0 %3295
        %3297 = vrot.lane.b32.xlu0 %v3029, 124
        %v3298 = vpop.permute.xlu0 %3297
        %3299 = vrot.lane.b32.xlu0 %v3030, 124
        %v3300 = vpop.permute.xlu0 %3299
        %3301 = vrot.lane.b32.xlu0 %v3031, 124
        %v3302 = vpop.permute.xlu0 %3301
        %3303 = vrot.lane.b32.xlu0 %v3032, 124
        %v3304 = vpop.permute.xlu0 %3303
        %3305 = vrot.lane.b32.xlu0 %v3033, 124
        %v3306 = vpop.permute.xlu0 %3305
        %3307 = vrot.lane.b32.xlu0 %v3034, 124
        %v3308 = vpop.permute.xlu0 %3307
        %3309 = vrot.lane.b32.xlu0 %v3035, 124
        %v3310 = vpop.permute.xlu0 %3309
        %3311 = vrot.lane.b32.xlu0 %v3036, 124
        %v3312 = vpop.permute.xlu0 %3311
        %v3313 = vsel %vm1515, %v3274, %v3276
        %v3314 = vsel %vm1515, %v3276, %v3278
        %v3315 = vsel %vm1515, %v3278, %v3280
        %v3316 = vsel %vm1515, %v3280, %v3282
        %v3317 = vsel %vm1515, %v3284, %v3286
        %v3318 = vsel %vm1515, %v3286, %v3288
        %v3319 = vsel %vm1515, %v3288, %v3290
        %v3320 = vsel %vm1515, %v3290, %v3292
        %v3321 = vsel %vm1515, %v3294, %v3296
        %v3322 = vsel %vm1515, %v3296, %v3298
        %v3323 = vsel %vm1515, %v3298, %v3300
        %v3324 = vsel %vm1515, %v3300, %v3302
        %v3325 = vsel %vm1515, %v3304, %v3306
        %v3326 = vsel %vm1515, %v3306, %v3308
        %v3327 = vsel %vm1515, %v3308, %v3310
        %v3328 = vsel %vm1515, %v3310, %v3312
        %3345 = vrot.lane.b32.xlu0 %v3017, 123
        %v3346 = vpop.permute.xlu0 %3345
        %3347 = vrot.lane.b32.xlu0 %v3018, 123
        %v3348 = vpop.permute.xlu0 %3347
        %3349 = vrot.lane.b32.xlu0 %v3019, 123
        %v3350 = vpop.permute.xlu0 %3349
        %3351 = vrot.lane.b32.xlu0 %v3020, 123
        %v3352 = vpop.permute.xlu0 %3351
        %3353 = vrot.lane.b32.xlu0 %v3021, 123
        %v3354 = vpop.permute.xlu0 %3353
        %3355 = vrot.lane.b32.xlu0 %v3022, 123
        %v3356 = vpop.permute.xlu0 %3355
        %3357 = vrot.lane.b32.xlu0 %v3023, 123
        %v3358 = vpop.permute.xlu0 %3357
        %3359 = vrot.lane.b32.xlu0 %v3024, 123
        %v3360 = vpop.permute.xlu0 %3359
        %3361 = vrot.lane.b32.xlu0 %v3025, 123
        %v3362 = vpop.permute.xlu0 %3361
        %3363 = vrot.lane.b32.xlu0 %v3026, 123
        %v3364 = vpop.permute.xlu0 %3363
        %3365 = vrot.lane.b32.xlu0 %v3027, 123
        %v3366 = vpop.permute.xlu0 %3365
        %3367 = vrot.lane.b32.xlu0 %v3028, 123
        %v3368 = vpop.permute.xlu0 %3367
        %3369 = vrot.lane.b32.xlu0 %v3029, 123
        %v3370 = vpop.permute.xlu0 %3369
        %3371 = vrot.lane.b32.xlu0 %v3030, 123
        %v3372 = vpop.permute.xlu0 %3371
        %3373 = vrot.lane.b32.xlu0 %v3031, 123
        %v3374 = vpop.permute.xlu0 %3373
        %3375 = vrot.lane.b32.xlu0 %v3032, 123
        %v3376 = vpop.permute.xlu0 %3375
        %3377 = vrot.lane.b32.xlu0 %v3033, 123
        %v3378 = vpop.permute.xlu0 %3377
        %3379 = vrot.lane.b32.xlu0 %v3034, 123
        %v3380 = vpop.permute.xlu0 %3379
        %3381 = vrot.lane.b32.xlu0 %v3035, 123
        %v3382 = vpop.permute.xlu0 %3381
        %3383 = vrot.lane.b32.xlu0 %v3036, 123
        %v3384 = vpop.permute.xlu0 %3383
        %v3385 = vsel %vm1560, %v3346, %v3348
        %v3386 = vsel %vm1560, %v3348, %v3350
        %v3387 = vsel %vm1560, %v3350, %v3352
        %v3388 = vsel %vm1560, %v3352, %v3354
        %v3389 = vsel %vm1560, %v3356, %v3358
        %v3390 = vsel %vm1560, %v3358, %v3360
        %v3391 = vsel %vm1560, %v3360, %v3362
        %v3392 = vsel %vm1560, %v3362, %v3364
        %v3393 = vsel %vm1560, %v3366, %v3368
        %v3394 = vsel %vm1560, %v3368, %v3370
        %v3395 = vsel %vm1560, %v3370, %v3372
        %v3396 = vsel %vm1560, %v3372, %v3374
        %v3397 = vsel %vm1560, %v3376, %v3378
        %v3398 = vsel %vm1560, %v3378, %v3380
        %v3399 = vsel %vm1560, %v3380, %v3382
        %v3400 = vsel %vm1560, %v3382, %v3384
        %3417 = vrot.lane.b32.xlu0 %v3017, 122
        %v3418 = vpop.permute.xlu0 %3417
        %3419 = vrot.lane.b32.xlu0 %v3018, 122
        %v3420 = vpop.permute.xlu0 %3419
        %3421 = vrot.lane.b32.xlu0 %v3019, 122
        %v3422 = vpop.permute.xlu0 %3421
        %3423 = vrot.lane.b32.xlu0 %v3020, 122
        %v3424 = vpop.permute.xlu0 %3423
        %3425 = vrot.lane.b32.xlu0 %v3021, 122
        %v3426 = vpop.permute.xlu0 %3425
        %3427 = vrot.lane.b32.xlu0 %v3022, 122
        %v3428 = vpop.permute.xlu0 %3427
        %3429 = vrot.lane.b32.xlu0 %v3023, 122
        %v3430 = vpop.permute.xlu0 %3429
        %3431 = vrot.lane.b32.xlu0 %v3024, 122
        %v3432 = vpop.permute.xlu0 %3431
        %3433 = vrot.lane.b32.xlu0 %v3025, 122
        %v3434 = vpop.permute.xlu0 %3433
        %3435 = vrot.lane.b32.xlu0 %v3026, 122
        %v3436 = vpop.permute.xlu0 %3435
        %3437 = vrot.lane.b32.xlu0 %v3027, 122
        %v3438 = vpop.permute.xlu0 %3437
        %3439 = vrot.lane.b32.xlu0 %v3028, 122
        %v3440 = vpop.permute.xlu0 %3439
        %3441 = vrot.lane.b32.xlu0 %v3029, 122
        %v3442 = vpop.permute.xlu0 %3441
        %3443 = vrot.lane.b32.xlu0 %v3030, 122
        %v3444 = vpop.permute.xlu0 %3443
        %3445 = vrot.lane.b32.xlu0 %v3031, 122
        %v3446 = vpop.permute.xlu0 %3445
        %3447 = vrot.lane.b32.xlu0 %v3032, 122
        %v3448 = vpop.permute.xlu0 %3447
        %3449 = vrot.lane.b32.xlu0 %v3033, 122
        %v3450 = vpop.permute.xlu0 %3449
        %3451 = vrot.lane.b32.xlu0 %v3034, 122
        %v3452 = vpop.permute.xlu0 %3451
        %3453 = vrot.lane.b32.xlu0 %v3035, 122
        %v3454 = vpop.permute.xlu0 %3453
        %3455 = vrot.lane.b32.xlu0 %v3036, 122
        %v3456 = vpop.permute.xlu0 %3455
        %v3457 = vsel %vm1605, %v3418, %v3420
        %v3458 = vsel %vm1605, %v3420, %v3422
        %v3459 = vsel %vm1605, %v3422, %v3424
        %v3460 = vsel %vm1605, %v3424, %v3426
        %v3461 = vsel %vm1605, %v3428, %v3430
        %v3462 = vsel %vm1605, %v3430, %v3432
        %v3463 = vsel %vm1605, %v3432, %v3434
        %v3464 = vsel %vm1605, %v3434, %v3436
        %v3465 = vsel %vm1605, %v3438, %v3440
        %v3466 = vsel %vm1605, %v3440, %v3442
        %v3467 = vsel %vm1605, %v3442, %v3444
        %v3468 = vsel %vm1605, %v3444, %v3446
        %v3469 = vsel %vm1605, %v3448, %v3450
        %v3470 = vsel %vm1605, %v3450, %v3452
        %v3471 = vsel %vm1605, %v3452, %v3454
        %v3472 = vsel %vm1605, %v3454, %v3456
        %3489 = vrot.lane.b32.xlu0 %v3017, 121
        %v3490 = vpop.permute.xlu0 %3489
        %3491 = vrot.lane.b32.xlu0 %v3018, 121
        %v3492 = vpop.permute.xlu0 %3491
        %3493 = vrot.lane.b32.xlu0 %v3019, 121
        %v3494 = vpop.permute.xlu0 %3493
        %3495 = vrot.lane.b32.xlu0 %v3020, 121
        %v3496 = vpop.permute.xlu0 %3495
        %3497 = vrot.lane.b32.xlu0 %v3021, 121
        %v3498 = vpop.permute.xlu0 %3497
        %3499 = vrot.lane.b32.xlu0 %v3022, 121
        %v3500 = vpop.permute.xlu0 %3499
        %3501 = vrot.lane.b32.xlu0 %v3023, 121
        %v3502 = vpop.permute.xlu0 %3501
        %3503 = vrot.lane.b32.xlu0 %v3024, 121
        %v3504 = vpop.permute.xlu0 %3503
        %3505 = vrot.lane.b32.xlu0 %v3025, 121
        %v3506 = vpop.permute.xlu0 %3505
        %3507 = vrot.lane.b32.xlu0 %v3026, 121
        %v3508 = vpop.permute.xlu0 %3507
        %3509 = vrot.lane.b32.xlu0 %v3027, 121
        %v3510 = vpop.permute.xlu0 %3509
        %3511 = vrot.lane.b32.xlu0 %v3028, 121
        %v3512 = vpop.permute.xlu0 %3511
        %3513 = vrot.lane.b32.xlu0 %v3029, 121
        %v3514 = vpop.permute.xlu0 %3513
        %3515 = vrot.lane.b32.xlu0 %v3030, 121
        %v3516 = vpop.permute.xlu0 %3515
        %3517 = vrot.lane.b32.xlu0 %v3031, 121
        %v3518 = vpop.permute.xlu0 %3517
        %3519 = vrot.lane.b32.xlu0 %v3032, 121
        %v3520 = vpop.permute.xlu0 %3519
        %3521 = vrot.lane.b32.xlu0 %v3033, 121
        %v3522 = vpop.permute.xlu0 %3521
        %3523 = vrot.lane.b32.xlu0 %v3034, 121
        %v3524 = vpop.permute.xlu0 %3523
        %3525 = vrot.lane.b32.xlu0 %v3035, 121
        %v3526 = vpop.permute.xlu0 %3525
        %3527 = vrot.lane.b32.xlu0 %v3036, 121
        %v3528 = vpop.permute.xlu0 %3527
        %v3529 = vsel %vm1650, %v3490, %v3492
        %v3530 = vsel %vm1650, %v3492, %v3494
        %v3531 = vsel %vm1650, %v3494, %v3496
        %v3532 = vsel %vm1650, %v3496, %v3498
        %v3533 = vsel %vm1650, %v3500, %v3502
        %v3534 = vsel %vm1650, %v3502, %v3504
        %v3535 = vsel %vm1650, %v3504, %v3506
        %v3536 = vsel %vm1650, %v3506, %v3508
        %v3537 = vsel %vm1650, %v3510, %v3512
        %v3538 = vsel %vm1650, %v3512, %v3514
        %v3539 = vsel %vm1650, %v3514, %v3516
        %v3540 = vsel %vm1650, %v3516, %v3518
        %v3541 = vsel %vm1650, %v3520, %v3522
        %v3542 = vsel %vm1650, %v3522, %v3524
        %v3543 = vsel %vm1650, %v3524, %v3526
        %v3544 = vsel %vm1650, %v3526, %v3528
        %3561 = vrot.lane.b32.xlu0 %v3017, 120
        %v3562 = vpop.permute.xlu0 %3561
        %3563 = vrot.lane.b32.xlu0 %v3018, 120
        %v3564 = vpop.permute.xlu0 %3563
        %3565 = vrot.lane.b32.xlu0 %v3019, 120
        %v3566 = vpop.permute.xlu0 %3565
        %3567 = vrot.lane.b32.xlu0 %v3020, 120
        %v3568 = vpop.permute.xlu0 %3567
        %3569 = vrot.lane.b32.xlu0 %v3021, 120
        %v3570 = vpop.permute.xlu0 %3569
        %3571 = vrot.lane.b32.xlu0 %v3022, 120
        %v3572 = vpop.permute.xlu0 %3571
        %3573 = vrot.lane.b32.xlu0 %v3023, 120
        %v3574 = vpop.permute.xlu0 %3573
        %3575 = vrot.lane.b32.xlu0 %v3024, 120
        %v3576 = vpop.permute.xlu0 %3575
        %3577 = vrot.lane.b32.xlu0 %v3025, 120
        %v3578 = vpop.permute.xlu0 %3577
        %3579 = vrot.lane.b32.xlu0 %v3026, 120
        %v3580 = vpop.permute.xlu0 %3579
        %3581 = vrot.lane.b32.xlu0 %v3027, 120
        %v3582 = vpop.permute.xlu0 %3581
        %3583 = vrot.lane.b32.xlu0 %v3028, 120
        %v3584 = vpop.permute.xlu0 %3583
        %3585 = vrot.lane.b32.xlu0 %v3029, 120
        %v3586 = vpop.permute.xlu0 %3585
        %3587 = vrot.lane.b32.xlu0 %v3030, 120
        %v3588 = vpop.permute.xlu0 %3587
        %3589 = vrot.lane.b32.xlu0 %v3031, 120
        %v3590 = vpop.permute.xlu0 %3589
        %3591 = vrot.lane.b32.xlu0 %v3032, 120
        %v3592 = vpop.permute.xlu0 %3591
        %3593 = vrot.lane.b32.xlu0 %v3033, 120
        %v3594 = vpop.permute.xlu0 %3593
        %3595 = vrot.lane.b32.xlu0 %v3034, 120
        %v3596 = vpop.permute.xlu0 %3595
        %3597 = vrot.lane.b32.xlu0 %v3035, 120
        %v3598 = vpop.permute.xlu0 %3597
        %3599 = vrot.lane.b32.xlu0 %v3036, 120
        %v3600 = vpop.permute.xlu0 %3599
        %v3601 = vsel %vm1695, %v3562, %v3564
        %v3602 = vsel %vm1695, %v3564, %v3566
        %v3603 = vsel %vm1695, %v3566, %v3568
        %v3604 = vsel %vm1695, %v3568, %v3570
        %v3605 = vsel %vm1695, %v3572, %v3574
        %v3606 = vsel %vm1695, %v3574, %v3576
        %v3607 = vsel %vm1695, %v3576, %v3578
        %v3608 = vsel %vm1695, %v3578, %v3580
        %v3609 = vsel %vm1695, %v3582, %v3584
        %v3610 = vsel %vm1695, %v3584, %v3586
        %v3611 = vsel %vm1695, %v3586, %v3588
        %v3612 = vsel %vm1695, %v3588, %v3590
        %v3613 = vsel %vm1695, %v3592, %v3594
        %v3614 = vsel %vm1695, %v3594, %v3596
        %v3615 = vsel %vm1695, %v3596, %v3598
        %v3616 = vsel %vm1695, %v3598, %v3600
        %3633 = vrot.lane.b32.xlu0 %v3017, 119
        %v3634 = vpop.permute.xlu0 %3633
        %3635 = vrot.lane.b32.xlu0 %v3018, 119
        %v3636 = vpop.permute.xlu0 %3635
        %3637 = vrot.lane.b32.xlu0 %v3019, 119
        %v3638 = vpop.permute.xlu0 %3637
        %3639 = vrot.lane.b32.xlu0 %v3020, 119
        %v3640 = vpop.permute.xlu0 %3639
        %3641 = vrot.lane.b32.xlu0 %v3021, 119
        %v3642 = vpop.permute.xlu0 %3641
        %3643 = vrot.lane.b32.xlu0 %v3022, 119
        %v3644 = vpop.permute.xlu0 %3643
        %3645 = vrot.lane.b32.xlu0 %v3023, 119
        %v3646 = vpop.permute.xlu0 %3645
        %3647 = vrot.lane.b32.xlu0 %v3024, 119
        %v3648 = vpop.permute.xlu0 %3647
        %3649 = vrot.lane.b32.xlu0 %v3025, 119
        %v3650 = vpop.permute.xlu0 %3649
        %3651 = vrot.lane.b32.xlu0 %v3026, 119
        %v3652 = vpop.permute.xlu0 %3651
        %3653 = vrot.lane.b32.xlu0 %v3027, 119
        %v3654 = vpop.permute.xlu0 %3653
        %3655 = vrot.lane.b32.xlu0 %v3028, 119
        %v3656 = vpop.permute.xlu0 %3655
        %3657 = vrot.lane.b32.xlu0 %v3029, 119
        %v3658 = vpop.permute.xlu0 %3657
        %3659 = vrot.lane.b32.xlu0 %v3030, 119
        %v3660 = vpop.permute.xlu0 %3659
        %3661 = vrot.lane.b32.xlu0 %v3031, 119
        %v3662 = vpop.permute.xlu0 %3661
        %3663 = vrot.lane.b32.xlu0 %v3032, 119
        %v3664 = vpop.permute.xlu0 %3663
        %3665 = vrot.lane.b32.xlu0 %v3033, 119
        %v3666 = vpop.permute.xlu0 %3665
        %3667 = vrot.lane.b32.xlu0 %v3034, 119
        %v3668 = vpop.permute.xlu0 %3667
        %3669 = vrot.lane.b32.xlu0 %v3035, 119
        %v3670 = vpop.permute.xlu0 %3669
        %3671 = vrot.lane.b32.xlu0 %v3036, 119
        %v3672 = vpop.permute.xlu0 %3671
        %v3673 = vsel %vm1740, %v3634, %v3636
        %v3674 = vsel %vm1740, %v3636, %v3638
        %v3675 = vsel %vm1740, %v3638, %v3640
        %v3676 = vsel %vm1740, %v3640, %v3642
        %v3677 = vsel %vm1740, %v3644, %v3646
        %v3678 = vsel %vm1740, %v3646, %v3648
        %v3679 = vsel %vm1740, %v3648, %v3650
        %v3680 = vsel %vm1740, %v3650, %v3652
        %v3681 = vsel %vm1740, %v3654, %v3656
        %v3682 = vsel %vm1740, %v3656, %v3658
        %v3683 = vsel %vm1740, %v3658, %v3660
        %v3684 = vsel %vm1740, %v3660, %v3662
        %v3685 = vsel %vm1740, %v3664, %v3666
        %v3686 = vsel %vm1740, %v3666, %v3668
        %v3687 = vsel %vm1740, %v3668, %v3670
        %v3688 = vsel %vm1740, %v3670, %v3672
        %3705 = vrot.lane.b32.xlu0 %v3017, 118
        %v3706 = vpop.permute.xlu0 %3705
        %3707 = vrot.lane.b32.xlu0 %v3018, 118
        %v3708 = vpop.permute.xlu0 %3707
        %3709 = vrot.lane.b32.xlu0 %v3019, 118
        %v3710 = vpop.permute.xlu0 %3709
        %3711 = vrot.lane.b32.xlu0 %v3020, 118
        %v3712 = vpop.permute.xlu0 %3711
        %3713 = vrot.lane.b32.xlu0 %v3021, 118
        %v3714 = vpop.permute.xlu0 %3713
        %3715 = vrot.lane.b32.xlu0 %v3022, 118
        %v3716 = vpop.permute.xlu0 %3715
        %3717 = vrot.lane.b32.xlu0 %v3023, 118
        %v3718 = vpop.permute.xlu0 %3717
        %3719 = vrot.lane.b32.xlu0 %v3024, 118
        %v3720 = vpop.permute.xlu0 %3719
        %3721 = vrot.lane.b32.xlu0 %v3025, 118
        %v3722 = vpop.permute.xlu0 %3721
        %3723 = vrot.lane.b32.xlu0 %v3026, 118
        %v3724 = vpop.permute.xlu0 %3723
        %3725 = vrot.lane.b32.xlu0 %v3027, 118
        %v3726 = vpop.permute.xlu0 %3725
        %3727 = vrot.lane.b32.xlu0 %v3028, 118
        %v3728 = vpop.permute.xlu0 %3727
        %3729 = vrot.lane.b32.xlu0 %v3029, 118
        %v3730 = vpop.permute.xlu0 %3729
        %3731 = vrot.lane.b32.xlu0 %v3030, 118
        %v3732 = vpop.permute.xlu0 %3731
        %3733 = vrot.lane.b32.xlu0 %v3031, 118
        %v3734 = vpop.permute.xlu0 %3733
        %3735 = vrot.lane.b32.xlu0 %v3032, 118
        %v3736 = vpop.permute.xlu0 %3735
        %3737 = vrot.lane.b32.xlu0 %v3033, 118
        %v3738 = vpop.permute.xlu0 %3737
        %3739 = vrot.lane.b32.xlu0 %v3034, 118
        %v3740 = vpop.permute.xlu0 %3739
        %3741 = vrot.lane.b32.xlu0 %v3035, 118
        %v3742 = vpop.permute.xlu0 %3741
        %3743 = vrot.lane.b32.xlu0 %v3036, 118
        %v3744 = vpop.permute.xlu0 %3743
        %v3745 = vsel %vm1785, %v3706, %v3708
        %v3746 = vsel %vm1785, %v3708, %v3710
        %v3747 = vsel %vm1785, %v3710, %v3712
        %v3748 = vsel %vm1785, %v3712, %v3714
        %v3749 = vsel %vm1785, %v3716, %v3718
        %v3750 = vsel %vm1785, %v3718, %v3720
        %v3751 = vsel %vm1785, %v3720, %v3722
        %v3752 = vsel %vm1785, %v3722, %v3724
        %v3753 = vsel %vm1785, %v3726, %v3728
        %v3754 = vsel %vm1785, %v3728, %v3730
        %v3755 = vsel %vm1785, %v3730, %v3732
        %v3756 = vsel %vm1785, %v3732, %v3734
        %v3757 = vsel %vm1785, %v3736, %v3738
        %v3758 = vsel %vm1785, %v3738, %v3740
        %v3759 = vsel %vm1785, %v3740, %v3742
        %v3760 = vsel %vm1785, %v3742, %v3744
        %3777 = vrot.lane.b32.xlu0 %v3017, 117
        %v3778 = vpop.permute.xlu0 %3777
        %3779 = vrot.lane.b32.xlu0 %v3018, 117
        %v3780 = vpop.permute.xlu0 %3779
        %3781 = vrot.lane.b32.xlu0 %v3019, 117
        %v3782 = vpop.permute.xlu0 %3781
        %3783 = vrot.lane.b32.xlu0 %v3020, 117
        %v3784 = vpop.permute.xlu0 %3783
        %3785 = vrot.lane.b32.xlu0 %v3021, 117
        %v3786 = vpop.permute.xlu0 %3785
        %3787 = vrot.lane.b32.xlu0 %v3022, 117
        %v3788 = vpop.permute.xlu0 %3787
        %3789 = vrot.lane.b32.xlu0 %v3023, 117
        %v3790 = vpop.permute.xlu0 %3789
        %3791 = vrot.lane.b32.xlu0 %v3024, 117
        %v3792 = vpop.permute.xlu0 %3791
        %3793 = vrot.lane.b32.xlu0 %v3025, 117
        %v3794 = vpop.permute.xlu0 %3793
        %3795 = vrot.lane.b32.xlu0 %v3026, 117
        %v3796 = vpop.permute.xlu0 %3795
        %3797 = vrot.lane.b32.xlu0 %v3027, 117
        %v3798 = vpop.permute.xlu0 %3797
        %3799 = vrot.lane.b32.xlu0 %v3028, 117
        %v3800 = vpop.permute.xlu0 %3799
        %3801 = vrot.lane.b32.xlu0 %v3029, 117
        %v3802 = vpop.permute.xlu0 %3801
        %3803 = vrot.lane.b32.xlu0 %v3030, 117
        %v3804 = vpop.permute.xlu0 %3803
        %3805 = vrot.lane.b32.xlu0 %v3031, 117
        %v3806 = vpop.permute.xlu0 %3805
        %3807 = vrot.lane.b32.xlu0 %v3032, 117
        %v3808 = vpop.permute.xlu0 %3807
        %3809 = vrot.lane.b32.xlu0 %v3033, 117
        %v3810 = vpop.permute.xlu0 %3809
        %3811 = vrot.lane.b32.xlu0 %v3034, 117
        %v3812 = vpop.permute.xlu0 %3811
        %3813 = vrot.lane.b32.xlu0 %v3035, 117
        %v3814 = vpop.permute.xlu0 %3813
        %3815 = vrot.lane.b32.xlu0 %v3036, 117
        %v3816 = vpop.permute.xlu0 %3815
        %v3817 = vsel %vm1830, %v3778, %v3780
        %v3818 = vsel %vm1830, %v3780, %v3782
        %v3819 = vsel %vm1830, %v3782, %v3784
        %v3820 = vsel %vm1830, %v3784, %v3786
        %v3821 = vsel %vm1830, %v3788, %v3790
        %v3822 = vsel %vm1830, %v3790, %v3792
        %v3823 = vsel %vm1830, %v3792, %v3794
        %v3824 = vsel %vm1830, %v3794, %v3796
        %v3825 = vsel %vm1830, %v3798, %v3800
        %v3826 = vsel %vm1830, %v3800, %v3802
        %v3827 = vsel %vm1830, %v3802, %v3804
        %v3828 = vsel %vm1830, %v3804, %v3806
        %v3829 = vsel %vm1830, %v3808, %v3810
        %v3830 = vsel %vm1830, %v3810, %v3812
        %v3831 = vsel %vm1830, %v3812, %v3814
        %v3832 = vsel %vm1830, %v3814, %v3816
        %3849 = vrot.lane.b32.xlu0 %v3017, 116
        %v3850 = vpop.permute.xlu0 %3849
        %3851 = vrot.lane.b32.xlu0 %v3018, 116
        %v3852 = vpop.permute.xlu0 %3851
        %3853 = vrot.lane.b32.xlu0 %v3019, 116
        %v3854 = vpop.permute.xlu0 %3853
        %3855 = vrot.lane.b32.xlu0 %v3020, 116
        %v3856 = vpop.permute.xlu0 %3855
        %3857 = vrot.lane.b32.xlu0 %v3021, 116
        %v3858 = vpop.permute.xlu0 %3857
        %3859 = vrot.lane.b32.xlu0 %v3022, 116
        %v3860 = vpop.permute.xlu0 %3859
        %3861 = vrot.lane.b32.xlu0 %v3023, 116
        %v3862 = vpop.permute.xlu0 %3861
        %3863 = vrot.lane.b32.xlu0 %v3024, 116
        %v3864 = vpop.permute.xlu0 %3863
        %3865 = vrot.lane.b32.xlu0 %v3025, 116
        %v3866 = vpop.permute.xlu0 %3865
        %3867 = vrot.lane.b32.xlu0 %v3026, 116
        %v3868 = vpop.permute.xlu0 %3867
        %3869 = vrot.lane.b32.xlu0 %v3027, 116
        %v3870 = vpop.permute.xlu0 %3869
        %3871 = vrot.lane.b32.xlu0 %v3028, 116
        %v3872 = vpop.permute.xlu0 %3871
        %3873 = vrot.lane.b32.xlu0 %v3029, 116
        %v3874 = vpop.permute.xlu0 %3873
        %3875 = vrot.lane.b32.xlu0 %v3030, 116
        %v3876 = vpop.permute.xlu0 %3875
        %3877 = vrot.lane.b32.xlu0 %v3031, 116
        %v3878 = vpop.permute.xlu0 %3877
        %3879 = vrot.lane.b32.xlu0 %v3032, 116
        %v3880 = vpop.permute.xlu0 %3879
        %3881 = vrot.lane.b32.xlu0 %v3033, 116
        %v3882 = vpop.permute.xlu0 %3881
        %3883 = vrot.lane.b32.xlu0 %v3034, 116
        %v3884 = vpop.permute.xlu0 %3883
        %3885 = vrot.lane.b32.xlu0 %v3035, 116
        %v3886 = vpop.permute.xlu0 %3885
        %3887 = vrot.lane.b32.xlu0 %v3036, 116
        %v3888 = vpop.permute.xlu0 %3887
        %v3889 = vsel %vm1875, %v3850, %v3852
        %v3890 = vsel %vm1875, %v3852, %v3854
        %v3891 = vsel %vm1875, %v3854, %v3856
        %v3892 = vsel %vm1875, %v3856, %v3858
        %v3893 = vsel %vm1875, %v3860, %v3862
        %v3894 = vsel %vm1875, %v3862, %v3864
        %v3895 = vsel %vm1875, %v3864, %v3866
        %v3896 = vsel %vm1875, %v3866, %v3868
        %v3897 = vsel %vm1875, %v3870, %v3872
        %v3898 = vsel %vm1875, %v3872, %v3874
        %v3899 = vsel %vm1875, %v3874, %v3876
        %v3900 = vsel %vm1875, %v3876, %v3878
        %v3901 = vsel %vm1875, %v3880, %v3882
        %v3902 = vsel %vm1875, %v3882, %v3884
        %v3903 = vsel %vm1875, %v3884, %v3886
        %v3904 = vsel %vm1875, %v3886, %v3888
        %3921 = vrot.lane.b32.xlu0 %v3017, 115
        %v3922 = vpop.permute.xlu0 %3921
        %3923 = vrot.lane.b32.xlu0 %v3018, 115
        %v3924 = vpop.permute.xlu0 %3923
        %3925 = vrot.lane.b32.xlu0 %v3019, 115
        %v3926 = vpop.permute.xlu0 %3925
        %3927 = vrot.lane.b32.xlu0 %v3020, 115
        %v3928 = vpop.permute.xlu0 %3927
        %3929 = vrot.lane.b32.xlu0 %v3021, 115
        %v3930 = vpop.permute.xlu0 %3929
        %3931 = vrot.lane.b32.xlu0 %v3022, 115
        %v3932 = vpop.permute.xlu0 %3931
        %3933 = vrot.lane.b32.xlu0 %v3023, 115
        %v3934 = vpop.permute.xlu0 %3933
        %3935 = vrot.lane.b32.xlu0 %v3024, 115
        %v3936 = vpop.permute.xlu0 %3935
        %3937 = vrot.lane.b32.xlu0 %v3025, 115
        %v3938 = vpop.permute.xlu0 %3937
        %3939 = vrot.lane.b32.xlu0 %v3026, 115
        %v3940 = vpop.permute.xlu0 %3939
        %3941 = vrot.lane.b32.xlu0 %v3027, 115
        %v3942 = vpop.permute.xlu0 %3941
        %3943 = vrot.lane.b32.xlu0 %v3028, 115
        %v3944 = vpop.permute.xlu0 %3943
        %3945 = vrot.lane.b32.xlu0 %v3029, 115
        %v3946 = vpop.permute.xlu0 %3945
        %3947 = vrot.lane.b32.xlu0 %v3030, 115
        %v3948 = vpop.permute.xlu0 %3947
        %3949 = vrot.lane.b32.xlu0 %v3031, 115
        %v3950 = vpop.permute.xlu0 %3949
        %3951 = vrot.lane.b32.xlu0 %v3032, 115
        %v3952 = vpop.permute.xlu0 %3951
        %3953 = vrot.lane.b32.xlu0 %v3033, 115
        %v3954 = vpop.permute.xlu0 %3953
        %3955 = vrot.lane.b32.xlu0 %v3034, 115
        %v3956 = vpop.permute.xlu0 %3955
        %3957 = vrot.lane.b32.xlu0 %v3035, 115
        %v3958 = vpop.permute.xlu0 %3957
        %3959 = vrot.lane.b32.xlu0 %v3036, 115
        %v3960 = vpop.permute.xlu0 %3959
        %v3961 = vsel %vm1920, %v3922, %v3924
        %v3962 = vsel %vm1920, %v3924, %v3926
        %v3963 = vsel %vm1920, %v3926, %v3928
        %v3964 = vsel %vm1920, %v3928, %v3930
        %v3965 = vsel %vm1920, %v3932, %v3934
        %v3966 = vsel %vm1920, %v3934, %v3936
        %v3967 = vsel %vm1920, %v3936, %v3938
        %v3968 = vsel %vm1920, %v3938, %v3940
        %v3969 = vsel %vm1920, %v3942, %v3944
        %v3970 = vsel %vm1920, %v3944, %v3946
        %v3971 = vsel %vm1920, %v3946, %v3948
        %v3972 = vsel %vm1920, %v3948, %v3950
        %v3973 = vsel %vm1920, %v3952, %v3954
        %v3974 = vsel %vm1920, %v3954, %v3956
        %v3975 = vsel %vm1920, %v3956, %v3958
        %v3976 = vsel %vm1920, %v3958, %v3960
        %3993 = vrot.lane.b32.xlu0 %v3017, 114
        %v3994 = vpop.permute.xlu0 %3993
        %3995 = vrot.lane.b32.xlu0 %v3018, 114
        %v3996 = vpop.permute.xlu0 %3995
        %3997 = vrot.lane.b32.xlu0 %v3019, 114
        %v3998 = vpop.permute.xlu0 %3997
        %3999 = vrot.lane.b32.xlu0 %v3020, 114
        %v4000 = vpop.permute.xlu0 %3999
        %4001 = vrot.lane.b32.xlu0 %v3021, 114
        %v4002 = vpop.permute.xlu0 %4001
        %4003 = vrot.lane.b32.xlu0 %v3022, 114
        %v4004 = vpop.permute.xlu0 %4003
        %4005 = vrot.lane.b32.xlu0 %v3023, 114
        %v4006 = vpop.permute.xlu0 %4005
        %4007 = vrot.lane.b32.xlu0 %v3024, 114
        %v4008 = vpop.permute.xlu0 %4007
        %4009 = vrot.lane.b32.xlu0 %v3025, 114
        %v4010 = vpop.permute.xlu0 %4009
        %4011 = vrot.lane.b32.xlu0 %v3026, 114
        %v4012 = vpop.permute.xlu0 %4011
        %4013 = vrot.lane.b32.xlu0 %v3027, 114
        %v4014 = vpop.permute.xlu0 %4013
        %4015 = vrot.lane.b32.xlu0 %v3028, 114
        %v4016 = vpop.permute.xlu0 %4015
        %4017 = vrot.lane.b32.xlu0 %v3029, 114
        %v4018 = vpop.permute.xlu0 %4017
        %4019 = vrot.lane.b32.xlu0 %v3030, 114
        %v4020 = vpop.permute.xlu0 %4019
        %4021 = vrot.lane.b32.xlu0 %v3031, 114
        %v4022 = vpop.permute.xlu0 %4021
        %4023 = vrot.lane.b32.xlu0 %v3032, 114
        %v4024 = vpop.permute.xlu0 %4023
        %4025 = vrot.lane.b32.xlu0 %v3033, 114
        %v4026 = vpop.permute.xlu0 %4025
        %4027 = vrot.lane.b32.xlu0 %v3034, 114
        %v4028 = vpop.permute.xlu0 %4027
        %4029 = vrot.lane.b32.xlu0 %v3035, 114
        %v4030 = vpop.permute.xlu0 %4029
        %4031 = vrot.lane.b32.xlu0 %v3036, 114
        %v4032 = vpop.permute.xlu0 %4031
        %v4033 = vsel %vm1965, %v3994, %v3996
        %v4034 = vsel %vm1965, %v3996, %v3998
        %v4035 = vsel %vm1965, %v3998, %v4000
        %v4036 = vsel %vm1965, %v4000, %v4002
        %v4037 = vsel %vm1965, %v4004, %v4006
        %v4038 = vsel %vm1965, %v4006, %v4008
        %v4039 = vsel %vm1965, %v4008, %v4010
        %v4040 = vsel %vm1965, %v4010, %v4012
        %v4041 = vsel %vm1965, %v4014, %v4016
        %v4042 = vsel %vm1965, %v4016, %v4018
        %v4043 = vsel %vm1965, %v4018, %v4020
        %v4044 = vsel %vm1965, %v4020, %v4022
        %v4045 = vsel %vm1965, %v4024, %v4026
        %v4046 = vsel %vm1965, %v4026, %v4028
        %v4047 = vsel %vm1965, %v4028, %v4030
        %v4048 = vsel %vm1965, %v4030, %v4032
        %4065 = vrot.lane.b32.xlu0 %v3017, 113
        %v4066 = vpop.permute.xlu0 %4065
        %4067 = vrot.lane.b32.xlu0 %v3018, 113
        %v4068 = vpop.permute.xlu0 %4067
        %4069 = vrot.lane.b32.xlu0 %v3019, 113
        %v4070 = vpop.permute.xlu0 %4069
        %4071 = vrot.lane.b32.xlu0 %v3020, 113
        %v4072 = vpop.permute.xlu0 %4071
        %4073 = vrot.lane.b32.xlu0 %v3021, 113
        %v4074 = vpop.permute.xlu0 %4073
        %4075 = vrot.lane.b32.xlu0 %v3022, 113
        %v4076 = vpop.permute.xlu0 %4075
        %4077 = vrot.lane.b32.xlu0 %v3023, 113
        %v4078 = vpop.permute.xlu0 %4077
        %4079 = vrot.lane.b32.xlu0 %v3024, 113
        %v4080 = vpop.permute.xlu0 %4079
        %4081 = vrot.lane.b32.xlu0 %v3025, 113
        %v4082 = vpop.permute.xlu0 %4081
        %4083 = vrot.lane.b32.xlu0 %v3026, 113
        %v4084 = vpop.permute.xlu0 %4083
        %4085 = vrot.lane.b32.xlu0 %v3027, 113
        %v4086 = vpop.permute.xlu0 %4085
        %4087 = vrot.lane.b32.xlu0 %v3028, 113
        %v4088 = vpop.permute.xlu0 %4087
        %4089 = vrot.lane.b32.xlu0 %v3029, 113
        %v4090 = vpop.permute.xlu0 %4089
        %4091 = vrot.lane.b32.xlu0 %v3030, 113
        %v4092 = vpop.permute.xlu0 %4091
        %4093 = vrot.lane.b32.xlu0 %v3031, 113
        %v4094 = vpop.permute.xlu0 %4093
        %4095 = vrot.lane.b32.xlu0 %v3032, 113
        %v4096 = vpop.permute.xlu0 %4095
        %4097 = vrot.lane.b32.xlu0 %v3033, 113
        %v4098 = vpop.permute.xlu0 %4097
        %4099 = vrot.lane.b32.xlu0 %v3034, 113
        %v4100 = vpop.permute.xlu0 %4099
        %4101 = vrot.lane.b32.xlu0 %v3035, 113
        %v4102 = vpop.permute.xlu0 %4101
        %4103 = vrot.lane.b32.xlu0 %v3036, 113
        %v4104 = vpop.permute.xlu0 %4103
        %v4105 = vsel %vm2010, %v4066, %v4068
        %v4106 = vsel %vm2010, %v4068, %v4070
        %v4107 = vsel %vm2010, %v4070, %v4072
        %v4108 = vsel %vm2010, %v4072, %v4074
        %v4109 = vsel %vm2010, %v4076, %v4078
        %v4110 = vsel %vm2010, %v4078, %v4080
        %v4111 = vsel %vm2010, %v4080, %v4082
        %v4112 = vsel %vm2010, %v4082, %v4084
        %v4113 = vsel %vm2010, %v4086, %v4088
        %v4114 = vsel %vm2010, %v4088, %v4090
        %v4115 = vsel %vm2010, %v4090, %v4092
        %v4116 = vsel %vm2010, %v4092, %v4094
        %v4117 = vsel %vm2010, %v4096, %v4098
        %v4118 = vsel %vm2010, %v4098, %v4100
        %v4119 = vsel %vm2010, %v4100, %v4102
        %v4120 = vsel %vm2010, %v4102, %v4104
        %4137 = vrot.lane.b32.xlu0 %v3017, 112
        %v4138 = vpop.permute.xlu0 %4137
        %4139 = vrot.lane.b32.xlu0 %v3018, 112
        %v4140 = vpop.permute.xlu0 %4139
        %4141 = vrot.lane.b32.xlu0 %v3019, 112
        %v4142 = vpop.permute.xlu0 %4141
        %4143 = vrot.lane.b32.xlu0 %v3020, 112
        %v4144 = vpop.permute.xlu0 %4143
        %4145 = vrot.lane.b32.xlu0 %v3021, 112
        %v4146 = vpop.permute.xlu0 %4145
        %4147 = vrot.lane.b32.xlu0 %v3022, 112
        %v4148 = vpop.permute.xlu0 %4147
        %4149 = vrot.lane.b32.xlu0 %v3023, 112
        %v4150 = vpop.permute.xlu0 %4149
        %4151 = vrot.lane.b32.xlu0 %v3024, 112
        %v4152 = vpop.permute.xlu0 %4151
        %4153 = vrot.lane.b32.xlu0 %v3025, 112
        %v4154 = vpop.permute.xlu0 %4153
        %4155 = vrot.lane.b32.xlu0 %v3026, 112
        %v4156 = vpop.permute.xlu0 %4155
        %4157 = vrot.lane.b32.xlu0 %v3027, 112
        %v4158 = vpop.permute.xlu0 %4157
        %4159 = vrot.lane.b32.xlu0 %v3028, 112
        %v4160 = vpop.permute.xlu0 %4159
        %4161 = vrot.lane.b32.xlu0 %v3029, 112
        %v4162 = vpop.permute.xlu0 %4161
        %4163 = vrot.lane.b32.xlu0 %v3030, 112
        %v4164 = vpop.permute.xlu0 %4163
        %4165 = vrot.lane.b32.xlu0 %v3031, 112
        %v4166 = vpop.permute.xlu0 %4165
        %4167 = vrot.lane.b32.xlu0 %v3032, 112
        %v4168 = vpop.permute.xlu0 %4167
        %4169 = vrot.lane.b32.xlu0 %v3033, 112
        %v4170 = vpop.permute.xlu0 %4169
        %4171 = vrot.lane.b32.xlu0 %v3034, 112
        %v4172 = vpop.permute.xlu0 %4171
        %4173 = vrot.lane.b32.xlu0 %v3035, 112
        %v4174 = vpop.permute.xlu0 %4173
        %4175 = vrot.lane.b32.xlu0 %v3036, 112
        %v4176 = vpop.permute.xlu0 %4175
        %4177 = vrot.lane.b32.xlu0 %v3097, 112
        %v4178 = vpop.permute.xlu0 %4177
        %4179 = vrot.lane.b32.xlu0 %v3098, 112
        %v4180 = vpop.permute.xlu0 %4179
        %4181 = vrot.lane.b32.xlu0 %v3099, 112
        %v4182 = vpop.permute.xlu0 %4181
        %4183 = vrot.lane.b32.xlu0 %v3100, 112
        %v4184 = vpop.permute.xlu0 %4183
        %4185 = vrot.lane.b32.xlu0 %v3066, 112
        %v4186 = vpop.permute.xlu0 %4185
        %4187 = vrot.lane.b32.xlu0 %v3101, 112
        %v4188 = vpop.permute.xlu0 %4187
        %4189 = vrot.lane.b32.xlu0 %v3102, 112
        %v4190 = vpop.permute.xlu0 %4189
        %4191 = vrot.lane.b32.xlu0 %v3103, 112
        %v4192 = vpop.permute.xlu0 %4191
        %4193 = vrot.lane.b32.xlu0 %v3104, 112
        %v4194 = vpop.permute.xlu0 %4193
        %4195 = vrot.lane.b32.xlu0 %v3076, 112
        %v4196 = vpop.permute.xlu0 %4195
        %4197 = vrot.lane.b32.xlu0 %v3105, 112
        %v4198 = vpop.permute.xlu0 %4197
        %4199 = vrot.lane.b32.xlu0 %v3106, 112
        %v4200 = vpop.permute.xlu0 %4199
        %4201 = vrot.lane.b32.xlu0 %v3107, 112
        %v4202 = vpop.permute.xlu0 %4201
        %4203 = vrot.lane.b32.xlu0 %v3108, 112
        %v4204 = vpop.permute.xlu0 %4203
        %4205 = vrot.lane.b32.xlu0 %v3086, 112
        %v4206 = vpop.permute.xlu0 %4205
        %4207 = vrot.lane.b32.xlu0 %v3109, 112
        %v4208 = vpop.permute.xlu0 %4207
        %4209 = vrot.lane.b32.xlu0 %v3110, 112
        %v4210 = vpop.permute.xlu0 %4209
        %4211 = vrot.lane.b32.xlu0 %v3111, 112
        %v4212 = vpop.permute.xlu0 %4211
        %4213 = vrot.lane.b32.xlu0 %v3112, 112
        %v4214 = vpop.permute.xlu0 %4213
        %4215 = vrot.lane.b32.xlu0 %v3096, 112
        %v4216 = vpop.permute.xlu0 %4215
        %4217 = vrot.lane.b32.xlu0 %v3169, 112
        %v4218 = vpop.permute.xlu0 %4217
        %4219 = vrot.lane.b32.xlu0 %v3170, 112
        %v4220 = vpop.permute.xlu0 %4219
        %4221 = vrot.lane.b32.xlu0 %v3171, 112
        %v4222 = vpop.permute.xlu0 %4221
        %4223 = vrot.lane.b32.xlu0 %v3172, 112
        %v4224 = vpop.permute.xlu0 %4223
        %4225 = vrot.lane.b32.xlu0 %v3138, 112
        %v4226 = vpop.permute.xlu0 %4225
        %4227 = vrot.lane.b32.xlu0 %v3173, 112
        %v4228 = vpop.permute.xlu0 %4227
        %4229 = vrot.lane.b32.xlu0 %v3174, 112
        %v4230 = vpop.permute.xlu0 %4229
        %4231 = vrot.lane.b32.xlu0 %v3175, 112
        %v4232 = vpop.permute.xlu0 %4231
        %4233 = vrot.lane.b32.xlu0 %v3176, 112
        %v4234 = vpop.permute.xlu0 %4233
        %4235 = vrot.lane.b32.xlu0 %v3148, 112
        %v4236 = vpop.permute.xlu0 %4235
        %4237 = vrot.lane.b32.xlu0 %v3177, 112
        %v4238 = vpop.permute.xlu0 %4237
        %4239 = vrot.lane.b32.xlu0 %v3178, 112
        %v4240 = vpop.permute.xlu0 %4239
        %4241 = vrot.lane.b32.xlu0 %v3179, 112
        %v4242 = vpop.permute.xlu0 %4241
        %4243 = vrot.lane.b32.xlu0 %v3180, 112
        %v4244 = vpop.permute.xlu0 %4243
        %4245 = vrot.lane.b32.xlu0 %v3158, 112
        %v4246 = vpop.permute.xlu0 %4245
        %4247 = vrot.lane.b32.xlu0 %v3181, 112
        %v4248 = vpop.permute.xlu0 %4247
        %4249 = vrot.lane.b32.xlu0 %v3182, 112
        %v4250 = vpop.permute.xlu0 %4249
        %4251 = vrot.lane.b32.xlu0 %v3183, 112
        %v4252 = vpop.permute.xlu0 %4251
        %4253 = vrot.lane.b32.xlu0 %v3184, 112
        %v4254 = vpop.permute.xlu0 %4253
        %4255 = vrot.lane.b32.xlu0 %v3168, 112
        %v4256 = vpop.permute.xlu0 %4255
        %4257 = vrot.lane.b32.xlu0 %v3241, 112
        %v4258 = vpop.permute.xlu0 %4257
        %4259 = vrot.lane.b32.xlu0 %v3242, 112
        %v4260 = vpop.permute.xlu0 %4259
        %4261 = vrot.lane.b32.xlu0 %v3243, 112
        %v4262 = vpop.permute.xlu0 %4261
        %4263 = vrot.lane.b32.xlu0 %v3244, 112
        %v4264 = vpop.permute.xlu0 %4263
        %4265 = vrot.lane.b32.xlu0 %v3210, 112
        %v4266 = vpop.permute.xlu0 %4265
        %4267 = vrot.lane.b32.xlu0 %v3245, 112
        %v4268 = vpop.permute.xlu0 %4267
        %4269 = vrot.lane.b32.xlu0 %v3246, 112
        %v4270 = vpop.permute.xlu0 %4269
        %4271 = vrot.lane.b32.xlu0 %v3247, 112
        %v4272 = vpop.permute.xlu0 %4271
        %4273 = vrot.lane.b32.xlu0 %v3248, 112
        %v4274 = vpop.permute.xlu0 %4273
        %4275 = vrot.lane.b32.xlu0 %v3220, 112
        %v4276 = vpop.permute.xlu0 %4275
        %4277 = vrot.lane.b32.xlu0 %v3249, 112
        %v4278 = vpop.permute.xlu0 %4277
        %4279 = vrot.lane.b32.xlu0 %v3250, 112
        %v4280 = vpop.permute.xlu0 %4279
        %4281 = vrot.lane.b32.xlu0 %v3251, 112
        %v4282 = vpop.permute.xlu0 %4281
        %4283 = vrot.lane.b32.xlu0 %v3252, 112
        %v4284 = vpop.permute.xlu0 %4283
        %4285 = vrot.lane.b32.xlu0 %v3230, 112
        %v4286 = vpop.permute.xlu0 %4285
        %4287 = vrot.lane.b32.xlu0 %v3253, 112
        %v4288 = vpop.permute.xlu0 %4287
        %4289 = vrot.lane.b32.xlu0 %v3254, 112
        %v4290 = vpop.permute.xlu0 %4289
        %4291 = vrot.lane.b32.xlu0 %v3255, 112
        %v4292 = vpop.permute.xlu0 %4291
        %4293 = vrot.lane.b32.xlu0 %v3256, 112
        %v4294 = vpop.permute.xlu0 %4293
        %4295 = vrot.lane.b32.xlu0 %v3240, 112
        %v4296 = vpop.permute.xlu0 %4295
        %v4297 = vsel %vm2127, %v4138, %v4140
        %v4298 = vsel %vm2127, %v4140, %v4142
        %v4299 = vsel %vm2127, %v4142, %v4144
        %v4300 = vsel %vm2127, %v4144, %v4146
        %v4301 = vsel %vm2127, %v4148, %v4150
        %v4302 = vsel %vm2127, %v4150, %v4152
        %v4303 = vsel %vm2127, %v4152, %v4154
        %v4304 = vsel %vm2127, %v4154, %v4156
        %v4305 = vsel %vm2127, %v4158, %v4160
        %v4306 = vsel %vm2127, %v4160, %v4162
        %v4307 = vsel %vm2127, %v4162, %v4164
        %v4308 = vsel %vm2127, %v4164, %v4166
        %v4309 = vsel %vm2127, %v4168, %v4170
        %v4310 = vsel %vm2127, %v4170, %v4172
        %v4311 = vsel %vm2127, %v4172, %v4174
        %v4312 = vsel %vm2127, %v4174, %v4176
        %v4313 = vsel %vm2127, %v4178, %v4180
        %v4314 = vsel %vm2127, %v4180, %v4182
        %v4315 = vsel %vm2127, %v4182, %v4184
        %v4316 = vsel %vm2127, %v4184, %v4186
        %v4317 = vsel %vm2127, %v4188, %v4190
        %v4318 = vsel %vm2127, %v4190, %v4192
        %v4319 = vsel %vm2127, %v4192, %v4194
        %v4320 = vsel %vm2127, %v4194, %v4196
        %v4321 = vsel %vm2127, %v4198, %v4200
        %v4322 = vsel %vm2127, %v4200, %v4202
        %v4323 = vsel %vm2127, %v4202, %v4204
        %v4324 = vsel %vm2127, %v4204, %v4206
        %v4325 = vsel %vm2127, %v4208, %v4210
        %v4326 = vsel %vm2127, %v4210, %v4212
        %v4327 = vsel %vm2127, %v4212, %v4214
        %v4328 = vsel %vm2127, %v4214, %v4216
        %v4329 = vsel %vm2127, %v4218, %v4220
        %v4330 = vsel %vm2127, %v4220, %v4222
        %v4331 = vsel %vm2127, %v4222, %v4224
        %v4332 = vsel %vm2127, %v4224, %v4226
        %v4333 = vsel %vm2127, %v4228, %v4230
        %v4334 = vsel %vm2127, %v4230, %v4232
        %v4335 = vsel %vm2127, %v4232, %v4234
        %v4336 = vsel %vm2127, %v4234, %v4236
        %v4337 = vsel %vm2127, %v4238, %v4240
        %v4338 = vsel %vm2127, %v4240, %v4242
        %v4339 = vsel %vm2127, %v4242, %v4244
        %v4340 = vsel %vm2127, %v4244, %v4246
        %v4341 = vsel %vm2127, %v4248, %v4250
        %v4342 = vsel %vm2127, %v4250, %v4252
        %v4343 = vsel %vm2127, %v4252, %v4254
        %v4344 = vsel %vm2127, %v4254, %v4256
        %v4345 = vsel %vm2127, %v4258, %v4260
        %v4346 = vsel %vm2127, %v4260, %v4262
        %v4347 = vsel %vm2127, %v4262, %v4264
        %v4348 = vsel %vm2127, %v4264, %v4266
        %v4349 = vsel %vm2127, %v4268, %v4270
        %v4350 = vsel %vm2127, %v4270, %v4272
        %v4351 = vsel %vm2127, %v4272, %v4274
        %v4352 = vsel %vm2127, %v4274, %v4276
        %v4353 = vsel %vm2127, %v4278, %v4280
        %v4354 = vsel %vm2127, %v4280, %v4282
        %v4355 = vsel %vm2127, %v4282, %v4284
        %v4356 = vsel %vm2127, %v4284, %v4286
        %v4357 = vsel %vm2127, %v4288, %v4290
        %v4358 = vsel %vm2127, %v4290, %v4292
        %v4359 = vsel %vm2127, %v4292, %v4294
        %v4360 = vsel %vm2127, %v4294, %v4296
        %v4425 = vld [vmem:[%s377] sm:$0xff]
        %v4426 = vld [vmem:[%s377 + $0x8] sm:$0xff]
        %v4427 = vld [vmem:[%s377 + $0x10] sm:$0xff]
        %v4428 = vld [vmem:[%s377 + $0x18] sm:$0xff]
        %v4429 = vld [vmem:[%s377 + $0x20] sm:$0xff]
        %v4430 = vld [vmem:[%s377 + $0x28] sm:$0xff]
        %v4431 = vld [vmem:[%s377 + $0x30] sm:$0xff]
        %v4432 = vld [vmem:[%s377 + $0x38] sm:$0xff]
        %v4433 = vld [vmem:[%s377 + $0x40] sm:$0xff]
        %v4434 = vld [vmem:[%s377 + $0x48] sm:$0xff]
        %v4435 = vld [vmem:[%s377 + $0x50] sm:$0xff]
        %v4436 = vld [vmem:[%s377 + $0x58] sm:$0xff]
        %v4437 = vld [vmem:[%s377 + $0x60] sm:$0xff]
        %v4438 = vld [vmem:[%s377 + $0x68] sm:$0xff]
        %v4439 = vld [vmem:[%s377 + $0x70] sm:$0xff]
        %v4440 = vld [vmem:[%s377 + $0x78] sm:$0xff]
        %v4441 = vld [vmem:[%s377 + $0x80] sm:$0xff]
        %v4442 = vld [vmem:[%s377 + $0x88] sm:$0xff]
        %v4443 = vld [vmem:[%s377 + $0x90] sm:$0xff]
        %v4444 = vld [vmem:[%s377 + $0x98] sm:$0xff]
        %v4445 = vld [vmem:[%s377 + $0xa0] sm:$0xff]
        %v4446 = vld [vmem:[%s377 + $0xa8] sm:$0xff]
        %v4447 = vld [vmem:[%s377 + $0xb0] sm:$0xff]
        %v4448 = vld [vmem:[%s377 + $0xb8] sm:$0xff]
        %v4449 = vld [vmem:[%s377 + $0xc0] sm:$0xff]
        %v4450 = vld [vmem:[%s377 + $0xc8] sm:$0xff]
        %v4451 = vld [vmem:[%s377 + $0xd0] sm:$0xff]
        %v4452 = vld [vmem:[%s377 + $0xd8] sm:$0xff]
        %v4453 = vld [vmem:[%s377 + $0xe0] sm:$0xff]
        %v4454 = vld [vmem:[%s377 + $0xe8] sm:$0xff]
        %v4455 = vld [vmem:[%s377 + $0xf0] sm:$0xff]
        %v4456 = vld [vmem:[%s377 + $0xf8] sm:$0xff]
        %v4457 = vld [vmem:[%s377 + $0x100] sm:$0xff]
        %v4458 = vld [vmem:[%s377 + $0x108] sm:$0xff]
        %v4459 = vld [vmem:[%s377 + $0x110] sm:$0xff]
        %v4460 = vld [vmem:[%s377 + $0x118] sm:$0xff]
        %v4461 = vld [vmem:[%s377 + $0x120] sm:$0xff]
        %v4462 = vld [vmem:[%s377 + $0x128] sm:$0xff]
        %v4463 = vld [vmem:[%s377 + $0x130] sm:$0xff]
        %v4464 = vld [vmem:[%s377 + $0x138] sm:$0xff]
        %v4465 = vld [vmem:[%s377 + $0x140] sm:$0xff]
        %v4466 = vld [vmem:[%s377 + $0x148] sm:$0xff]
        %v4467 = vld [vmem:[%s377 + $0x150] sm:$0xff]
        %v4468 = vld [vmem:[%s377 + $0x158] sm:$0xff]
        %v4469 = vld [vmem:[%s377 + $0x160] sm:$0xff]
        %v4470 = vld [vmem:[%s377 + $0x168] sm:$0xff]
        %v4471 = vld [vmem:[%s377 + $0x170] sm:$0xff]
        %v4472 = vld [vmem:[%s377 + $0x178] sm:$0xff]
        %v4473 = vld [vmem:[%s377 + $0x180] sm:$0xff]
        %v4474 = vld [vmem:[%s377 + $0x188] sm:$0xff]
        %v4475 = vld [vmem:[%s377 + $0x190] sm:$0xff]
        %v4476 = vld [vmem:[%s377 + $0x198] sm:$0xff]
        %v4477 = vld [vmem:[%s377 + $0x1a0] sm:$0xff]
        %v4478 = vld [vmem:[%s377 + $0x1a8] sm:$0xff]
        %v4479 = vld [vmem:[%s377 + $0x1b0] sm:$0xff]
        %v4480 = vld [vmem:[%s377 + $0x1b8] sm:$0xff]
        %v4481 = vld [vmem:[%s377 + $0x1c0] sm:$0xff]
        %v4482 = vld [vmem:[%s377 + $0x1c8] sm:$0xff]
        %v4483 = vld [vmem:[%s377 + $0x1d0] sm:$0xff]
        %v4484 = vld [vmem:[%s377 + $0x1d8] sm:$0xff]
        %v4485 = vld [vmem:[%s377 + $0x1e0] sm:$0xff]
        %v4486 = vld [vmem:[%s377 + $0x1e8] sm:$0xff]
        %v4487 = vld [vmem:[%s377 + $0x1f0] sm:$0xff]
        %v4488 = vld [vmem:[%s377 + $0x1f8] sm:$0xff]
        %v4489 = vld [vmem:[%s377 + $0x200] sm:$0xff]
        %v4490 = vld [vmem:[%s377 + $0x208] sm:$0xff]
        %v4491 = vld [vmem:[%s377 + $0x210] sm:$0xff]
        %v4492 = vld [vmem:[%s377 + $0x218] sm:$0xff]
        %v4493 = vld [vmem:[%s377 + $0x220] sm:$0xff]
        %v4494 = vld [vmem:[%s377 + $0x228] sm:$0xff]
        %v4495 = vld [vmem:[%s377 + $0x230] sm:$0xff]
        %v4496 = vld [vmem:[%s377 + $0x238] sm:$0xff]
        %v4497 = vld [vmem:[%s377 + $0x240] sm:$0xff]
        %v4498 = vld [vmem:[%s377 + $0x248] sm:$0xff]
        %v4499 = vld [vmem:[%s377 + $0x250] sm:$0xff]
        %v4500 = vld [vmem:[%s377 + $0x258] sm:$0xff]
        %v4501 = vld [vmem:[%s377 + $0x260] sm:$0xff]
        %v4502 = vld [vmem:[%s377 + $0x268] sm:$0xff]
        %v4503 = vld [vmem:[%s377 + $0x270] sm:$0xff]
        %v4504 = vld [vmem:[%s377 + $0x278] sm:$0xff]
        %v4505 = vld [vmem:[%s447] sm:$0xff]
        %v4506 = vld [vmem:[%s447 + $0x8] sm:$0xff]
        %v4507 = vld [vmem:[%s447 + $0x10] sm:$0xff]
        %v4508 = vld [vmem:[%s447 + $0x18] sm:$0xff]
        %v4509 = vld [vmem:[%s447 + $0x20] sm:$0xff]
        %v4510 = vld [vmem:[%s447 + $0x28] sm:$0xff]
        %v4511 = vld [vmem:[%s447 + $0x30] sm:$0xff]
        %v4512 = vld [vmem:[%s447 + $0x38] sm:$0xff]
        %v4513 = vld [vmem:[%s447 + $0x40] sm:$0xff]
        %v4514 = vld [vmem:[%s447 + $0x48] sm:$0xff]
        %v4515 = vld [vmem:[%s447 + $0x50] sm:$0xff]
        %v4516 = vld [vmem:[%s447 + $0x58] sm:$0xff]
        %v4517 = vld [vmem:[%s447 + $0x60] sm:$0xff]
        %v4518 = vld [vmem:[%s447 + $0x68] sm:$0xff]
        %v4519 = vld [vmem:[%s447 + $0x70] sm:$0xff]
        %v4520 = vld [vmem:[%s447 + $0x78] sm:$0xff]
        %4522 = vset.pattern.permute.xlu0 0
        %4523 = vperm.xlu0 %4522, %v4505
        %v4524 = vpop.permute.xlu0 %4523
        %4527 = vset.pattern.permute.xlu0 0
        %4528 = vperm.xlu0 %4527, %v4506
        %v4529 = vpop.permute.xlu0 %4528
        %4532 = vset.pattern.permute.xlu0 0
        %4533 = vperm.xlu0 %4532, %v4507
        %v4534 = vpop.permute.xlu0 %4533
        %4537 = vset.pattern.permute.xlu0 0
        %4538 = vperm.xlu0 %4537, %v4508
        %v4539 = vpop.permute.xlu0 %4538
        %4542 = vset.pattern.permute.xlu0 0
        %4543 = vperm.xlu0 %4542, %v4509
        %v4544 = vpop.permute.xlu0 %4543
        %4547 = vset.pattern.permute.xlu0 0
        %4548 = vperm.xlu0 %4547, %v4510
        %v4549 = vpop.permute.xlu0 %4548
        %4552 = vset.pattern.permute.xlu0 0
        %4553 = vperm.xlu0 %4552, %v4511
        %v4554 = vpop.permute.xlu0 %4553
        %4557 = vset.pattern.permute.xlu0 0
        %4558 = vperm.xlu0 %4557, %v4512
        %v4559 = vpop.permute.xlu0 %4558
        %4562 = vset.pattern.permute.xlu0 0
        %4563 = vperm.xlu0 %4562, %v4513
        %v4564 = vpop.permute.xlu0 %4563
        %4567 = vset.pattern.permute.xlu0 0
        %4568 = vperm.xlu0 %4567, %v4514
        %v4569 = vpop.permute.xlu0 %4568
        %4572 = vset.pattern.permute.xlu0 0
        %4573 = vperm.xlu0 %4572, %v4515
        %v4574 = vpop.permute.xlu0 %4573
        %4577 = vset.pattern.permute.xlu0 0
        %4578 = vperm.xlu0 %4577, %v4516
        %v4579 = vpop.permute.xlu0 %4578
        %4582 = vset.pattern.permute.xlu0 0
        %4583 = vperm.xlu0 %4582, %v4517
        %v4584 = vpop.permute.xlu0 %4583
        %4587 = vset.pattern.permute.xlu0 0
        %4588 = vperm.xlu0 %4587, %v4518
        %v4589 = vpop.permute.xlu0 %4588
        %4592 = vset.pattern.permute.xlu0 0
        %4593 = vperm.xlu0 %4592, %v4519
        %v4594 = vpop.permute.xlu0 %4593
        %4597 = vset.pattern.permute.xlu0 0
        %4598 = vperm.xlu0 %4597, %v4520
        %v4599 = vpop.permute.xlu0 %4598
        %v4681 = vunpack.c.l.b16 %v4425
        %v4682 = vunpack.c.h.b16 %v4425
        %v4683 = vunpack.c.l.b16 %v4426
        %v4684 = vunpack.c.h.b16 %v4426
        %v4685 = vunpack.c.l.b16 %v4427
        %v4686 = vunpack.c.h.b16 %v4427
        %v4687 = vunpack.c.l.b16 %v4428
        %v4688 = vunpack.c.h.b16 %v4428
        %v4689 = vunpack.c.l.b16 %v4429
        %v4690 = vunpack.c.h.b16 %v4429
        %v4691 = vunpack.c.l.b16 %v4430
        %v4692 = vunpack.c.h.b16 %v4430
        %v4693 = vunpack.c.l.b16 %v4431
        %v4694 = vunpack.c.h.b16 %v4431
        %v4695 = vunpack.c.l.b16 %v4432
        %v4696 = vunpack.c.h.b16 %v4432
        %v4697 = vunpack.c.l.b16 %v4433
        %v4698 = vunpack.c.h.b16 %v4433
        %v4699 = vunpack.c.l.b16 %v4434
        %v4700 = vunpack.c.h.b16 %v4434
        %v4701 = vunpack.c.l.b16 %v4435
        %v4702 = vunpack.c.h.b16 %v4435
        %v4703 = vunpack.c.l.b16 %v4436
        %v4704 = vunpack.c.h.b16 %v4436
        %v4705 = vunpack.c.l.b16 %v4437
        %v4706 = vunpack.c.h.b16 %v4437
        %v4707 = vunpack.c.l.b16 %v4438
        %v4708 = vunpack.c.h.b16 %v4438
        %v4709 = vunpack.c.l.b16 %v4439
        %v4710 = vunpack.c.h.b16 %v4439
        %v4711 = vunpack.c.l.b16 %v4440
        %v4712 = vunpack.c.h.b16 %v4440
        %v4713 = vunpack.c.l.b16 %v4441
        %v4714 = vunpack.c.h.b16 %v4441
        %v4715 = vunpack.c.l.b16 %v4442
        %v4716 = vunpack.c.h.b16 %v4442
        %v4717 = vunpack.c.l.b16 %v4443
        %v4718 = vunpack.c.h.b16 %v4443
        %v4719 = vunpack.c.l.b16 %v4444
        %v4720 = vunpack.c.h.b16 %v4444
        %v4721 = vunpack.c.l.b16 %v4445
        %v4722 = vunpack.c.h.b16 %v4445
        %v4723 = vunpack.c.l.b16 %v4446
        %v4724 = vunpack.c.h.b16 %v4446
        %v4725 = vunpack.c.l.b16 %v4447
        %v4726 = vunpack.c.h.b16 %v4447
        %v4727 = vunpack.c.l.b16 %v4448
        %v4728 = vunpack.c.h.b16 %v4448
        %v4729 = vunpack.c.l.b16 %v4449
        %v4730 = vunpack.c.h.b16 %v4449
        %v4731 = vunpack.c.l.b16 %v4450
        %v4732 = vunpack.c.h.b16 %v4450
        %v4733 = vunpack.c.l.b16 %v4451
        %v4734 = vunpack.c.h.b16 %v4451
        %v4735 = vunpack.c.l.b16 %v4452
        %v4736 = vunpack.c.h.b16 %v4452
        %v4737 = vunpack.c.l.b16 %v4453
        %v4738 = vunpack.c.h.b16 %v4453
        %v4739 = vunpack.c.l.b16 %v4454
        %v4740 = vunpack.c.h.b16 %v4454
        %v4741 = vunpack.c.l.b16 %v4455
        %v4742 = vunpack.c.h.b16 %v4455
        %v4743 = vunpack.c.l.b16 %v4456
        %v4744 = vunpack.c.h.b16 %v4456
        %v4745 = vunpack.c.l.b16 %v4457
        %v4746 = vunpack.c.h.b16 %v4457
        %v4747 = vunpack.c.l.b16 %v4458
        %v4748 = vunpack.c.h.b16 %v4458
        %v4749 = vunpack.c.l.b16 %v4459
        %v4750 = vunpack.c.h.b16 %v4459
        %v4751 = vunpack.c.l.b16 %v4460
        %v4752 = vunpack.c.h.b16 %v4460
        %v4753 = vunpack.c.l.b16 %v4461
        %v4754 = vunpack.c.h.b16 %v4461
        %v4755 = vunpack.c.l.b16 %v4462
        %v4756 = vunpack.c.h.b16 %v4462
        %v4757 = vunpack.c.l.b16 %v4463
        %v4758 = vunpack.c.h.b16 %v4463
        %v4759 = vunpack.c.l.b16 %v4464
        %v4760 = vunpack.c.h.b16 %v4464
        %v4761 = vunpack.c.l.b16 %v4465
        %v4762 = vunpack.c.h.b16 %v4465
        %v4763 = vunpack.c.l.b16 %v4466
        %v4764 = vunpack.c.h.b16 %v4466
        %v4765 = vunpack.c.l.b16 %v4467
        %v4766 = vunpack.c.h.b16 %v4467
        %v4767 = vunpack.c.l.b16 %v4468
        %v4768 = vunpack.c.h.b16 %v4468
        %v4769 = vunpack.c.l.b16 %v4469
        %v4770 = vunpack.c.h.b16 %v4469
        %v4771 = vunpack.c.l.b16 %v4470
        %v4772 = vunpack.c.h.b16 %v4470
        %v4773 = vunpack.c.l.b16 %v4471
        %v4774 = vunpack.c.h.b16 %v4471
        %v4775 = vunpack.c.l.b16 %v4472
        %v4776 = vunpack.c.h.b16 %v4472
        %v4777 = vunpack.c.l.b16 %v4473
        %v4778 = vunpack.c.h.b16 %v4473
        %v4779 = vunpack.c.l.b16 %v4474
        %v4780 = vunpack.c.h.b16 %v4474
        %v4781 = vunpack.c.l.b16 %v4475
        %v4782 = vunpack.c.h.b16 %v4475
        %v4783 = vunpack.c.l.b16 %v4476
        %v4784 = vunpack.c.h.b16 %v4476
        %v4785 = vunpack.c.l.b16 %v4477
        %v4786 = vunpack.c.h.b16 %v4477
        %v4787 = vunpack.c.l.b16 %v4478
        %v4788 = vunpack.c.h.b16 %v4478
        %v4789 = vunpack.c.l.b16 %v4479
        %v4790 = vunpack.c.h.b16 %v4479
        %v4791 = vunpack.c.l.b16 %v4480
        %v4792 = vunpack.c.h.b16 %v4480
        %v4793 = vunpack.c.l.b16 %v4481
        %v4794 = vunpack.c.h.b16 %v4481
        %v4795 = vunpack.c.l.b16 %v4482
        %v4796 = vunpack.c.h.b16 %v4482
        %v4797 = vunpack.c.l.b16 %v4483
        %v4798 = vunpack.c.h.b16 %v4483
        %v4799 = vunpack.c.l.b16 %v4484
        %v4800 = vunpack.c.h.b16 %v4484
        %v4801 = vunpack.c.l.b16 %v4485
        %v4802 = vunpack.c.h.b16 %v4485
        %v4803 = vunpack.c.l.b16 %v4486
        %v4804 = vunpack.c.h.b16 %v4486
        %v4805 = vunpack.c.l.b16 %v4487
        %v4806 = vunpack.c.h.b16 %v4487
        %v4807 = vunpack.c.l.b16 %v4488
        %v4808 = vunpack.c.h.b16 %v4488
        %v4809 = vunpack.c.l.b16 %v4489
        %v4810 = vunpack.c.h.b16 %v4489
        %v4811 = vunpack.c.l.b16 %v4490
        %v4812 = vunpack.c.h.b16 %v4490
        %v4813 = vunpack.c.l.b16 %v4491
        %v4814 = vunpack.c.h.b16 %v4491
        %v4815 = vunpack.c.l.b16 %v4492
        %v4816 = vunpack.c.h.b16 %v4492
        %v4817 = vunpack.c.l.b16 %v4493
        %v4818 = vunpack.c.h.b16 %v4493
        %v4819 = vunpack.c.l.b16 %v4494
        %v4820 = vunpack.c.h.b16 %v4494
        %v4821 = vunpack.c.l.b16 %v4495
        %v4822 = vunpack.c.h.b16 %v4495
        %v4823 = vunpack.c.l.b16 %v4496
        %v4824 = vunpack.c.h.b16 %v4496
        %v4825 = vunpack.c.l.b16 %v4497
        %v4826 = vunpack.c.h.b16 %v4497
        %v4827 = vunpack.c.l.b16 %v4498
        %v4828 = vunpack.c.h.b16 %v4498
        %v4829 = vunpack.c.l.b16 %v4499
        %v4830 = vunpack.c.h.b16 %v4499
        %v4831 = vunpack.c.l.b16 %v4500
        %v4832 = vunpack.c.h.b16 %v4500
        %v4833 = vunpack.c.l.b16 %v4501
        %v4834 = vunpack.c.h.b16 %v4501
        %v4835 = vunpack.c.l.b16 %v4502
        %v4836 = vunpack.c.h.b16 %v4502
        %v4837 = vunpack.c.l.b16 %v4503
        %v4838 = vunpack.c.h.b16 %v4503
        %v4839 = vunpack.c.l.b16 %v4504
        %v4840 = vunpack.c.h.b16 %v4504
        %v4841 = vpack.c.b16 %v4691, %v4681
        %v4842 = vpack.c.b16 %v4692, %v4682
        %v4843 = vpack.c.b16 %v4693, %v4683
        %v4844 = vpack.c.b16 %v4694, %v4684
        %v4845 = vpack.c.b16 %v4695, %v4685
        %v4846 = vpack.c.b16 %v4696, %v4686
        %v4847 = vpack.c.b16 %v4697, %v4687
        %v4848 = vpack.c.b16 %v4698, %v4688
        %v4849 = vpack.c.b16 %v4699, %v4689
        %v4850 = vpack.c.b16 %v4700, %v4690
        %v4851 = vpack.c.b16 %v4711, %v4701
        %v4852 = vpack.c.b16 %v4712, %v4702
        %v4853 = vpack.c.b16 %v4713, %v4703
        %v4854 = vpack.c.b16 %v4714, %v4704
        %v4855 = vpack.c.b16 %v4715, %v4705
        %v4856 = vpack.c.b16 %v4716, %v4706
        %v4857 = vpack.c.b16 %v4717, %v4707
        %v4858 = vpack.c.b16 %v4718, %v4708
        %v4859 = vpack.c.b16 %v4719, %v4709
        %v4860 = vpack.c.b16 %v4720, %v4710
        %v4861 = vpack.c.b16 %v4731, %v4721
        %v4862 = vpack.c.b16 %v4732, %v4722
        %v4863 = vpack.c.b16 %v4733, %v4723
        %v4864 = vpack.c.b16 %v4734, %v4724
        %v4865 = vpack.c.b16 %v4735, %v4725
        %v4866 = vpack.c.b16 %v4736, %v4726
        %v4867 = vpack.c.b16 %v4737, %v4727
        %v4868 = vpack.c.b16 %v4738, %v4728
        %v4869 = vpack.c.b16 %v4739, %v4729
        %v4870 = vpack.c.b16 %v4740, %v4730
        %v4871 = vpack.c.b16 %v4751, %v4741
        %v4872 = vpack.c.b16 %v4752, %v4742
        %v4873 = vpack.c.b16 %v4753, %v4743
        %v4874 = vpack.c.b16 %v4754, %v4744
        %v4875 = vpack.c.b16 %v4755, %v4745
        %v4876 = vpack.c.b16 %v4756, %v4746
        %v4877 = vpack.c.b16 %v4757, %v4747
        %v4878 = vpack.c.b16 %v4758, %v4748
        %v4879 = vpack.c.b16 %v4759, %v4749
        %v4880 = vpack.c.b16 %v4760, %v4750
        %v4881 = vpack.c.b16 %v4771, %v4761
        %v4882 = vpack.c.b16 %v4772, %v4762
        %v4883 = vpack.c.b16 %v4773, %v4763
        %v4884 = vpack.c.b16 %v4774, %v4764
        %v4885 = vpack.c.b16 %v4775, %v4765
        %v4886 = vpack.c.b16 %v4776, %v4766
        %v4887 = vpack.c.b16 %v4777, %v4767
        %v4888 = vpack.c.b16 %v4778, %v4768
        %v4889 = vpack.c.b16 %v4779, %v4769
        %v4890 = vpack.c.b16 %v4780, %v4770
        %v4891 = vpack.c.b16 %v4791, %v4781
        %v4892 = vpack.c.b16 %v4792, %v4782
        %v4893 = vpack.c.b16 %v4793, %v4783
        %v4894 = vpack.c.b16 %v4794, %v4784
        %v4895 = vpack.c.b16 %v4795, %v4785
        %v4896 = vpack.c.b16 %v4796, %v4786
        %v4897 = vpack.c.b16 %v4797, %v4787
        %v4898 = vpack.c.b16 %v4798, %v4788
        %v4899 = vpack.c.b16 %v4799, %v4789
        %v4900 = vpack.c.b16 %v4800, %v4790
        %v4901 = vpack.c.b16 %v4811, %v4801
        %v4902 = vpack.c.b16 %v4812, %v4802
        %v4903 = vpack.c.b16 %v4813, %v4803
        %v4904 = vpack.c.b16 %v4814, %v4804
        %v4905 = vpack.c.b16 %v4815, %v4805
        %v4906 = vpack.c.b16 %v4816, %v4806
        %v4907 = vpack.c.b16 %v4817, %v4807
        %v4908 = vpack.c.b16 %v4818, %v4808
        %v4909 = vpack.c.b16 %v4819, %v4809
        %v4910 = vpack.c.b16 %v4820, %v4810
        %v4911 = vpack.c.b16 %v4831, %v4821
        %v4912 = vpack.c.b16 %v4832, %v4822
        %v4913 = vpack.c.b16 %v4833, %v4823
        %v4914 = vpack.c.b16 %v4834, %v4824
        %v4915 = vpack.c.b16 %v4835, %v4825
        %v4916 = vpack.c.b16 %v4836, %v4826
        %v4917 = vpack.c.b16 %v4837, %v4827
        %v4918 = vpack.c.b16 %v4838, %v4828
        %v4919 = vpack.c.b16 %v4839, %v4829
        %v4920 = vpack.c.b16 %v4840, %v4830
        %5001 = vmatprep.subr.bf16.mxu0 %v3110
        %5002 = vmatpush1.bf16.msra.mxu0 %v3109
        %5003 = vmatprep.subr.bf16.mxu0 %v3106
        %5004 = vmatpush1.bf16.msra.mxu0 %v3105
        %5005 = vmatprep.subr.bf16.mxu0 %v3102
        %5006 = vmatpush1.bf16.msra.mxu0 %v3101
        %5007 = vmatprep.subr.bf16.mxu0 %v3098
        %5008 = vmatpush1.bf16.msra.mxu0 %v3097
        %5009 = vmatprep.subr.bf16.mxu0 %v3033
        %5010 = vmatpush1.bf16.msra.mxu0 %v3032
        %5011 = vmatprep.subr.bf16.mxu0 %v3028
        %5012 = vmatpush1.bf16.msra.mxu0 %v3027
        %5013 = vmatprep.subr.bf16.mxu0 %v3023
        %5014 = vmatpush1.bf16.msra.mxu0 %v3022
        %5015 = vmatprep.subr.bf16.mxu0 %v3018
        %5016 = vmatpush1.bf16.msra.mxu0 %v3017
        %5017 = vmatprep.subr.bf16.mxu0 %v3254
        %5018 = vmatpush2.bf16.msra.mxu0 %v3253
        %5019 = vmatprep.subr.bf16.mxu0 %v3250
        %5020 = vmatpush2.bf16.msra.mxu0 %v3249
        %5021 = vmatprep.subr.bf16.mxu0 %v3246
        %5022 = vmatpush2.bf16.msra.mxu0 %v3245
        %5023 = vmatprep.subr.bf16.mxu0 %v3242
        %5024 = vmatpush2.bf16.msra.mxu0 %v3241
        %5025 = vmatprep.subr.bf16.mxu0 %v3182
        %5026 = vmatpush2.bf16.msra.mxu0 %v3181
        %5027 = vmatprep.subr.bf16.mxu0 %v3178
        %5028 = vmatpush2.bf16.msra.mxu0 %v3177
        %5029 = vmatprep.subr.bf16.mxu0 %v3174
        %5030 = vmatpush2.bf16.msra.mxu0 %v3173
        %5031 = vmatprep.subr.bf16.mxu0 %v3170
        %5032 = vmatpush2.bf16.msra.mxu0 %v3169
        %5033 = vmatprep.mubr.bf16.mxu0 %v4842
        %5034 = vmatmul.mubr.bf16.gmra.mxu0 %v4841
        %v5035 = vpop.f32.mrf.mxu0
        %v5036 = vadd.f32 %v4524, %v5035
        %v5037 = vpop.f32.mrf.mxu0
        %v5038 = vadd.f32 %v4524, %v5037
        %v5039 = vpop.f32.mrf.mxu0
        %v5040 = vadd.f32 %v4529, %v5039
        %v5041 = vpop.f32.mrf.mxu0
        %v5042 = vadd.f32 %v4529, %v5041
        %5043 = vmatprep.mubr.bf16.mxu0 %v4852
        %5044 = vmatmul.mubr.bf16.gmra.mxu0 %v4851
        %v5045 = vpop.f32.mrf.mxu0
        %v5046 = vadd.f32 %v4534, %v5045
        %v5047 = vpop.f32.mrf.mxu0
        %v5048 = vadd.f32 %v4534, %v5047
        %v5049 = vpop.f32.mrf.mxu0
        %v5050 = vadd.f32 %v4539, %v5049
        %v5051 = vpop.f32.mrf.mxu0
        %v5052 = vadd.f32 %v4539, %v5051
        %5053 = vmatprep.mubr.bf16.mxu0 %v4862
        %5054 = vmatmul.mubr.bf16.gmra.mxu0 %v4861
        %v5055 = vpop.f32.mrf.mxu0
        %v5056 = vadd.f32 %v4544, %v5055
        %v5057 = vpop.f32.mrf.mxu0
        %v5058 = vadd.f32 %v4544, %v5057
        %v5059 = vpop.f32.mrf.mxu0
        %v5060 = vadd.f32 %v4549, %v5059
        %v5061 = vpop.f32.mrf.mxu0
        %v5062 = vadd.f32 %v4549, %v5061
        %5063 = vmatprep.mubr.bf16.mxu0 %v4872
        %5064 = vmatmul.mubr.bf16.gmra.mxu0 %v4871
        %v5065 = vpop.f32.mrf.mxu0
        %v5066 = vadd.f32 %v4554, %v5065
        %v5067 = vpop.f32.mrf.mxu0
        %v5068 = vadd.f32 %v4554, %v5067
        %v5069 = vpop.f32.mrf.mxu0
        %v5070 = vadd.f32 %v4559, %v5069
        %v5071 = vpop.f32.mrf.mxu0
        %v5072 = vadd.f32 %v4559, %v5071
        %5073 = vmatprep.mubr.bf16.mxu0 %v4882
        %5074 = vmatmul.mubr.bf16.gmra.mxu0 %v4881
        %v5075 = vpop.f32.mrf.mxu0
        %v5076 = vadd.f32 %v4564, %v5075
        %v5077 = vpop.f32.mrf.mxu0
        %v5078 = vadd.f32 %v4564, %v5077
        %v5079 = vpop.f32.mrf.mxu0
        %v5080 = vadd.f32 %v4569, %v5079
        %v5081 = vpop.f32.mrf.mxu0
        %v5082 = vadd.f32 %v4569, %v5081
        %5083 = vmatprep.mubr.bf16.mxu0 %v4892
        %5084 = vmatmul.mubr.bf16.gmra.mxu0 %v4891
        %v5085 = vpop.f32.mrf.mxu0
        %v5086 = vadd.f32 %v4574, %v5085
        %v5087 = vpop.f32.mrf.mxu0
        %v5088 = vadd.f32 %v4574, %v5087
        %v5089 = vpop.f32.mrf.mxu0
        %v5090 = vadd.f32 %v4579, %v5089
        %v5091 = vpop.f32.mrf.mxu0
        %v5092 = vadd.f32 %v4579, %v5091
        %5093 = vmatprep.mubr.bf16.mxu0 %v4902
        %5094 = vmatmul.mubr.bf16.gmra.mxu0 %v4901
        %v5095 = vpop.f32.mrf.mxu0
        %v5096 = vadd.f32 %v4584, %v5095
        %v5097 = vpop.f32.mrf.mxu0
        %v5098 = vadd.f32 %v4584, %v5097
        %v5099 = vpop.f32.mrf.mxu0
        %v5100 = vadd.f32 %v4589, %v5099
        %v5101 = vpop.f32.mrf.mxu0
        %v5102 = vadd.f32 %v4589, %v5101
        %5103 = vmatprep.mubr.bf16.mxu0 %v4912
        %5104 = vmatmul.mubr.bf16.gmra.mxu0 %v4911
        %v5105 = vpop.f32.mrf.mxu0
        %v5106 = vadd.f32 %v4594, %v5105
        %v5107 = vpop.f32.mrf.mxu0
        %v5108 = vadd.f32 %v4594, %v5107
        %v5109 = vpop.f32.mrf.mxu0
        %v5110 = vadd.f32 %v4599, %v5109
        %v5111 = vpop.f32.mrf.mxu0
        %v5112 = vadd.f32 %v4599, %v5111
        %5113 = vdwg.mxu0
        %5114 = vmatprep.subr.bf16.mxu0 %v3398
        %5115 = vmatpush1.bf16.msra.mxu0 %v3397
        %5116 = vmatprep.subr.bf16.mxu0 %v3394
        %5117 = vmatpush1.bf16.msra.mxu0 %v3393
        %5118 = vmatprep.subr.bf16.mxu0 %v3390
        %5119 = vmatpush1.bf16.msra.mxu0 %v3389
        %5120 = vmatprep.subr.bf16.mxu0 %v3386
        %5121 = vmatpush1.bf16.msra.mxu0 %v3385
        %5122 = vmatprep.subr.bf16.mxu0 %v3326
        %5123 = vmatpush1.bf16.msra.mxu0 %v3325
        %5124 = vmatprep.subr.bf16.mxu0 %v3322
        %5125 = vmatpush1.bf16.msra.mxu0 %v3321
        %5126 = vmatprep.subr.bf16.mxu0 %v3318
        %5127 = vmatpush1.bf16.msra.mxu0 %v3317
        %5128 = vmatprep.subr.bf16.mxu0 %v3314
        %5129 = vmatpush1.bf16.msra.mxu0 %v3313
        %5130 = vmatprep.subr.bf16.mxu0 %v3542
        %5131 = vmatpush2.bf16.msra.mxu0 %v3541
        %5132 = vmatprep.subr.bf16.mxu0 %v3538
        %5133 = vmatpush2.bf16.msra.mxu0 %v3537
        %5134 = vmatprep.subr.bf16.mxu0 %v3534
        %5135 = vmatpush2.bf16.msra.mxu0 %v3533
        %5136 = vmatprep.subr.bf16.mxu0 %v3530
        %5137 = vmatpush2.bf16.msra.mxu0 %v3529
        %5138 = vmatprep.subr.bf16.mxu0 %v3470
        %5139 = vmatpush2.bf16.msra.mxu0 %v3469
        %5140 = vmatprep.subr.bf16.mxu0 %v3466
        %5141 = vmatpush2.bf16.msra.mxu0 %v3465
        %5142 = vmatprep.subr.bf16.mxu0 %v3462
        %5143 = vmatpush2.bf16.msra.mxu0 %v3461
        %5144 = vmatprep.subr.bf16.mxu0 %v3458
        %5145 = vmatpush2.bf16.msra.mxu0 %v3457
        %5146 = vmatprep.mubr.bf16.mxu0 %v4844
        %5147 = vmatmul.mubr.bf16.gmra.mxu0 %v4843
        %v5148 = vpop.f32.mrf.mxu0
        %v5149 = vadd.f32 %v5036, %v5148
        %v5150 = vpop.f32.mrf.mxu0
        %v5151 = vadd.f32 %v5038, %v5150
        %v5152 = vpop.f32.mrf.mxu0
        %v5153 = vadd.f32 %v5040, %v5152
        %v5154 = vpop.f32.mrf.mxu0
        %v5155 = vadd.f32 %v5042, %v5154
        %5156 = vmatprep.mubr.bf16.mxu0 %v4854
        %5157 = vmatmul.mubr.bf16.gmra.mxu0 %v4853
        %v5158 = vpop.f32.mrf.mxu0
        %v5159 = vadd.f32 %v5046, %v5158
        %v5160 = vpop.f32.mrf.mxu0
        %v5161 = vadd.f32 %v5048, %v5160
        %v5162 = vpop.f32.mrf.mxu0
        %v5163 = vadd.f32 %v5050, %v5162
        %v5164 = vpop.f32.mrf.mxu0
        %v5165 = vadd.f32 %v5052, %v5164
        %5166 = vmatprep.mubr.bf16.mxu0 %v4864
        %5167 = vmatmul.mubr.bf16.gmra.mxu0 %v4863
        %v5168 = vpop.f32.mrf.mxu0
        %v5169 = vadd.f32 %v5056, %v5168
        %v5170 = vpop.f32.mrf.mxu0
        %v5171 = vadd.f32 %v5058, %v5170
        %v5172 = vpop.f32.mrf.mxu0
        %v5173 = vadd.f32 %v5060, %v5172
        %v5174 = vpop.f32.mrf.mxu0
        %v5175 = vadd.f32 %v5062, %v5174
        %5176 = vmatprep.mubr.bf16.mxu0 %v4874
        %5177 = vmatmul.mubr.bf16.gmra.mxu0 %v4873
        %v5178 = vpop.f32.mrf.mxu0
        %v5179 = vadd.f32 %v5066, %v5178
        %v5180 = vpop.f32.mrf.mxu0
        %v5181 = vadd.f32 %v5068, %v5180
        %v5182 = vpop.f32.mrf.mxu0
        %v5183 = vadd.f32 %v5070, %v5182
        %v5184 = vpop.f32.mrf.mxu0
        %v5185 = vadd.f32 %v5072, %v5184
        %5186 = vmatprep.mubr.bf16.mxu0 %v4884
        %5187 = vmatmul.mubr.bf16.gmra.mxu0 %v4883
        %v5188 = vpop.f32.mrf.mxu0
        %v5189 = vadd.f32 %v5076, %v5188
        %v5190 = vpop.f32.mrf.mxu0
        %v5191 = vadd.f32 %v5078, %v5190
        %v5192 = vpop.f32.mrf.mxu0
        %v5193 = vadd.f32 %v5080, %v5192
        %v5194 = vpop.f32.mrf.mxu0
        %v5195 = vadd.f32 %v5082, %v5194
        %5196 = vmatprep.mubr.bf16.mxu0 %v4894
        %5197 = vmatmul.mubr.bf16.gmra.mxu0 %v4893
        %v5198 = vpop.f32.mrf.mxu0
        %v5199 = vadd.f32 %v5086, %v5198
        %v5200 = vpop.f32.mrf.mxu0
        %v5201 = vadd.f32 %v5088, %v5200
        %v5202 = vpop.f32.mrf.mxu0
        %v5203 = vadd.f32 %v5090, %v5202
        %v5204 = vpop.f32.mrf.mxu0
        %v5205 = vadd.f32 %v5092, %v5204
        %5206 = vmatprep.mubr.bf16.mxu0 %v4904
        %5207 = vmatmul.mubr.bf16.gmra.mxu0 %v4903
        %v5208 = vpop.f32.mrf.mxu0
        %v5209 = vadd.f32 %v5096, %v5208
        %v5210 = vpop.f32.mrf.mxu0
        %v5211 = vadd.f32 %v5098, %v5210
        %v5212 = vpop.f32.mrf.mxu0
        %v5213 = vadd.f32 %v5100, %v5212
        %v5214 = vpop.f32.mrf.mxu0
        %v5215 = vadd.f32 %v5102, %v5214
        %5216 = vmatprep.mubr.bf16.mxu0 %v4914
        %5217 = vmatmul.mubr.bf16.gmra.mxu0 %v4913
        %v5218 = vpop.f32.mrf.mxu0
        %v5219 = vadd.f32 %v5106, %v5218
        %v5220 = vpop.f32.mrf.mxu0
        %v5221 = vadd.f32 %v5108, %v5220
        %v5222 = vpop.f32.mrf.mxu0
        %v5223 = vadd.f32 %v5110, %v5222
        %v5224 = vpop.f32.mrf.mxu0
        %v5225 = vadd.f32 %v5112, %v5224
        %5226 = vdwg.mxu0
        %5227 = vmatprep.subr.bf16.mxu0 %v3686
        %5228 = vmatpush1.bf16.msra.mxu0 %v3685
        %5229 = vmatprep.subr.bf16.mxu0 %v3682
        %5230 = vmatpush1.bf16.msra.mxu0 %v3681
        %5231 = vmatprep.subr.bf16.mxu0 %v3678
        %5232 = vmatpush1.bf16.msra.mxu0 %v3677
        %5233 = vmatprep.subr.bf16.mxu0 %v3674
        %5234 = vmatpush1.bf16.msra.mxu0 %v3673
        %5235 = vmatprep.subr.bf16.mxu0 %v3614
        %5236 = vmatpush1.bf16.msra.mxu0 %v3613
        %5237 = vmatprep.subr.bf16.mxu0 %v3610
        %5238 = vmatpush1.bf16.msra.mxu0 %v3609
        %5239 = vmatprep.subr.bf16.mxu0 %v3606
        %5240 = vmatpush1.bf16.msra.mxu0 %v3605
        %5241 = vmatprep.subr.bf16.mxu0 %v3602
        %5242 = vmatpush1.bf16.msra.mxu0 %v3601
        %5243 = vmatprep.subr.bf16.mxu0 %v3830
        %5244 = vmatpush2.bf16.msra.mxu0 %v3829
        %5245 = vmatprep.subr.bf16.mxu0 %v3826
        %5246 = vmatpush2.bf16.msra.mxu0 %v3825
        %5247 = vmatprep.subr.bf16.mxu0 %v3822
        %5248 = vmatpush2.bf16.msra.mxu0 %v3821
        %5249 = vmatprep.subr.bf16.mxu0 %v3818
        %5250 = vmatpush2.bf16.msra.mxu0 %v3817
        %5251 = vmatprep.subr.bf16.mxu0 %v3758
        %5252 = vmatpush2.bf16.msra.mxu0 %v3757
        %5253 = vmatprep.subr.bf16.mxu0 %v3754
        %5254 = vmatpush2.bf16.msra.mxu0 %v3753
        %5255 = vmatprep.subr.bf16.mxu0 %v3750
        %5256 = vmatpush2.bf16.msra.mxu0 %v3749
        %5257 = vmatprep.subr.bf16.mxu0 %v3746
        %5258 = vmatpush2.bf16.msra.mxu0 %v3745
        %5259 = vmatprep.mubr.bf16.mxu0 %v4846
        %5260 = vmatmul.mubr.bf16.gmra.mxu0 %v4845
        %v5261 = vpop.f32.mrf.mxu0
        %v5262 = vadd.f32 %v5149, %v5261
        %v5263 = vpop.f32.mrf.mxu0
        %v5264 = vadd.f32 %v5151, %v5263
        %v5265 = vpop.f32.mrf.mxu0
        %v5266 = vadd.f32 %v5153, %v5265
        %v5267 = vpop.f32.mrf.mxu0
        %v5268 = vadd.f32 %v5155, %v5267
        %5269 = vmatprep.mubr.bf16.mxu0 %v4856
        %5270 = vmatmul.mubr.bf16.gmra.mxu0 %v4855
        %v5271 = vpop.f32.mrf.mxu0
        %v5272 = vadd.f32 %v5159, %v5271
        %v5273 = vpop.f32.mrf.mxu0
        %v5274 = vadd.f32 %v5161, %v5273
        %v5275 = vpop.f32.mrf.mxu0
        %v5276 = vadd.f32 %v5163, %v5275
        %v5277 = vpop.f32.mrf.mxu0
        %v5278 = vadd.f32 %v5165, %v5277
        %5279 = vmatprep.mubr.bf16.mxu0 %v4866
        %5280 = vmatmul.mubr.bf16.gmra.mxu0 %v4865
        %v5281 = vpop.f32.mrf.mxu0
        %v5282 = vadd.f32 %v5169, %v5281
        %v5283 = vpop.f32.mrf.mxu0
        %v5284 = vadd.f32 %v5171, %v5283
        %v5285 = vpop.f32.mrf.mxu0
        %v5286 = vadd.f32 %v5173, %v5285
        %v5287 = vpop.f32.mrf.mxu0
        %v5288 = vadd.f32 %v5175, %v5287
        %5289 = vmatprep.mubr.bf16.mxu0 %v4876
        %5290 = vmatmul.mubr.bf16.gmra.mxu0 %v4875
        %v5291 = vpop.f32.mrf.mxu0
        %v5292 = vadd.f32 %v5179, %v5291
        %v5293 = vpop.f32.mrf.mxu0
        %v5294 = vadd.f32 %v5181, %v5293
        %v5295 = vpop.f32.mrf.mxu0
        %v5296 = vadd.f32 %v5183, %v5295
        %v5297 = vpop.f32.mrf.mxu0
        %v5298 = vadd.f32 %v5185, %v5297
        %5299 = vmatprep.mubr.bf16.mxu0 %v4886
        %5300 = vmatmul.mubr.bf16.gmra.mxu0 %v4885
        %v5301 = vpop.f32.mrf.mxu0
        %v5302 = vadd.f32 %v5189, %v5301
        %v5303 = vpop.f32.mrf.mxu0
        %v5304 = vadd.f32 %v5191, %v5303
        %v5305 = vpop.f32.mrf.mxu0
        %v5306 = vadd.f32 %v5193, %v5305
        %v5307 = vpop.f32.mrf.mxu0
        %v5308 = vadd.f32 %v5195, %v5307
        %5309 = vmatprep.mubr.bf16.mxu0 %v4896
        %5310 = vmatmul.mubr.bf16.gmra.mxu0 %v4895
        %v5311 = vpop.f32.mrf.mxu0
        %v5312 = vadd.f32 %v5199, %v5311
        %v5313 = vpop.f32.mrf.mxu0
        %v5314 = vadd.f32 %v5201, %v5313
        %v5315 = vpop.f32.mrf.mxu0
        %v5316 = vadd.f32 %v5203, %v5315
        %v5317 = vpop.f32.mrf.mxu0
        %v5318 = vadd.f32 %v5205, %v5317
        %5319 = vmatprep.mubr.bf16.mxu0 %v4906
        %5320 = vmatmul.mubr.bf16.gmra.mxu0 %v4905
        %v5321 = vpop.f32.mrf.mxu0
        %v5322 = vadd.f32 %v5209, %v5321
        %v5323 = vpop.f32.mrf.mxu0
        %v5324 = vadd.f32 %v5211, %v5323
        %v5325 = vpop.f32.mrf.mxu0
        %v5326 = vadd.f32 %v5213, %v5325
        %v5327 = vpop.f32.mrf.mxu0
        %v5328 = vadd.f32 %v5215, %v5327
        %5329 = vmatprep.mubr.bf16.mxu0 %v4916
        %5330 = vmatmul.mubr.bf16.gmra.mxu0 %v4915
        %v5331 = vpop.f32.mrf.mxu0
        %v5332 = vadd.f32 %v5219, %v5331
        %v5333 = vpop.f32.mrf.mxu0
        %v5334 = vadd.f32 %v5221, %v5333
        %v5335 = vpop.f32.mrf.mxu0
        %v5336 = vadd.f32 %v5223, %v5335
        %v5337 = vpop.f32.mrf.mxu0
        %v5338 = vadd.f32 %v5225, %v5337
        %5339 = vdwg.mxu0
        %5340 = vmatprep.subr.bf16.mxu0 %v3974
        %5341 = vmatpush1.bf16.msra.mxu0 %v3973
        %5342 = vmatprep.subr.bf16.mxu0 %v3970
        %5343 = vmatpush1.bf16.msra.mxu0 %v3969
        %5344 = vmatprep.subr.bf16.mxu0 %v3966
        %5345 = vmatpush1.bf16.msra.mxu0 %v3965
        %5346 = vmatprep.subr.bf16.mxu0 %v3962
        %5347 = vmatpush1.bf16.msra.mxu0 %v3961
        %5348 = vmatprep.subr.bf16.mxu0 %v3902
        %5349 = vmatpush1.bf16.msra.mxu0 %v3901
        %5350 = vmatprep.subr.bf16.mxu0 %v3898
        %5351 = vmatpush1.bf16.msra.mxu0 %v3897
        %5352 = vmatprep.subr.bf16.mxu0 %v3894
        %5353 = vmatpush1.bf16.msra.mxu0 %v3893
        %5354 = vmatprep.subr.bf16.mxu0 %v3890
        %5355 = vmatpush1.bf16.msra.mxu0 %v3889
        %5356 = vmatprep.subr.bf16.mxu0 %v4118
        %5357 = vmatpush2.bf16.msra.mxu0 %v4117
        %5358 = vmatprep.subr.bf16.mxu0 %v4114
        %5359 = vmatpush2.bf16.msra.mxu0 %v4113
        %5360 = vmatprep.subr.bf16.mxu0 %v4110
        %5361 = vmatpush2.bf16.msra.mxu0 %v4109
        %5362 = vmatprep.subr.bf16.mxu0 %v4106
        %5363 = vmatpush2.bf16.msra.mxu0 %v4105
        %5364 = vmatprep.subr.bf16.mxu0 %v4046
        %5365 = vmatpush2.bf16.msra.mxu0 %v4045
        %5366 = vmatprep.subr.bf16.mxu0 %v4042
        %5367 = vmatpush2.bf16.msra.mxu0 %v4041
        %5368 = vmatprep.subr.bf16.mxu0 %v4038
        %5369 = vmatpush2.bf16.msra.mxu0 %v4037
        %5370 = vmatprep.subr.bf16.mxu0 %v4034
        %5371 = vmatpush2.bf16.msra.mxu0 %v4033
        %5372 = vmatprep.mubr.bf16.mxu0 %v4848
        %5373 = vmatmul.mubr.bf16.gmra.mxu0 %v4847
        %v5374 = vpop.f32.mrf.mxu0
        %v5375 = vadd.f32 %v5262, %v5374
        %v5376 = vpop.f32.mrf.mxu0
        %v5377 = vadd.f32 %v5264, %v5376
        %v5378 = vpop.f32.mrf.mxu0
        %v5379 = vadd.f32 %v5266, %v5378
        %v5380 = vpop.f32.mrf.mxu0
        %v5381 = vadd.f32 %v5268, %v5380
        %5382 = vmatprep.mubr.bf16.mxu0 %v4858
        %5383 = vmatmul.mubr.bf16.gmra.mxu0 %v4857
        %v5384 = vpop.f32.mrf.mxu0
        %v5385 = vadd.f32 %v5272, %v5384
        %v5386 = vpop.f32.mrf.mxu0
        %v5387 = vadd.f32 %v5274, %v5386
        %v5388 = vpop.f32.mrf.mxu0
        %v5389 = vadd.f32 %v5276, %v5388
        %v5390 = vpop.f32.mrf.mxu0
        %v5391 = vadd.f32 %v5278, %v5390
        %5392 = vmatprep.mubr.bf16.mxu0 %v4868
        %5393 = vmatmul.mubr.bf16.gmra.mxu0 %v4867
        %v5394 = vpop.f32.mrf.mxu0
        %v5395 = vadd.f32 %v5282, %v5394
        %v5396 = vpop.f32.mrf.mxu0
        %v5397 = vadd.f32 %v5284, %v5396
        %v5398 = vpop.f32.mrf.mxu0
        %v5399 = vadd.f32 %v5286, %v5398
        %v5400 = vpop.f32.mrf.mxu0
        %v5401 = vadd.f32 %v5288, %v5400
        %5402 = vmatprep.mubr.bf16.mxu0 %v4878
        %5403 = vmatmul.mubr.bf16.gmra.mxu0 %v4877
        %v5404 = vpop.f32.mrf.mxu0
        %v5405 = vadd.f32 %v5292, %v5404
        %v5406 = vpop.f32.mrf.mxu0
        %v5407 = vadd.f32 %v5294, %v5406
        %v5408 = vpop.f32.mrf.mxu0
        %v5409 = vadd.f32 %v5296, %v5408
        %v5410 = vpop.f32.mrf.mxu0
        %v5411 = vadd.f32 %v5298, %v5410
        %5412 = vmatprep.mubr.bf16.mxu0 %v4888
        %5413 = vmatmul.mubr.bf16.gmra.mxu0 %v4887
        %v5414 = vpop.f32.mrf.mxu0
        %v5415 = vadd.f32 %v5302, %v5414
        %v5416 = vpop.f32.mrf.mxu0
        %v5417 = vadd.f32 %v5304, %v5416
        %v5418 = vpop.f32.mrf.mxu0
        %v5419 = vadd.f32 %v5306, %v5418
        %v5420 = vpop.f32.mrf.mxu0
        %v5421 = vadd.f32 %v5308, %v5420
        %5422 = vmatprep.mubr.bf16.mxu0 %v4898
        %5423 = vmatmul.mubr.bf16.gmra.mxu0 %v4897
        %v5424 = vpop.f32.mrf.mxu0
        %v5425 = vadd.f32 %v5312, %v5424
        %v5426 = vpop.f32.mrf.mxu0
        %v5427 = vadd.f32 %v5314, %v5426
        %v5428 = vpop.f32.mrf.mxu0
        %v5429 = vadd.f32 %v5316, %v5428
        %v5430 = vpop.f32.mrf.mxu0
        %v5431 = vadd.f32 %v5318, %v5430
        %5432 = vmatprep.mubr.bf16.mxu0 %v4908
        %5433 = vmatmul.mubr.bf16.gmra.mxu0 %v4907
        %v5434 = vpop.f32.mrf.mxu0
        %v5435 = vadd.f32 %v5322, %v5434
        %v5436 = vpop.f32.mrf.mxu0
        %v5437 = vadd.f32 %v5324, %v5436
        %v5438 = vpop.f32.mrf.mxu0
        %v5439 = vadd.f32 %v5326, %v5438
        %v5440 = vpop.f32.mrf.mxu0
        %v5441 = vadd.f32 %v5328, %v5440
        %5442 = vmatprep.mubr.bf16.mxu0 %v4918
        %5443 = vmatmul.mubr.bf16.gmra.mxu0 %v4917
        %v5444 = vpop.f32.mrf.mxu0
        %v5445 = vadd.f32 %v5332, %v5444
        %v5446 = vpop.f32.mrf.mxu0
        %v5447 = vadd.f32 %v5334, %v5446
        %v5448 = vpop.f32.mrf.mxu0
        %v5449 = vadd.f32 %v5336, %v5448
        %v5450 = vpop.f32.mrf.mxu0
        %v5451 = vadd.f32 %v5338, %v5450
        %5452 = vdwg.mxu0
        %5453 = vmatprep.subr.bf16.mxu0 %v4326
        %5454 = vmatpush1.bf16.msra.mxu0 %v4325
        %5455 = vmatprep.subr.bf16.mxu0 %v4322
        %5456 = vmatpush1.bf16.msra.mxu0 %v4321
        %5457 = vmatprep.subr.bf16.mxu0 %v4318
        %5458 = vmatpush1.bf16.msra.mxu0 %v4317
        %5459 = vmatprep.subr.bf16.mxu0 %v4314
        %5460 = vmatpush1.bf16.msra.mxu0 %v4313
        %5461 = vmatprep.subr.bf16.mxu0 %v4310
        %5462 = vmatpush1.bf16.msra.mxu0 %v4309
        %5463 = vmatprep.subr.bf16.mxu0 %v4306
        %5464 = vmatpush1.bf16.msra.mxu0 %v4305
        %5465 = vmatprep.subr.bf16.mxu0 %v4302
        %5466 = vmatpush1.bf16.msra.mxu0 %v4301
        %5467 = vmatprep.subr.bf16.mxu0 %v4298
        %5468 = vmatpush1.bf16.msra.mxu0 %v4297
        %5469 = vmatprep.subr.bf16.mxu0 %v4358
        %5470 = vmatpush2.bf16.msra.mxu0 %v4357
        %5471 = vmatprep.subr.bf16.mxu0 %v4354
        %5472 = vmatpush2.bf16.msra.mxu0 %v4353
        %5473 = vmatprep.subr.bf16.mxu0 %v4350
        %5474 = vmatpush2.bf16.msra.mxu0 %v4349
        %5475 = vmatprep.subr.bf16.mxu0 %v4346
        %5476 = vmatpush2.bf16.msra.mxu0 %v4345
        %5477 = vmatprep.subr.bf16.mxu0 %v4342
        %5478 = vmatpush2.bf16.msra.mxu0 %v4341
        %5479 = vmatprep.subr.bf16.mxu0 %v4338
        %5480 = vmatpush2.bf16.msra.mxu0 %v4337
        %5481 = vmatprep.subr.bf16.mxu0 %v4334
        %5482 = vmatpush2.bf16.msra.mxu0 %v4333
        %5483 = vmatprep.subr.bf16.mxu0 %v4330
        %5484 = vmatpush2.bf16.msra.mxu0 %v4329
        %5485 = vmatprep.mubr.bf16.mxu0 %v4850
        %5486 = vmatmul.mubr.bf16.gmra.mxu0 %v4849
        %v5487 = vpop.f32.mrf.mxu0
        %v5488 = vadd.f32 %v5375, %v5487
        %v5489 = vpop.f32.mrf.mxu0
        %v5490 = vadd.f32 %v5377, %v5489
        %v5491 = vpop.f32.mrf.mxu0
        %v5492 = vadd.f32 %v5379, %v5491
        %v5493 = vpop.f32.mrf.mxu0
        %v5494 = vadd.f32 %v5381, %v5493
        %5495 = vmatprep.mubr.bf16.mxu0 %v4860
        %5496 = vmatmul.mubr.bf16.gmra.mxu0 %v4859
        %v5497 = vpop.f32.mrf.mxu0
        %v5498 = vadd.f32 %v5385, %v5497
        %v5499 = vpop.f32.mrf.mxu0
        %v5500 = vadd.f32 %v5387, %v5499
        %v5501 = vpop.f32.mrf.mxu0
        %v5502 = vadd.f32 %v5389, %v5501
        %v5503 = vpop.f32.mrf.mxu0
        %v5504 = vadd.f32 %v5391, %v5503
        %5505 = vmatprep.mubr.bf16.mxu0 %v4870
        %5506 = vmatmul.mubr.bf16.gmra.mxu0 %v4869
        %v5507 = vpop.f32.mrf.mxu0
        %v5508 = vadd.f32 %v5395, %v5507
        %v5509 = vpop.f32.mrf.mxu0
        %v5510 = vadd.f32 %v5397, %v5509
        %v5511 = vpop.f32.mrf.mxu0
        %v5512 = vadd.f32 %v5399, %v5511
        %v5513 = vpop.f32.mrf.mxu0
        %v5514 = vadd.f32 %v5401, %v5513
        %5515 = vmatprep.mubr.bf16.mxu0 %v4880
        %5516 = vmatmul.mubr.bf16.gmra.mxu0 %v4879
        %v5517 = vpop.f32.mrf.mxu0
        %v5518 = vadd.f32 %v5405, %v5517
        %v5519 = vpop.f32.mrf.mxu0
        %v5520 = vadd.f32 %v5407, %v5519
        %v5521 = vpop.f32.mrf.mxu0
        %v5522 = vadd.f32 %v5409, %v5521
        %v5523 = vpop.f32.mrf.mxu0
        %v5524 = vadd.f32 %v5411, %v5523
        %5525 = vmatprep.mubr.bf16.mxu0 %v4890
        %5526 = vmatmul.mubr.bf16.gmra.mxu0 %v4889
        %v5527 = vpop.f32.mrf.mxu0
        %v5528 = vadd.f32 %v5415, %v5527
        %v5529 = vpop.f32.mrf.mxu0
        %v5530 = vadd.f32 %v5417, %v5529
        %v5531 = vpop.f32.mrf.mxu0
        %v5532 = vadd.f32 %v5419, %v5531
        %v5533 = vpop.f32.mrf.mxu0
        %v5534 = vadd.f32 %v5421, %v5533
        %5535 = vmatprep.mubr.bf16.mxu0 %v4900
        %5536 = vmatmul.mubr.bf16.gmra.mxu0 %v4899
        %v5537 = vpop.f32.mrf.mxu0
        %v5538 = vadd.f32 %v5425, %v5537
        %v5539 = vpop.f32.mrf.mxu0
        %v5540 = vadd.f32 %v5427, %v5539
        %v5541 = vpop.f32.mrf.mxu0
        %v5542 = vadd.f32 %v5429, %v5541
        %v5543 = vpop.f32.mrf.mxu0
        %v5544 = vadd.f32 %v5431, %v5543
        %5545 = vmatprep.mubr.bf16.mxu0 %v4910
        %5546 = vmatmul.mubr.bf16.gmra.mxu0 %v4909
        %v5547 = vpop.f32.mrf.mxu0
        %v5548 = vadd.f32 %v5435, %v5547
        %v5549 = vpop.f32.mrf.mxu0
        %v5550 = vadd.f32 %v5437, %v5549
        %v5551 = vpop.f32.mrf.mxu0
        %v5552 = vadd.f32 %v5439, %v5551
        %v5553 = vpop.f32.mrf.mxu0
        %v5554 = vadd.f32 %v5441, %v5553
        %5555 = vmatprep.mubr.bf16.mxu0 %v4920
        %5556 = vmatmul.mubr.bf16.gmra.mxu0 %v4919
        %v5557 = vpop.f32.mrf.mxu0
        %v5558 = vadd.f32 %v5445, %v5557
        %v5559 = vpop.f32.mrf.mxu0
        %v5560 = vadd.f32 %v5447, %v5559
        %v5561 = vpop.f32.mrf.mxu0
        %v5562 = vadd.f32 %v5449, %v5561
        %v5563 = vpop.f32.mrf.mxu0
        %v5564 = vadd.f32 %v5451, %v5563
        %5565 = vdwg.mxu0
        %5566 = vmatprep.subr.bf16.mxu0 %v3112
        %5567 = vmatpush1.bf16.msra.mxu0 %v3111
        %5568 = vmatprep.subr.bf16.mxu0 %v3108
        %5569 = vmatpush1.bf16.msra.mxu0 %v3107
        %5570 = vmatprep.subr.bf16.mxu0 %v3104
        %5571 = vmatpush1.bf16.msra.mxu0 %v3103
        %5572 = vmatprep.subr.bf16.mxu0 %v3100
        %5573 = vmatpush1.bf16.msra.mxu0 %v3099
        %5574 = vmatprep.subr.bf16.mxu0 %v3035
        %5575 = vmatpush1.bf16.msra.mxu0 %v3034
        %5576 = vmatprep.subr.bf16.mxu0 %v3030
        %5577 = vmatpush1.bf16.msra.mxu0 %v3029
        %5578 = vmatprep.subr.bf16.mxu0 %v3025
        %5579 = vmatpush1.bf16.msra.mxu0 %v3024
        %5580 = vmatprep.subr.bf16.mxu0 %v3020
        %5581 = vmatpush1.bf16.msra.mxu0 %v3019
        %5582 = vmatprep.subr.bf16.mxu0 %v3256
        %5583 = vmatpush2.bf16.msra.mxu0 %v3255
        %5584 = vmatprep.subr.bf16.mxu0 %v3252
        %5585 = vmatpush2.bf16.msra.mxu0 %v3251
        %5586 = vmatprep.subr.bf16.mxu0 %v3248
        %5587 = vmatpush2.bf16.msra.mxu0 %v3247
        %5588 = vmatprep.subr.bf16.mxu0 %v3244
        %5589 = vmatpush2.bf16.msra.mxu0 %v3243
        %5590 = vmatprep.subr.bf16.mxu0 %v3184
        %5591 = vmatpush2.bf16.msra.mxu0 %v3183
        %5592 = vmatprep.subr.bf16.mxu0 %v3180
        %5593 = vmatpush2.bf16.msra.mxu0 %v3179
        %5594 = vmatprep.subr.bf16.mxu0 %v3176
        %5595 = vmatpush2.bf16.msra.mxu0 %v3175
        %5596 = vmatprep.subr.bf16.mxu0 %v3172
        %5597 = vmatpush2.bf16.msra.mxu0 %v3171
        %5598 = vmatprep.mubr.bf16.mxu0 %v4842
        %5599 = vmatmul.mubr.bf16.gmra.mxu0 %v4841
        %v5600 = vpop.f32.mrf.mxu0
        %v5601 = vadd.f32 %v4524, %v5600
        %v5602 = vpop.f32.mrf.mxu0
        %v5603 = vadd.f32 %v4524, %v5602
        %v5604 = vpop.f32.mrf.mxu0
        %v5605 = vadd.f32 %v4529, %v5604
        %v5606 = vpop.f32.mrf.mxu0
        %v5607 = vadd.f32 %v4529, %v5606
        %5608 = vmatprep.mubr.bf16.mxu0 %v4852
        %5609 = vmatmul.mubr.bf16.gmra.mxu0 %v4851
        %v5610 = vpop.f32.mrf.mxu0
        %v5611 = vadd.f32 %v4534, %v5610
        %v5612 = vpop.f32.mrf.mxu0
        %v5613 = vadd.f32 %v4534, %v5612
        %v5614 = vpop.f32.mrf.mxu0
        %v5615 = vadd.f32 %v4539, %v5614
        %v5616 = vpop.f32.mrf.mxu0
        %v5617 = vadd.f32 %v4539, %v5616
        %5618 = vmatprep.mubr.bf16.mxu0 %v4862
        %5619 = vmatmul.mubr.bf16.gmra.mxu0 %v4861
        %v5620 = vpop.f32.mrf.mxu0
        %v5621 = vadd.f32 %v4544, %v5620
        %v5622 = vpop.f32.mrf.mxu0
        %v5623 = vadd.f32 %v4544, %v5622
        %v5624 = vpop.f32.mrf.mxu0
        %v5625 = vadd.f32 %v4549, %v5624
        %v5626 = vpop.f32.mrf.mxu0
        %v5627 = vadd.f32 %v4549, %v5626
        %5628 = vmatprep.mubr.bf16.mxu0 %v4872
        %5629 = vmatmul.mubr.bf16.gmra.mxu0 %v4871
        %v5630 = vpop.f32.mrf.mxu0
        %v5631 = vadd.f32 %v4554, %v5630
        %v5632 = vpop.f32.mrf.mxu0
        %v5633 = vadd.f32 %v4554, %v5632
        %v5634 = vpop.f32.mrf.mxu0
        %v5635 = vadd.f32 %v4559, %v5634
        %v5636 = vpop.f32.mrf.mxu0
        %v5637 = vadd.f32 %v4559, %v5636
        %5638 = vmatprep.mubr.bf16.mxu0 %v4882
        %5639 = vmatmul.mubr.bf16.gmra.mxu0 %v4881
        %v5640 = vpop.f32.mrf.mxu0
        %v5641 = vadd.f32 %v4564, %v5640
        %v5642 = vpop.f32.mrf.mxu0
        %v5643 = vadd.f32 %v4564, %v5642
        %v5644 = vpop.f32.mrf.mxu0
        %v5645 = vadd.f32 %v4569, %v5644
        %v5646 = vpop.f32.mrf.mxu0
        %v5647 = vadd.f32 %v4569, %v5646
        %5648 = vmatprep.mubr.bf16.mxu0 %v4892
        %5649 = vmatmul.mubr.bf16.gmra.mxu0 %v4891
        %v5650 = vpop.f32.mrf.mxu0
        %v5651 = vadd.f32 %v4574, %v5650
        %v5652 = vpop.f32.mrf.mxu0
        %v5653 = vadd.f32 %v4574, %v5652
        %v5654 = vpop.f32.mrf.mxu0
        %v5655 = vadd.f32 %v4579, %v5654
        %v5656 = vpop.f32.mrf.mxu0
        %v5657 = vadd.f32 %v4579, %v5656
        %5658 = vmatprep.mubr.bf16.mxu0 %v4902
        %5659 = vmatmul.mubr.bf16.gmra.mxu0 %v4901
        %v5660 = vpop.f32.mrf.mxu0
        %v5661 = vadd.f32 %v4584, %v5660
        %v5662 = vpop.f32.mrf.mxu0
        %v5663 = vadd.f32 %v4584, %v5662
        %v5664 = vpop.f32.mrf.mxu0
        %v5665 = vadd.f32 %v4589, %v5664
        %v5666 = vpop.f32.mrf.mxu0
        %v5667 = vadd.f32 %v4589, %v5666
        %5668 = vmatprep.mubr.bf16.mxu0 %v4912
        %5669 = vmatmul.mubr.bf16.gmra.mxu0 %v4911
        %v5670 = vpop.f32.mrf.mxu0
        %v5671 = vadd.f32 %v4594, %v5670
        %v5672 = vpop.f32.mrf.mxu0
        %v5673 = vadd.f32 %v4594, %v5672
        %v5674 = vpop.f32.mrf.mxu0
        %v5675 = vadd.f32 %v4599, %v5674
        %v5676 = vpop.f32.mrf.mxu0
        %v5677 = vadd.f32 %v4599, %v5676
        %5678 = vdwg.mxu0
        %5679 = vmatprep.subr.bf16.mxu0 %v3400
        %5680 = vmatpush1.bf16.msra.mxu0 %v3399
        %5681 = vmatprep.subr.bf16.mxu0 %v3396
        %5682 = vmatpush1.bf16.msra.mxu0 %v3395
        %5683 = vmatprep.subr.bf16.mxu0 %v3392
        %5684 = vmatpush1.bf16.msra.mxu0 %v3391
        %5685 = vmatprep.subr.bf16.mxu0 %v3388
        %5686 = vmatpush1.bf16.msra.mxu0 %v3387
        %5687 = vmatprep.subr.bf16.mxu0 %v3328
        %5688 = vmatpush1.bf16.msra.mxu0 %v3327
        %5689 = vmatprep.subr.bf16.mxu0 %v3324
        %5690 = vmatpush1.bf16.msra.mxu0 %v3323
        %5691 = vmatprep.subr.bf16.mxu0 %v3320
        %5692 = vmatpush1.bf16.msra.mxu0 %v3319
        %5693 = vmatprep.subr.bf16.mxu0 %v3316
        %5694 = vmatpush1.bf16.msra.mxu0 %v3315
        %5695 = vmatprep.subr.bf16.mxu0 %v3544
        %5696 = vmatpush2.bf16.msra.mxu0 %v3543
        %5697 = vmatprep.subr.bf16.mxu0 %v3540
        %5698 = vmatpush2.bf16.msra.mxu0 %v3539
        %5699 = vmatprep.subr.bf16.mxu0 %v3536
        %5700 = vmatpush2.bf16.msra.mxu0 %v3535
        %5701 = vmatprep.subr.bf16.mxu0 %v3532
        %5702 = vmatpush2.bf16.msra.mxu0 %v3531
        %5703 = vmatprep.subr.bf16.mxu0 %v3472
        %5704 = vmatpush2.bf16.msra.mxu0 %v3471
        %5705 = vmatprep.subr.bf16.mxu0 %v3468
        %5706 = vmatpush2.bf16.msra.mxu0 %v3467
        %5707 = vmatprep.subr.bf16.mxu0 %v3464
        %5708 = vmatpush2.bf16.msra.mxu0 %v3463
        %5709 = vmatprep.subr.bf16.mxu0 %v3460
        %5710 = vmatpush2.bf16.msra.mxu0 %v3459
        %5711 = vmatprep.mubr.bf16.mxu0 %v4844
        %5712 = vmatmul.mubr.bf16.gmra.mxu0 %v4843
        %v5713 = vpop.f32.mrf.mxu0
        %v5714 = vadd.f32 %v5601, %v5713
        %v5715 = vpop.f32.mrf.mxu0
        %v5716 = vadd.f32 %v5603, %v5715
        %v5717 = vpop.f32.mrf.mxu0
        %v5718 = vadd.f32 %v5605, %v5717
        %v5719 = vpop.f32.mrf.mxu0
        %v5720 = vadd.f32 %v5607, %v5719
        %5721 = vmatprep.mubr.bf16.mxu0 %v4854
        %5722 = vmatmul.mubr.bf16.gmra.mxu0 %v4853
        %v5723 = vpop.f32.mrf.mxu0
        %v5724 = vadd.f32 %v5611, %v5723
        %v5725 = vpop.f32.mrf.mxu0
        %v5726 = vadd.f32 %v5613, %v5725
        %v5727 = vpop.f32.mrf.mxu0
        %v5728 = vadd.f32 %v5615, %v5727
        %v5729 = vpop.f32.mrf.mxu0
        %v5730 = vadd.f32 %v5617, %v5729
        %5731 = vmatprep.mubr.bf16.mxu0 %v4864
        %5732 = vmatmul.mubr.bf16.gmra.mxu0 %v4863
        %v5733 = vpop.f32.mrf.mxu0
        %v5734 = vadd.f32 %v5621, %v5733
        %v5735 = vpop.f32.mrf.mxu0
        %v5736 = vadd.f32 %v5623, %v5735
        %v5737 = vpop.f32.mrf.mxu0
        %v5738 = vadd.f32 %v5625, %v5737
        %v5739 = vpop.f32.mrf.mxu0
        %v5740 = vadd.f32 %v5627, %v5739
        %5741 = vmatprep.mubr.bf16.mxu0 %v4874
        %5742 = vmatmul.mubr.bf16.gmra.mxu0 %v4873
        %v5743 = vpop.f32.mrf.mxu0
        %v5744 = vadd.f32 %v5631, %v5743
        %v5745 = vpop.f32.mrf.mxu0
        %v5746 = vadd.f32 %v5633, %v5745
        %v5747 = vpop.f32.mrf.mxu0
        %v5748 = vadd.f32 %v5635, %v5747
        %v5749 = vpop.f32.mrf.mxu0
        %v5750 = vadd.f32 %v5637, %v5749
        %5751 = vmatprep.mubr.bf16.mxu0 %v4884
        %5752 = vmatmul.mubr.bf16.gmra.mxu0 %v4883
        %v5753 = vpop.f32.mrf.mxu0
        %v5754 = vadd.f32 %v5641, %v5753
        %v5755 = vpop.f32.mrf.mxu0
        %v5756 = vadd.f32 %v5643, %v5755
        %v5757 = vpop.f32.mrf.mxu0
        %v5758 = vadd.f32 %v5645, %v5757
        %v5759 = vpop.f32.mrf.mxu0
        %v5760 = vadd.f32 %v5647, %v5759
        %5761 = vmatprep.mubr.bf16.mxu0 %v4894
        %5762 = vmatmul.mubr.bf16.gmra.mxu0 %v4893
        %v5763 = vpop.f32.mrf.mxu0
        %v5764 = vadd.f32 %v5651, %v5763
        %v5765 = vpop.f32.mrf.mxu0
        %v5766 = vadd.f32 %v5653, %v5765
        %v5767 = vpop.f32.mrf.mxu0
        %v5768 = vadd.f32 %v5655, %v5767
        %v5769 = vpop.f32.mrf.mxu0
        %v5770 = vadd.f32 %v5657, %v5769
        %5771 = vmatprep.mubr.bf16.mxu0 %v4904
        %5772 = vmatmul.mubr.bf16.gmra.mxu0 %v4903
        %v5773 = vpop.f32.mrf.mxu0
        %v5774 = vadd.f32 %v5661, %v5773
        %v5775 = vpop.f32.mrf.mxu0
        %v5776 = vadd.f32 %v5663, %v5775
        %v5777 = vpop.f32.mrf.mxu0
        %v5778 = vadd.f32 %v5665, %v5777
        %v5779 = vpop.f32.mrf.mxu0
        %v5780 = vadd.f32 %v5667, %v5779
        %5781 = vmatprep.mubr.bf16.mxu0 %v4914
        %5782 = vmatmul.mubr.bf16.gmra.mxu0 %v4913
        %v5783 = vpop.f32.mrf.mxu0
        %v5784 = vadd.f32 %v5671, %v5783
        %v5785 = vpop.f32.mrf.mxu0
        %v5786 = vadd.f32 %v5673, %v5785
        %v5787 = vpop.f32.mrf.mxu0
        %v5788 = vadd.f32 %v5675, %v5787
        %v5789 = vpop.f32.mrf.mxu0
        %v5790 = vadd.f32 %v5677, %v5789
        %5791 = vdwg.mxu0
        %5792 = vmatprep.subr.bf16.mxu0 %v3688
        %5793 = vmatpush1.bf16.msra.mxu0 %v3687
        %5794 = vmatprep.subr.bf16.mxu0 %v3684
        %5795 = vmatpush1.bf16.msra.mxu0 %v3683
        %5796 = vmatprep.subr.bf16.mxu0 %v3680
        %5797 = vmatpush1.bf16.msra.mxu0 %v3679
        %5798 = vmatprep.subr.bf16.mxu0 %v3676
        %5799 = vmatpush1.bf16.msra.mxu0 %v3675
        %5800 = vmatprep.subr.bf16.mxu0 %v3616
        %5801 = vmatpush1.bf16.msra.mxu0 %v3615
        %5802 = vmatprep.subr.bf16.mxu0 %v3612
        %5803 = vmatpush1.bf16.msra.mxu0 %v3611
        %5804 = vmatprep.subr.bf16.mxu0 %v3608
        %5805 = vmatpush1.bf16.msra.mxu0 %v3607
        %5806 = vmatprep.subr.bf16.mxu0 %v3604
        %5807 = vmatpush1.bf16.msra.mxu0 %v3603
        %5808 = vmatprep.subr.bf16.mxu0 %v3832
        %5809 = vmatpush2.bf16.msra.mxu0 %v3831
        %5810 = vmatprep.subr.bf16.mxu0 %v3828
        %5811 = vmatpush2.bf16.msra.mxu0 %v3827
        %5812 = vmatprep.subr.bf16.mxu0 %v3824
        %5813 = vmatpush2.bf16.msra.mxu0 %v3823
        %5814 = vmatprep.subr.bf16.mxu0 %v3820
        %5815 = vmatpush2.bf16.msra.mxu0 %v3819
        %5816 = vmatprep.subr.bf16.mxu0 %v3760
        %5817 = vmatpush2.bf16.msra.mxu0 %v3759
        %5818 = vmatprep.subr.bf16.mxu0 %v3756
        %5819 = vmatpush2.bf16.msra.mxu0 %v3755
        %5820 = vmatprep.subr.bf16.mxu0 %v3752
        %5821 = vmatpush2.bf16.msra.mxu0 %v3751
        %5822 = vmatprep.subr.bf16.mxu0 %v3748
        %5823 = vmatpush2.bf16.msra.mxu0 %v3747
        %5824 = vmatprep.mubr.bf16.mxu0 %v4846
        %5825 = vmatmul.mubr.bf16.gmra.mxu0 %v4845
        %v5826 = vpop.f32.mrf.mxu0
        %v5827 = vadd.f32 %v5714, %v5826
        %v5828 = vpop.f32.mrf.mxu0
        %v5829 = vadd.f32 %v5716, %v5828
        %v5830 = vpop.f32.mrf.mxu0
        %v5831 = vadd.f32 %v5718, %v5830
        %v5832 = vpop.f32.mrf.mxu0
        %v5833 = vadd.f32 %v5720, %v5832
        %5834 = vmatprep.mubr.bf16.mxu0 %v4856
        %5835 = vmatmul.mubr.bf16.gmra.mxu0 %v4855
        %v5836 = vpop.f32.mrf.mxu0
        %v5837 = vadd.f32 %v5724, %v5836
        %v5838 = vpop.f32.mrf.mxu0
        %v5839 = vadd.f32 %v5726, %v5838
        %v5840 = vpop.f32.mrf.mxu0
        %v5841 = vadd.f32 %v5728, %v5840
        %v5842 = vpop.f32.mrf.mxu0
        %v5843 = vadd.f32 %v5730, %v5842
        %5844 = vmatprep.mubr.bf16.mxu0 %v4866
        %5845 = vmatmul.mubr.bf16.gmra.mxu0 %v4865
        %v5846 = vpop.f32.mrf.mxu0
        %v5847 = vadd.f32 %v5734, %v5846
        %v5848 = vpop.f32.mrf.mxu0
        %v5849 = vadd.f32 %v5736, %v5848
        %v5850 = vpop.f32.mrf.mxu0
        %v5851 = vadd.f32 %v5738, %v5850
        %v5852 = vpop.f32.mrf.mxu0
        %v5853 = vadd.f32 %v5740, %v5852
        %5854 = vmatprep.mubr.bf16.mxu0 %v4876
        %5855 = vmatmul.mubr.bf16.gmra.mxu0 %v4875
        %v5856 = vpop.f32.mrf.mxu0
        %v5857 = vadd.f32 %v5744, %v5856
        %v5858 = vpop.f32.mrf.mxu0
        %v5859 = vadd.f32 %v5746, %v5858
        %v5860 = vpop.f32.mrf.mxu0
        %v5861 = vadd.f32 %v5748, %v5860
        %v5862 = vpop.f32.mrf.mxu0
        %v5863 = vadd.f32 %v5750, %v5862
        %5864 = vmatprep.mubr.bf16.mxu0 %v4886
        %5865 = vmatmul.mubr.bf16.gmra.mxu0 %v4885
        %v5866 = vpop.f32.mrf.mxu0
        %v5867 = vadd.f32 %v5754, %v5866
        %v5868 = vpop.f32.mrf.mxu0
        %v5869 = vadd.f32 %v5756, %v5868
        %v5870 = vpop.f32.mrf.mxu0
        %v5871 = vadd.f32 %v5758, %v5870
        %v5872 = vpop.f32.mrf.mxu0
        %v5873 = vadd.f32 %v5760, %v5872
        %5874 = vmatprep.mubr.bf16.mxu0 %v4896
        %5875 = vmatmul.mubr.bf16.gmra.mxu0 %v4895
        %v5876 = vpop.f32.mrf.mxu0
        %v5877 = vadd.f32 %v5764, %v5876
        %v5878 = vpop.f32.mrf.mxu0
        %v5879 = vadd.f32 %v5766, %v5878
        %v5880 = vpop.f32.mrf.mxu0
        %v5881 = vadd.f32 %v5768, %v5880
        %v5882 = vpop.f32.mrf.mxu0
        %v5883 = vadd.f32 %v5770, %v5882
        %5884 = vmatprep.mubr.bf16.mxu0 %v4906
        %5885 = vmatmul.mubr.bf16.gmra.mxu0 %v4905
        %v5886 = vpop.f32.mrf.mxu0
        %v5887 = vadd.f32 %v5774, %v5886
        %v5888 = vpop.f32.mrf.mxu0
        %v5889 = vadd.f32 %v5776, %v5888
        %v5890 = vpop.f32.mrf.mxu0
        %v5891 = vadd.f32 %v5778, %v5890
        %v5892 = vpop.f32.mrf.mxu0
        %v5893 = vadd.f32 %v5780, %v5892
        %5894 = vmatprep.mubr.bf16.mxu0 %v4916
        %5895 = vmatmul.mubr.bf16.gmra.mxu0 %v4915
        %v5896 = vpop.f32.mrf.mxu0
        %v5897 = vadd.f32 %v5784, %v5896
        %v5898 = vpop.f32.mrf.mxu0
        %v5899 = vadd.f32 %v5786, %v5898
        %v5900 = vpop.f32.mrf.mxu0
        %v5901 = vadd.f32 %v5788, %v5900
        %v5902 = vpop.f32.mrf.mxu0
        %v5903 = vadd.f32 %v5790, %v5902
        %5904 = vdwg.mxu0
        %5905 = vmatprep.subr.bf16.mxu0 %v3976
        %5906 = vmatpush1.bf16.msra.mxu0 %v3975
        %5907 = vmatprep.subr.bf16.mxu0 %v3972
        %5908 = vmatpush1.bf16.msra.mxu0 %v3971
        %5909 = vmatprep.subr.bf16.mxu0 %v3968
        %5910 = vmatpush1.bf16.msra.mxu0 %v3967
        %5911 = vmatprep.subr.bf16.mxu0 %v3964
        %5912 = vmatpush1.bf16.msra.mxu0 %v3963
        %5913 = vmatprep.subr.bf16.mxu0 %v3904
        %5914 = vmatpush1.bf16.msra.mxu0 %v3903
        %5915 = vmatprep.subr.bf16.mxu0 %v3900
        %5916 = vmatpush1.bf16.msra.mxu0 %v3899
        %5917 = vmatprep.subr.bf16.mxu0 %v3896
        %5918 = vmatpush1.bf16.msra.mxu0 %v3895
        %5919 = vmatprep.subr.bf16.mxu0 %v3892
        %5920 = vmatpush1.bf16.msra.mxu0 %v3891
        %5921 = vmatprep.subr.bf16.mxu0 %v4120
        %5922 = vmatpush2.bf16.msra.mxu0 %v4119
        %5923 = vmatprep.subr.bf16.mxu0 %v4116
        %5924 = vmatpush2.bf16.msra.mxu0 %v4115
        %5925 = vmatprep.subr.bf16.mxu0 %v4112
        %5926 = vmatpush2.bf16.msra.mxu0 %v4111
        %5927 = vmatprep.subr.bf16.mxu0 %v4108
        %5928 = vmatpush2.bf16.msra.mxu0 %v4107
        %5929 = vmatprep.subr.bf16.mxu0 %v4048
        %5930 = vmatpush2.bf16.msra.mxu0 %v4047
        %5931 = vmatprep.subr.bf16.mxu0 %v4044
        %5932 = vmatpush2.bf16.msra.mxu0 %v4043
        %5933 = vmatprep.subr.bf16.mxu0 %v4040
        %5934 = vmatpush2.bf16.msra.mxu0 %v4039
        %5935 = vmatprep.subr.bf16.mxu0 %v4036
        %5936 = vmatpush2.bf16.msra.mxu0 %v4035
        %5937 = vmatprep.mubr.bf16.mxu0 %v4848
        %5938 = vmatmul.mubr.bf16.gmra.mxu0 %v4847
        %v5939 = vpop.f32.mrf.mxu0
        %v5940 = vadd.f32 %v5827, %v5939
        %v5941 = vpop.f32.mrf.mxu0
        %v5942 = vadd.f32 %v5829, %v5941
        %v5943 = vpop.f32.mrf.mxu0
        %v5944 = vadd.f32 %v5831, %v5943
        %v5945 = vpop.f32.mrf.mxu0
        %v5946 = vadd.f32 %v5833, %v5945
        %5947 = vmatprep.mubr.bf16.mxu0 %v4858
        %5948 = vmatmul.mubr.bf16.gmra.mxu0 %v4857
        %v5949 = vpop.f32.mrf.mxu0
        %v5950 = vadd.f32 %v5837, %v5949
        %v5951 = vpop.f32.mrf.mxu0
        %v5952 = vadd.f32 %v5839, %v5951
        %v5953 = vpop.f32.mrf.mxu0
        %v5954 = vadd.f32 %v5841, %v5953
        %v5955 = vpop.f32.mrf.mxu0
        %v5956 = vadd.f32 %v5843, %v5955
        %5957 = vmatprep.mubr.bf16.mxu0 %v4868
        %5958 = vmatmul.mubr.bf16.gmra.mxu0 %v4867
        %v5959 = vpop.f32.mrf.mxu0
        %v5960 = vadd.f32 %v5847, %v5959
        %v5961 = vpop.f32.mrf.mxu0
        %v5962 = vadd.f32 %v5849, %v5961
        %v5963 = vpop.f32.mrf.mxu0
        %v5964 = vadd.f32 %v5851, %v5963
        %v5965 = vpop.f32.mrf.mxu0
        %v5966 = vadd.f32 %v5853, %v5965
        %5967 = vmatprep.mubr.bf16.mxu0 %v4878
        %5968 = vmatmul.mubr.bf16.gmra.mxu0 %v4877
        %v5969 = vpop.f32.mrf.mxu0
        %v5970 = vadd.f32 %v5857, %v5969
        %v5971 = vpop.f32.mrf.mxu0
        %v5972 = vadd.f32 %v5859, %v5971
        %v5973 = vpop.f32.mrf.mxu0
        %v5974 = vadd.f32 %v5861, %v5973
        %v5975 = vpop.f32.mrf.mxu0
        %v5976 = vadd.f32 %v5863, %v5975
        %5977 = vmatprep.mubr.bf16.mxu0 %v4888
        %5978 = vmatmul.mubr.bf16.gmra.mxu0 %v4887
        %v5979 = vpop.f32.mrf.mxu0
        %v5980 = vadd.f32 %v5867, %v5979
        %v5981 = vpop.f32.mrf.mxu0
        %v5982 = vadd.f32 %v5869, %v5981
        %v5983 = vpop.f32.mrf.mxu0
        %v5984 = vadd.f32 %v5871, %v5983
        %v5985 = vpop.f32.mrf.mxu0
        %v5986 = vadd.f32 %v5873, %v5985
        %5987 = vmatprep.mubr.bf16.mxu0 %v4898
        %5988 = vmatmul.mubr.bf16.gmra.mxu0 %v4897
        %v5989 = vpop.f32.mrf.mxu0
        %v5990 = vadd.f32 %v5877, %v5989
        %v5991 = vpop.f32.mrf.mxu0
        %v5992 = vadd.f32 %v5879, %v5991
        %v5993 = vpop.f32.mrf.mxu0
        %v5994 = vadd.f32 %v5881, %v5993
        %v5995 = vpop.f32.mrf.mxu0
        %v5996 = vadd.f32 %v5883, %v5995
        %5997 = vmatprep.mubr.bf16.mxu0 %v4908
        %5998 = vmatmul.mubr.bf16.gmra.mxu0 %v4907
        %v5999 = vpop.f32.mrf.mxu0
        %v6000 = vadd.f32 %v5887, %v5999
        %v6001 = vpop.f32.mrf.mxu0
        %v6002 = vadd.f32 %v5889, %v6001
        %v6003 = vpop.f32.mrf.mxu0
        %v6004 = vadd.f32 %v5891, %v6003
        %v6005 = vpop.f32.mrf.mxu0
        %v6006 = vadd.f32 %v5893, %v6005
        %6007 = vmatprep.mubr.bf16.mxu0 %v4918
        %6008 = vmatmul.mubr.bf16.gmra.mxu0 %v4917
        %v6009 = vpop.f32.mrf.mxu0
        %v6010 = vadd.f32 %v5897, %v6009
        %v6011 = vpop.f32.mrf.mxu0
        %v6012 = vadd.f32 %v5899, %v6011
        %v6013 = vpop.f32.mrf.mxu0
        %v6014 = vadd.f32 %v5901, %v6013
        %v6015 = vpop.f32.mrf.mxu0
        %v6016 = vadd.f32 %v5903, %v6015
        %6017 = vdwg.mxu0
        %6018 = vmatprep.subr.bf16.mxu0 %v4328
        %6019 = vmatpush1.bf16.msra.mxu0 %v4327
        %6020 = vmatprep.subr.bf16.mxu0 %v4324
        %6021 = vmatpush1.bf16.msra.mxu0 %v4323
        %6022 = vmatprep.subr.bf16.mxu0 %v4320
        %6023 = vmatpush1.bf16.msra.mxu0 %v4319
        %6024 = vmatprep.subr.bf16.mxu0 %v4316
        %6025 = vmatpush1.bf16.msra.mxu0 %v4315
        %6026 = vmatprep.subr.bf16.mxu0 %v4312
        %6027 = vmatpush1.bf16.msra.mxu0 %v4311
        %6028 = vmatprep.subr.bf16.mxu0 %v4308
        %6029 = vmatpush1.bf16.msra.mxu0 %v4307
        %6030 = vmatprep.subr.bf16.mxu0 %v4304
        %6031 = vmatpush1.bf16.msra.mxu0 %v4303
        %6032 = vmatprep.subr.bf16.mxu0 %v4300
        %6033 = vmatpush1.bf16.msra.mxu0 %v4299
        %6034 = vmatprep.subr.bf16.mxu0 %v4360
        %6035 = vmatpush2.bf16.msra.mxu0 %v4359
        %6036 = vmatprep.subr.bf16.mxu0 %v4356
        %6037 = vmatpush2.bf16.msra.mxu0 %v4355
        %6038 = vmatprep.subr.bf16.mxu0 %v4352
        %6039 = vmatpush2.bf16.msra.mxu0 %v4351
        %6040 = vmatprep.subr.bf16.mxu0 %v4348
        %6041 = vmatpush2.bf16.msra.mxu0 %v4347
        %6042 = vmatprep.subr.bf16.mxu0 %v4344
        %6043 = vmatpush2.bf16.msra.mxu0 %v4343
        %6044 = vmatprep.subr.bf16.mxu0 %v4340
        %6045 = vmatpush2.bf16.msra.mxu0 %v4339
        %6046 = vmatprep.subr.bf16.mxu0 %v4336
        %6047 = vmatpush2.bf16.msra.mxu0 %v4335
        %6048 = vmatprep.subr.bf16.mxu0 %v4332
        %6049 = vmatpush2.bf16.msra.mxu0 %v4331
        %6050 = vmatprep.mubr.bf16.mxu0 %v4850
        %6051 = vmatmul.mubr.bf16.gmra.mxu0 %v4849
        %v6052 = vpop.f32.mrf.mxu0
        %v6053 = vadd.f32 %v5940, %v6052
        %v6054 = vpop.f32.mrf.mxu0
        %v6055 = vadd.f32 %v5942, %v6054
        %v6056 = vpop.f32.mrf.mxu0
        %v6057 = vadd.f32 %v5944, %v6056
        %v6058 = vpop.f32.mrf.mxu0
        %v6059 = vadd.f32 %v5946, %v6058
        %6060 = vmatprep.mubr.bf16.mxu0 %v4860
        %6061 = vmatmul.mubr.bf16.gmra.mxu0 %v4859
        %v6062 = vpop.f32.mrf.mxu0
        %v6063 = vadd.f32 %v5950, %v6062
        %v6064 = vpop.f32.mrf.mxu0
        %v6065 = vadd.f32 %v5952, %v6064
        %v6066 = vpop.f32.mrf.mxu0
        %v6067 = vadd.f32 %v5954, %v6066
        %v6068 = vpop.f32.mrf.mxu0
        %v6069 = vadd.f32 %v5956, %v6068
        %6070 = vmatprep.mubr.bf16.mxu0 %v4870
        %6071 = vmatmul.mubr.bf16.gmra.mxu0 %v4869
        %v6072 = vpop.f32.mrf.mxu0
        %v6073 = vadd.f32 %v5960, %v6072
        %v6074 = vpop.f32.mrf.mxu0
        %v6075 = vadd.f32 %v5962, %v6074
        %v6076 = vpop.f32.mrf.mxu0
        %v6077 = vadd.f32 %v5964, %v6076
        %v6078 = vpop.f32.mrf.mxu0
        %v6079 = vadd.f32 %v5966, %v6078
        %6080 = vmatprep.mubr.bf16.mxu0 %v4880
        %6081 = vmatmul.mubr.bf16.gmra.mxu0 %v4879
        %v6082 = vpop.f32.mrf.mxu0
        %v6083 = vadd.f32 %v5970, %v6082
        %v6084 = vpop.f32.mrf.mxu0
        %v6085 = vadd.f32 %v5972, %v6084
        %v6086 = vpop.f32.mrf.mxu0
        %v6087 = vadd.f32 %v5974, %v6086
        %v6088 = vpop.f32.mrf.mxu0
        %v6089 = vadd.f32 %v5976, %v6088
        %6090 = vmatprep.mubr.bf16.mxu0 %v4890
        %6091 = vmatmul.mubr.bf16.gmra.mxu0 %v4889
        %v6092 = vpop.f32.mrf.mxu0
        %v6093 = vadd.f32 %v5980, %v6092
        %v6094 = vpop.f32.mrf.mxu0
        %v6095 = vadd.f32 %v5982, %v6094
        %v6096 = vpop.f32.mrf.mxu0
        %v6097 = vadd.f32 %v5984, %v6096
        %v6098 = vpop.f32.mrf.mxu0
        %v6099 = vadd.f32 %v5986, %v6098
        %6100 = vmatprep.mubr.bf16.mxu0 %v4900
        %6101 = vmatmul.mubr.bf16.gmra.mxu0 %v4899
        %v6102 = vpop.f32.mrf.mxu0
        %v6103 = vadd.f32 %v5990, %v6102
        %v6104 = vpop.f32.mrf.mxu0
        %v6105 = vadd.f32 %v5992, %v6104
        %v6106 = vpop.f32.mrf.mxu0
        %v6107 = vadd.f32 %v5994, %v6106
        %v6108 = vpop.f32.mrf.mxu0
        %v6109 = vadd.f32 %v5996, %v6108
        %6110 = vmatprep.mubr.bf16.mxu0 %v4910
        %6111 = vmatmul.mubr.bf16.gmra.mxu0 %v4909
        %v6112 = vpop.f32.mrf.mxu0
        %v6113 = vadd.f32 %v6000, %v6112
        %v6114 = vpop.f32.mrf.mxu0
        %v6115 = vadd.f32 %v6002, %v6114
        %v6116 = vpop.f32.mrf.mxu0
        %v6117 = vadd.f32 %v6004, %v6116
        %v6118 = vpop.f32.mrf.mxu0
        %v6119 = vadd.f32 %v6006, %v6118
        %6120 = vmatprep.mubr.bf16.mxu0 %v4920
        %6121 = vmatmul.mubr.bf16.gmra.mxu0 %v4919
        %v6122 = vpop.f32.mrf.mxu0
        %v6123 = vadd.f32 %v6010, %v6122
        %v6124 = vpop.f32.mrf.mxu0
        %v6125 = vadd.f32 %v6012, %v6124
        %v6126 = vpop.f32.mrf.mxu0
        %v6127 = vadd.f32 %v6014, %v6126
        %v6128 = vpop.f32.mrf.mxu0
        %v6129 = vadd.f32 %v6016, %v6128
        %6130 = vdwg.mxu0
        %v6131 = vlaneseq
        %v6132 = vand.u32 %v6131, 127
        %v6133 = vstv %s455
        %v6134 = vadd.s32 %v6132, %v6133
        %v6135 = vstv %s454
        %vm6136 = vcmp.lt.s32.totalorder %v6134, %v6135
        %v6137 = vsel %vm6136, 1, 0
        %vm6138 = vcmp.eq.s32.totalorder %v6137, 1
        %v6139 = vsel %vm6138, %v5488, 0.0
        %v6140 = vsel %vm6138, %v5492, 0.0
        %v6141 = vsel %vm6138, %v5498, 0.0
        %v6142 = vsel %vm6138, %v5502, 0.0
        %v6143 = vsel %vm6138, %v5508, 0.0
        %v6144 = vsel %vm6138, %v5512, 0.0
        %v6145 = vsel %vm6138, %v5518, 0.0
        %v6146 = vsel %vm6138, %v5522, 0.0
        %v6147 = vsel %vm6138, %v5528, 0.0
        %v6148 = vsel %vm6138, %v5532, 0.0
        %v6149 = vsel %vm6138, %v5538, 0.0
        %v6150 = vsel %vm6138, %v5542, 0.0
        %v6151 = vsel %vm6138, %v5548, 0.0
        %v6152 = vsel %vm6138, %v5552, 0.0
        %v6153 = vsel %vm6138, %v5558, 0.0
        %v6154 = vsel %vm6138, %v5562, 0.0
        %v6155 = vadd.f32 %v6139, 0.0
        %v6156 = vadd.f32 %v6140, 0.0
        %v6157 = vadd.f32 %v6141, 0.0
        %v6158 = vadd.f32 %v6142, 0.0
        %v6159 = vadd.f32 %v6143, 0.0
        %v6160 = vadd.f32 %v6144, 0.0
        %v6161 = vadd.f32 %v6145, 0.0
        %v6162 = vadd.f32 %v6146, 0.0
        %v6163 = vadd.f32 %v6147, 0.0
        %v6164 = vadd.f32 %v6148, 0.0
        %v6165 = vadd.f32 %v6149, 0.0
        %v6166 = vadd.f32 %v6150, 0.0
        %v6167 = vadd.f32 %v6151, 0.0
        %v6168 = vadd.f32 %v6152, 0.0
        %v6169 = vadd.f32 %v6153, 0.0
        %v6170 = vadd.f32 %v6154, 0.0
        %v6171 = vmul.f32 %v6139, %v6139
        %v6172 = vmul.f32 %v6140, %v6140
        %v6173 = vmul.f32 %v6141, %v6141
        %v6174 = vmul.f32 %v6142, %v6142
        %v6175 = vmul.f32 %v6143, %v6143
        %v6176 = vmul.f32 %v6144, %v6144
        %v6177 = vmul.f32 %v6145, %v6145
        %v6178 = vmul.f32 %v6146, %v6146
        %v6179 = vmul.f32 %v6147, %v6147
        %v6180 = vmul.f32 %v6148, %v6148
        %v6181 = vmul.f32 %v6149, %v6149
        %v6182 = vmul.f32 %v6150, %v6150
        %v6183 = vmul.f32 %v6151, %v6151
        %v6184 = vmul.f32 %v6152, %v6152
        %v6185 = vmul.f32 %v6153, %v6153
        %v6186 = vmul.f32 %v6154, %v6154
        %v6187 = vadd.f32 %v6171, 0.0
        %v6188 = vadd.f32 %v6172, 0.0
        %v6189 = vadd.f32 %v6173, 0.0
        %v6190 = vadd.f32 %v6174, 0.0
        %v6191 = vadd.f32 %v6175, 0.0
        %v6192 = vadd.f32 %v6176, 0.0
        %v6193 = vadd.f32 %v6177, 0.0
        %v6194 = vadd.f32 %v6178, 0.0
        %v6195 = vadd.f32 %v6179, 0.0
        %v6196 = vadd.f32 %v6180, 0.0
        %v6197 = vadd.f32 %v6181, 0.0
        %v6198 = vadd.f32 %v6182, 0.0
        %v6199 = vadd.f32 %v6183, 0.0
        %v6200 = vadd.f32 %v6184, 0.0
        %v6201 = vadd.f32 %v6185, 0.0
        %v6202 = vadd.f32 %v6186, 0.0
        %s6203 = sadd.s32 %s455, 128
        %v6204 = vstv %s6203
        %v6205 = vadd.s32 %v6132, %v6204
        %vm6206 = vcmp.lt.s32.totalorder %v6205, %v6135
        %v6207 = vsel %vm6206, 1, 0
        %vm6208 = vcmp.eq.s32.totalorder %v6207, 1
        %v6209 = vsel %vm6208, %v5490, 0.0
        %v6210 = vsel %vm6208, %v5494, 0.0
        %v6211 = vsel %vm6208, %v5500, 0.0
        %v6212 = vsel %vm6208, %v5504, 0.0
        %v6213 = vsel %vm6208, %v5510, 0.0
        %v6214 = vsel %vm6208, %v5514, 0.0
        %v6215 = vsel %vm6208, %v5520, 0.0
        %v6216 = vsel %vm6208, %v5524, 0.0
        %v6217 = vsel %vm6208, %v5530, 0.0
        %v6218 = vsel %vm6208, %v5534, 0.0
        %v6219 = vsel %vm6208, %v5540, 0.0
        %v6220 = vsel %vm6208, %v5544, 0.0
        %v6221 = vsel %vm6208, %v5550, 0.0
        %v6222 = vsel %vm6208, %v5554, 0.0
        %v6223 = vsel %vm6208, %v5560, 0.0
        %v6224 = vsel %vm6208, %v5564, 0.0
        %v6225 = vadd.f32 %v6155, %v6209
        %v6226 = vadd.f32 %v6156, %v6210
        %v6227 = vadd.f32 %v6157, %v6211
        %v6228 = vadd.f32 %v6158, %v6212
        %v6229 = vadd.f32 %v6159, %v6213
        %v6230 = vadd.f32 %v6160, %v6214
        %v6231 = vadd.f32 %v6161, %v6215
        %v6232 = vadd.f32 %v6162, %v6216
        %v6233 = vadd.f32 %v6163, %v6217
        %v6234 = vadd.f32 %v6164, %v6218
        %v6235 = vadd.f32 %v6165, %v6219
        %v6236 = vadd.f32 %v6166, %v6220
        %v6237 = vadd.f32 %v6167, %v6221
        %v6238 = vadd.f32 %v6168, %v6222
        %v6239 = vadd.f32 %v6169, %v6223
        %v6240 = vadd.f32 %v6170, %v6224
        %v6241 = vmul.f32 %v6209, %v6209
        %v6242 = vmul.f32 %v6210, %v6210
        %v6243 = vmul.f32 %v6211, %v6211
        %v6244 = vmul.f32 %v6212, %v6212
        %v6245 = vmul.f32 %v6213, %v6213
        %v6246 = vmul.f32 %v6214, %v6214
        %v6247 = vmul.f32 %v6215, %v6215
        %v6248 = vmul.f32 %v6216, %v6216
        %v6249 = vmul.f32 %v6217, %v6217
        %v6250 = vmul.f32 %v6218, %v6218
        %v6251 = vmul.f32 %v6219, %v6219
        %v6252 = vmul.f32 %v6220, %v6220
        %v6253 = vmul.f32 %v6221, %v6221
        %v6254 = vmul.f32 %v6222, %v6222
        %v6255 = vmul.f32 %v6223, %v6223
        %v6256 = vmul.f32 %v6224, %v6224
        %v6257 = vadd.f32 %v6187, %v6241
        %v6258 = vadd.f32 %v6188, %v6242
        %v6259 = vadd.f32 %v6189, %v6243
        %v6260 = vadd.f32 %v6190, %v6244
        %v6261 = vadd.f32 %v6191, %v6245
        %v6262 = vadd.f32 %v6192, %v6246
        %v6263 = vadd.f32 %v6193, %v6247
        %v6264 = vadd.f32 %v6194, %v6248
        %v6265 = vadd.f32 %v6195, %v6249
        %v6266 = vadd.f32 %v6196, %v6250
        %v6267 = vadd.f32 %v6197, %v6251
        %v6268 = vadd.f32 %v6198, %v6252
        %v6269 = vadd.f32 %v6199, %v6253
        %v6270 = vadd.f32 %v6200, %v6254
        %v6271 = vadd.f32 %v6201, %v6255
        %v6272 = vadd.f32 %v6202, %v6256
        %s6273 = sadd.s32 %s455, 256
        %v6274 = vstv %s6273
        %v6275 = vadd.s32 %v6132, %v6274
        %vm6276 = vcmp.lt.s32.totalorder %v6275, %v6135
        %v6277 = vsel %vm6276, 1, 0
        %vm6278 = vcmp.eq.s32.totalorder %v6277, 1
        %v6279 = vsel %vm6278, %v6053, 0.0
        %v6280 = vsel %vm6278, %v6057, 0.0
        %v6281 = vsel %vm6278, %v6063, 0.0
        %v6282 = vsel %vm6278, %v6067, 0.0
        %v6283 = vsel %vm6278, %v6073, 0.0
        %v6284 = vsel %vm6278, %v6077, 0.0
        %v6285 = vsel %vm6278, %v6083, 0.0
        %v6286 = vsel %vm6278, %v6087, 0.0
        %v6287 = vsel %vm6278, %v6093, 0.0
        %v6288 = vsel %vm6278, %v6097, 0.0
        %v6289 = vsel %vm6278, %v6103, 0.0
        %v6290 = vsel %vm6278, %v6107, 0.0
        %v6291 = vsel %vm6278, %v6113, 0.0
        %v6292 = vsel %vm6278, %v6117, 0.0
        %v6293 = vsel %vm6278, %v6123, 0.0
        %v6294 = vsel %vm6278, %v6127, 0.0
        %v6295 = vadd.f32 %v6225, %v6279
        %v6296 = vadd.f32 %v6226, %v6280
        %v6297 = vadd.f32 %v6227, %v6281
        %v6298 = vadd.f32 %v6228, %v6282
        %v6299 = vadd.f32 %v6229, %v6283
        %v6300 = vadd.f32 %v6230, %v6284
        %v6301 = vadd.f32 %v6231, %v6285
        %v6302 = vadd.f32 %v6232, %v6286
        %v6303 = vadd.f32 %v6233, %v6287
        %v6304 = vadd.f32 %v6234, %v6288
        %v6305 = vadd.f32 %v6235, %v6289
        %v6306 = vadd.f32 %v6236, %v6290
        %v6307 = vadd.f32 %v6237, %v6291
        %v6308 = vadd.f32 %v6238, %v6292
        %v6309 = vadd.f32 %v6239, %v6293
        %v6310 = vadd.f32 %v6240, %v6294
        %v6311 = vmul.f32 %v6279, %v6279
        %v6312 = vmul.f32 %v6280, %v6280
        %v6313 = vmul.f32 %v6281, %v6281
        %v6314 = vmul.f32 %v6282, %v6282
        %v6315 = vmul.f32 %v6283, %v6283
        %v6316 = vmul.f32 %v6284, %v6284
        %v6317 = vmul.f32 %v6285, %v6285
        %v6318 = vmul.f32 %v6286, %v6286
        %v6319 = vmul.f32 %v6287, %v6287
        %v6320 = vmul.f32 %v6288, %v6288
        %v6321 = vmul.f32 %v6289, %v6289
        %v6322 = vmul.f32 %v6290, %v6290
        %v6323 = vmul.f32 %v6291, %v6291
        %v6324 = vmul.f32 %v6292, %v6292
        %v6325 = vmul.f32 %v6293, %v6293
        %v6326 = vmul.f32 %v6294, %v6294
        %v6327 = vadd.f32 %v6257, %v6311
        %v6328 = vadd.f32 %v6258, %v6312
        %v6329 = vadd.f32 %v6259, %v6313
        %v6330 = vadd.f32 %v6260, %v6314
        %v6331 = vadd.f32 %v6261, %v6315
        %v6332 = vadd.f32 %v6262, %v6316
        %v6333 = vadd.f32 %v6263, %v6317
        %v6334 = vadd.f32 %v6264, %v6318
        %v6335 = vadd.f32 %v6265, %v6319
        %v6336 = vadd.f32 %v6266, %v6320
        %v6337 = vadd.f32 %v6267, %v6321
        %v6338 = vadd.f32 %v6268, %v6322
        %v6339 = vadd.f32 %v6269, %v6323
        %v6340 = vadd.f32 %v6270, %v6324
        %v6341 = vadd.f32 %v6271, %v6325
        %v6342 = vadd.f32 %v6272, %v6326
        %s6343 = sadd.s32 %s455, 384
        %v6344 = vstv %s6343
        %v6345 = vadd.s32 %v6132, %v6344
        %vm6346 = vcmp.lt.s32.totalorder %v6345, %v6135
        %v6347 = vsel %vm6346, 1, 0
        %vm6348 = vcmp.eq.s32.totalorder %v6347, 1
        %v6349 = vsel %vm6348, %v6055, 0.0
        %v6350 = vsel %vm6348, %v6059, 0.0
        %v6351 = vsel %vm6348, %v6065, 0.0
        %v6352 = vsel %vm6348, %v6069, 0.0
        %v6353 = vsel %vm6348, %v6075, 0.0
        %v6354 = vsel %vm6348, %v6079, 0.0
        %v6355 = vsel %vm6348, %v6085, 0.0
        %v6356 = vsel %vm6348, %v6089, 0.0
        %v6357 = vsel %vm6348, %v6095, 0.0
        %v6358 = vsel %vm6348, %v6099, 0.0
        %v6359 = vsel %vm6348, %v6105, 0.0
        %v6360 = vsel %vm6348, %v6109, 0.0
        %v6361 = vsel %vm6348, %v6115, 0.0
        %v6362 = vsel %vm6348, %v6119, 0.0
        %v6363 = vsel %vm6348, %v6125, 0.0
        %v6364 = vsel %vm6348, %v6129, 0.0
        %v6365 = vadd.f32 %v6295, %v6349
        %v6366 = vadd.f32 %v6296, %v6350
        %v6367 = vadd.f32 %v6297, %v6351
        %v6368 = vadd.f32 %v6298, %v6352
        %v6369 = vadd.f32 %v6299, %v6353
        %v6370 = vadd.f32 %v6300, %v6354
        %v6371 = vadd.f32 %v6301, %v6355
        %v6372 = vadd.f32 %v6302, %v6356
        %v6373 = vadd.f32 %v6303, %v6357
        %v6374 = vadd.f32 %v6304, %v6358
        %v6375 = vadd.f32 %v6305, %v6359
        %v6376 = vadd.f32 %v6306, %v6360
        %v6377 = vadd.f32 %v6307, %v6361
        %v6378 = vadd.f32 %v6308, %v6362
        %v6379 = vadd.f32 %v6309, %v6363
        %v6380 = vadd.f32 %v6310, %v6364
        %v6381 = vmul.f32 %v6349, %v6349
        %v6382 = vmul.f32 %v6350, %v6350
        %v6383 = vmul.f32 %v6351, %v6351
        %v6384 = vmul.f32 %v6352, %v6352
        %v6385 = vmul.f32 %v6353, %v6353
        %v6386 = vmul.f32 %v6354, %v6354
        %v6387 = vmul.f32 %v6355, %v6355
        %v6388 = vmul.f32 %v6356, %v6356
        %v6389 = vmul.f32 %v6357, %v6357
        %v6390 = vmul.f32 %v6358, %v6358
        %v6391 = vmul.f32 %v6359, %v6359
        %v6392 = vmul.f32 %v6360, %v6360
        %v6393 = vmul.f32 %v6361, %v6361
        %v6394 = vmul.f32 %v6362, %v6362
        %v6395 = vmul.f32 %v6363, %v6363
        %v6396 = vmul.f32 %v6364, %v6364
        %v6397 = vadd.f32 %v6327, %v6381
        %v6398 = vadd.f32 %v6328, %v6382
        %v6399 = vadd.f32 %v6329, %v6383
        %v6400 = vadd.f32 %v6330, %v6384
        %v6401 = vadd.f32 %v6331, %v6385
        %v6402 = vadd.f32 %v6332, %v6386
        %v6403 = vadd.f32 %v6333, %v6387
        %v6404 = vadd.f32 %v6334, %v6388
        %v6405 = vadd.f32 %v6335, %v6389
        %v6406 = vadd.f32 %v6336, %v6390
        %v6407 = vadd.f32 %v6337, %v6391
        %v6408 = vadd.f32 %v6338, %v6392
        %v6409 = vadd.f32 %v6339, %v6393
        %v6410 = vadd.f32 %v6340, %v6394
        %v6411 = vadd.f32 %v6341, %v6395
        %v6412 = vadd.f32 %v6342, %v6396
        %v6413 = vld [vmem:[%s452] sm:$0xff]
        %v6414 = vld [vmem:[%s452 + $0x10] sm:$0xff]
        %v6415 = vld [vmem:[%s452 + $0x20] sm:$0xff]
        %v6416 = vld [vmem:[%s452 + $0x30] sm:$0xff]
        %v6417 = vld [vmem:[%s452 + $0x40] sm:$0xff]
        %v6418 = vld [vmem:[%s452 + $0x50] sm:$0xff]
        %v6419 = vld [vmem:[%s452 + $0x60] sm:$0xff]
        %v6420 = vld [vmem:[%s452 + $0x70] sm:$0xff]
        %v6421 = vld [vmem:[%s452 + $0x80] sm:$0xff]
        %v6422 = vld [vmem:[%s452 + $0x90] sm:$0xff]
        %v6423 = vld [vmem:[%s452 + $0xa0] sm:$0xff]
        %v6424 = vld [vmem:[%s452 + $0xb0] sm:$0xff]
        %v6425 = vld [vmem:[%s452 + $0xc0] sm:$0xff]
        %v6426 = vld [vmem:[%s452 + $0xd0] sm:$0xff]
        %v6427 = vld [vmem:[%s452 + $0xe0] sm:$0xff]
        %v6428 = vld [vmem:[%s452 + $0xf0] sm:$0xff]
        %v6429 = vadd.f32 %v6413, %v6365
        %v6430 = vadd.f32 %v6414, %v6366
        %v6431 = vadd.f32 %v6415, %v6367
        %v6432 = vadd.f32 %v6416, %v6368
        %v6433 = vadd.f32 %v6417, %v6369
        %v6434 = vadd.f32 %v6418, %v6370
        %v6435 = vadd.f32 %v6419, %v6371
        %v6436 = vadd.f32 %v6420, %v6372
        %v6437 = vadd.f32 %v6421, %v6373
        %v6438 = vadd.f32 %v6422, %v6374
        %v6439 = vadd.f32 %v6423, %v6375
        %v6440 = vadd.f32 %v6424, %v6376
        %v6441 = vadd.f32 %v6425, %v6377
        %v6442 = vadd.f32 %v6426, %v6378
        %v6443 = vadd.f32 %v6427, %v6379
        %v6444 = vadd.f32 %v6428, %v6380
        %6445 = vst [vmem:[%s452] sm:$0xff] %v6429
        %6446 = vst [vmem:[%s452 + $0x10] sm:$0xff] %v6430
        %6447 = vst [vmem:[%s452 + $0x20] sm:$0xff] %v6431
        %6448 = vst [vmem:[%s452 + $0x30] sm:$0xff] %v6432
        %6449 = vst [vmem:[%s452 + $0x40] sm:$0xff] %v6433
        %6450 = vst [vmem:[%s452 + $0x50] sm:$0xff] %v6434
        %6451 = vst [vmem:[%s452 + $0x60] sm:$0xff] %v6435
        %6452 = vst [vmem:[%s452 + $0x70] sm:$0xff] %v6436
        %6453 = vst [vmem:[%s452 + $0x80] sm:$0xff] %v6437
        %6454 = vst [vmem:[%s452 + $0x90] sm:$0xff] %v6438
        %6455 = vst [vmem:[%s452 + $0xa0] sm:$0xff] %v6439
        %6456 = vst [vmem:[%s452 + $0xb0] sm:$0xff] %v6440
        %6457 = vst [vmem:[%s452 + $0xc0] sm:$0xff] %v6441
        %6458 = vst [vmem:[%s452 + $0xd0] sm:$0xff] %v6442
        %6459 = vst [vmem:[%s452 + $0xe0] sm:$0xff] %v6443
        %6460 = vst [vmem:[%s452 + $0xf0] sm:$0xff] %v6444
        %v6461 = vld [vmem:[%s452 + $0x8] sm:$0xff]
        %v6462 = vld [vmem:[%s452 + $0x18] sm:$0xff]
        %v6463 = vld [vmem:[%s452 + $0x28] sm:$0xff]
        %v6464 = vld [vmem:[%s452 + $0x38] sm:$0xff]
        %v6465 = vld [vmem:[%s452 + $0x48] sm:$0xff]
        %v6466 = vld [vmem:[%s452 + $0x58] sm:$0xff]
        %v6467 = vld [vmem:[%s452 + $0x68] sm:$0xff]
        %v6468 = vld [vmem:[%s452 + $0x78] sm:$0xff]
        %v6469 = vld [vmem:[%s452 + $0x88] sm:$0xff]
        %v6470 = vld [vmem:[%s452 + $0x98] sm:$0xff]
        %v6471 = vld [vmem:[%s452 + $0xa8] sm:$0xff]
        %v6472 = vld [vmem:[%s452 + $0xb8] sm:$0xff]
        %v6473 = vld [vmem:[%s452 + $0xc8] sm:$0xff]
        %v6474 = vld [vmem:[%s452 + $0xd8] sm:$0xff]
        %v6475 = vld [vmem:[%s452 + $0xe8] sm:$0xff]
        %v6476 = vld [vmem:[%s452 + $0xf8] sm:$0xff]
        %v6477 = vadd.f32 %v6461, %v6397
        %v6478 = vadd.f32 %v6462, %v6398
        %v6479 = vadd.f32 %v6463, %v6399
        %v6480 = vadd.f32 %v6464, %v6400
        %v6481 = vadd.f32 %v6465, %v6401
        %v6482 = vadd.f32 %v6466, %v6402
        %v6483 = vadd.f32 %v6467, %v6403
        %v6484 = vadd.f32 %v6468, %v6404
        %v6485 = vadd.f32 %v6469, %v6405
        %v6486 = vadd.f32 %v6470, %v6406
        %v6487 = vadd.f32 %v6471, %v6407
        %v6488 = vadd.f32 %v6472, %v6408
        %v6489 = vadd.f32 %v6473, %v6409
        %v6490 = vadd.f32 %v6474, %v6410
        %v6491 = vadd.f32 %v6475, %v6411
        %v6492 = vadd.f32 %v6476, %v6412
        %6493 = vst [vmem:[%s452 + $0x8] sm:$0xff] %v6477
        %6494 = vst [vmem:[%s452 + $0x18] sm:$0xff] %v6478
        %6495 = vst [vmem:[%s452 + $0x28] sm:$0xff] %v6479
        %6496 = vst [vmem:[%s452 + $0x38] sm:$0xff] %v6480
        %6497 = vst [vmem:[%s452 + $0x48] sm:$0xff] %v6481
        %6498 = vst [vmem:[%s452 + $0x58] sm:$0xff] %v6482
        %6499 = vst [vmem:[%s452 + $0x68] sm:$0xff] %v6483
        %6500 = vst [vmem:[%s452 + $0x78] sm:$0xff] %v6484
        %6501 = vst [vmem:[%s452 + $0x88] sm:$0xff] %v6485
        %6502 = vst [vmem:[%s452 + $0x98] sm:$0xff] %v6486
        %6503 = vst [vmem:[%s452 + $0xa8] sm:$0xff] %v6487
        %6504 = vst [vmem:[%s452 + $0xb8] sm:$0xff] %v6488
        %6505 = vst [vmem:[%s452 + $0xc8] sm:$0xff] %v6489
        %6506 = vst [vmem:[%s452 + $0xd8] sm:$0xff] %v6490
        %6507 = vst [vmem:[%s452 + $0xe8] sm:$0xff] %v6491
        %6508 = vst [vmem:[%s452 + $0xf8] sm:$0xff] %v6492
        %p6509 = scmp.lt.s32.totalorder %s33, 3
        %s6510 = scalar_select %p6509, %s33, 3
        %s6511 = smul.addr %s6510, 32
        %s6512 = smul.addr %s6511, 8
        %s6513 = scalar_lea.vmem %s8, %s6512
        // Predicated region
        $region65: #{forward.1} parent=47 // pred_check
          %p6514 = pneg %p236
        $region66: #{forward.1} parent=47 // pred_check_branch
          %6516 = sbr.rel (%p6514) target = $region68
        $region67: #{forward.1} parent=47 // pred_region
          _
        $region68: #{forward.1} parent=47 // pred_fallthru
          _
      $region48: #{forward.1} parent=5 // pred_fallthru
        _
      %p6517 = scmp.le.s32.totalorder 2, %s24
      // Predicated region
      $region69: #{forward.1} parent=5 // pred_check
        %p6518 = pneg %p6517
      $region70: #{forward.1} parent=5 // pred_check_branch
        %6520 = sbr.rel (%p6518) target = $region72
      $region71: #{forward.1} parent=5 // pred_region
        %s6521 = ssub.s32 %s24, 2
        // Predicated region
        $region73: #{forward.1} parent=71 // pred_check
          %p6522 = pneg %p242
        $region74: #{forward.1} parent=71 // pred_check_branch
          %6524 = sbr.rel (%p6522) target = $region76
        $region75: #{forward.1} parent=71 // pred_region
          %p6525 = scmp.lt.s32.totalorder %s35, 3
          %s6526 = scalar_select %p6525, %s35, 3
          %s6527 = smul.addr %s6526, 32
          %s6528 = smul.addr %s6527, 8
          %s6529 = scalar_lea.vmem %s8, %s6528
        $region76: #{forward.1} parent=71 // pred_fallthru
          _
      $region72: #{forward.1} parent=5 // pred_fallthru
        _
    $region6: #{forward.1} parent=1 // loop_footer
      %s28 = sadd.s32 1, %s24
    $region7: #{forward.1} parent=1 // loop_footer_branch
      %23 = sbr.rel target = $region3
    $region8: #{forward.1} parent=1 // loop_exit
      _
    %6530 = vsyncpa [#allocation5], 1
    %s6531 = scalar_lea.sflag [#allocation5], 1
    %6532 = vsyncpa %s6531, 1
    %6533 = vsyncpa [#allocation7], 1
    %s6534 = scalar_lea.sflag [#allocation7], 1
    %6535 = vsyncpa %s6534, 1

</llo_original>
